<compile_context>
chip_gen: v7x
topology: tpu7x:2x2x1
jax: 0.10.0
libtpu: 0.0.40
codegen_flags: <defaults>
</compile_context>

<pallas_src>
import functools
import math

import jax
import jax.numpy as jnp
from jax import lax
from jax.experimental import pallas as pl
from jax.experimental.pallas import tpu as pltpu


# ------------------------------------------------------------------ config

CFG = dict(
    vocab_size=16,            # input feature dim
    hidden_size=64,
    num_layers=2,
    num_heads=2,
    qk_nope_head_dim=16,
    qk_rope_head_dim=16,
    v_head_dim=32,
    moe_intermediate_size=32,
    num_experts=4,
    num_experts_per_token=2,
    q_lora_rank=8,
    kv_lora_rank=16,
    attention_scale_factor=1.0,
    rope_theta=10000.0,
    rope_scaling_factor=1.0,
    max_seq_len=8,
    prediction_type='regression',
)

_EPS = 1e-6
_ROW_TILE = 256   # row-tile bound for the generic wrappers (full rows when smaller)


# ------------------------------------------------------------------ small generic kernels

def _linear_kernel(x_ref, w_ref, b_ref, o_ref):
    # y = x @ w + b   (w stored [in, out], bf16; f32 accumulation)
    x = x_ref[...].astype(jnp.bfloat16)
    acc = jnp.dot(x, w_ref[...], preferred_element_type=jnp.float32)
    o_ref[...] = (acc + b_ref[...]).astype(o_ref.dtype)


def _rmsnorm_kernel(x_ref, w_ref, o_ref, *, eps):
    x = x_ref[...]
    ms = jnp.mean(x * x, axis=-1, keepdims=True)
    o_ref[...] = (x * lax.rsqrt(ms + eps) * w_ref[...]).astype(o_ref.dtype)


def linear(x2d, w, b):
    M, K = x2d.shape
    N = w.shape[1]
    tm = M if M <= _ROW_TILE else _ROW_TILE
    return pl.pallas_call(
        _linear_kernel,
        grid=(pl.cdiv(M, tm),),
        in_specs=[pl.BlockSpec((tm, K), lambda i: (i, 0)),
                  pl.BlockSpec((K, N), lambda i: (0, 0)),
                  pl.BlockSpec((1, N), lambda i: (0, 0))],
        out_specs=pl.BlockSpec((tm, N), lambda i: (i, 0)),
        out_shape=jax.ShapeDtypeStruct((M, N), jnp.float32),
        compiler_params=pltpu.CompilerParams(dimension_semantics=("parallel",)),
    )(x2d, w, b.reshape(1, N))


def rmsnorm(x2d, wgt, eps=_EPS):
    M, D = x2d.shape
    tm = M if M <= _ROW_TILE else _ROW_TILE
    return pl.pallas_call(
        functools.partial(_rmsnorm_kernel, eps=eps),
        grid=(pl.cdiv(M, tm),),
        in_specs=[pl.BlockSpec((tm, D), lambda i: (i, 0)),
                  pl.BlockSpec((1, D), lambda i: (0, 0))],
        out_specs=pl.BlockSpec((tm, D), lambda i: (i, 0)),
        out_shape=jax.ShapeDtypeStruct((M, D), jnp.float32),
        compiler_params=pltpu.CompilerParams(dimension_semantics=("parallel",)),
    )(x2d, wgt.reshape(1, D))


# ------------------------------------------------------------------ fused attention-block kernel
# Per batch element: rmsnorm -> MLA LoRA projections -> RoPE -> causal attention -> out-proj -> +residual

def _attn_block_kernel(x_ref, nw_ref, qa_ref, qb_ref, kva_ref, kvb_ref,
                       ow_ref, ob_ref, cos_ref, sin_ref, o_ref, *,
                       nh, dn, dr, dv, kvl, scale, eps):
    x = x_ref[0]                                    # [S, H] f32 (residual stream)
    S = x.shape[0]

    # pre-attention RMSNorm (f32 VPU math)
    ms = jnp.mean(x * x, axis=-1, keepdims=True)
    h = x * lax.rsqrt(ms + eps) * nw_ref[...]
    hb = h.astype(jnp.bfloat16)

    # MLA projections: bf16 MXU inputs, f32 accumulation; intermediates stay in vregs/VMEM
    q_lat = jnp.dot(hb, qa_ref[...], preferred_element_type=jnp.float32)          # [S, ql]
    q = jnp.dot(q_lat.astype(jnp.bfloat16), qb_ref[...],
                preferred_element_type=jnp.float32)                               # [S, nh*(dn+dr)]
    kv_a = jnp.dot(hb, kva_ref[...], preferred_element_type=jnp.float32)          # [S, kvl+dr]
    kv_lat = kv_a[:, :kvl]
    k_rope = kv_a[:, kvl:]                                                        # [S, dr] (shared heads)
    kv = jnp.dot(kv_lat.astype(jnp.bfloat16), kvb_ref[...],
                 preferred_element_type=jnp.float32)                              # [S, nh*(dn+dv)]

    cosf = cos_ref[...]
    sinf = sin_ref[...]

    def rope(t):   # rotate-half RoPE, f32
        half = dr // 2
        rot = jnp.concatenate([-t[:, half:], t[:, :half]], axis=-1)
        return t * cosf + rot * sinf

    k_rope_b = rope(k_rope).astype(jnp.bfloat16)

    qi = lax.broadcasted_iota(jnp.int32, (S, S), 0)
    ki = lax.broadcasted_iota(jnp.int32, (S, S), 1)
    causal = ki <= qi

    contract_last = (((1,), (1,)), ((), ()))        # A @ B^T without an explicit transpose
    head_outs = []
    for hix in range(nh):                           # nh is tiny & static -> unrolled
        qh = q[:, hix * (dn + dr):(hix + 1) * (dn + dr)]
        q_nope = qh[:, :dn].astype(jnp.bfloat16)
        q_rope = rope(qh[:, dn:]).astype(jnp.bfloat16)
        kvh = kv[:, hix * (dn + dv):(hix + 1) * (dn + dv)]
        k_nope = kvh[:, :dn].astype(jnp.bfloat16)
        v_h = kvh[:, dn:].astype(jnp.bfloat16)

        s = lax.dot_general(q_nope, k_nope, contract_last,
                            preferred_element_type=jnp.float32)
        s = s + lax.dot_general(q_rope, k_rope_b, contract_last,
                                preferred_element_type=jnp.float32)
        s = s * scale
        s = jnp.where(causal, s, jnp.float32(-1e30))     # scores stay f32, mask is safe
        m = jnp.max(s, axis=-1, keepdims=True)
        p = jnp.exp(s - m)
        p = p * pl.reciprocal(jnp.sum(p, axis=-1, keepdims=True), approx=True)
        head_outs.append(jnp.dot(p.astype(jnp.bfloat16), v_h,
                                 preferred_element_type=jnp.float32))            # [S, dv]

    ao = jnp.concatenate(head_outs, axis=-1).astype(jnp.bfloat16)                # [S, nh*dv]
    attn = jnp.dot(ao, ow_ref[...], preferred_element_type=jnp.float32) + ob_ref[...]
    o_ref[0] = (x + attn).astype(o_ref.dtype)        # fused residual add (dropout = identity)


def attn_block(x3d, lp, cos_f, sin_f, cfg):
    B, S, H = x3d.shape
    nh = cfg['num_heads']; dn = cfg['qk_nope_head_dim']
    dr = cfg['qk_rope_head_dim']; dv = cfg['v_head_dim']
    ql = cfg['q_lora_rank']; kvl = cfg['kv_lora_rank']
    scale = cfg['attention_scale_factor'] / math.sqrt(dn + dr)
    kernel = functools.partial(_attn_block_kernel, nh=nh, dn=dn, dr=dr, dv=dv,
                               kvl=kvl, scale=scale, eps=_EPS)
    return pl.pallas_call(
        kernel,
        grid=(B,),
        in_specs=[
            pl.BlockSpec((1, S, H), lambda b: (b, 0, 0)),          # x (residual stream)
            pl.BlockSpec((1, H), lambda b: (0, 0)),                # attn_norm_w
            pl.BlockSpec((H, ql), lambda b: (0, 0)),               # q_a
            pl.BlockSpec((ql, nh * (dn + dr)), lambda b: (0, 0)),  # q_b
            pl.BlockSpec((H, kvl + dr), lambda b: (0, 0)),         # kv_a
            pl.BlockSpec((kvl, nh * (dn + dv)), lambda b: (0, 0)), # kv_b
            pl.BlockSpec((nh * dv, H), lambda b: (0, 0)),          # out_proj_w
            pl.BlockSpec((1, H), lambda b: (0, 0)),                # out_proj_b
            pl.BlockSpec((S, dr), lambda b: (0, 0)),               # rope cos
            pl.BlockSpec((S, dr), lambda b: (0, 0)),               # rope sin
        ],
        out_specs=pl.BlockSpec((1, S, H), lambda b: (b, 0, 0)),
        out_shape=jax.ShapeDtypeStruct((B, S, H), jnp.float32),
        compiler_params=pltpu.CompilerParams(dimension_semantics=("parallel",)),
    )(x3d, lp['attn_norm_w'].reshape(1, H), lp['q_a_w'], lp['q_b_w'],
      lp['kv_a_w'], lp['kv_b_w'], lp['out_proj_w'], lp['out_proj_b'].reshape(1, H),
      cos_f, sin_f)


# ------------------------------------------------------------------ fused MoE-block kernel
# grid = (row_tiles, num_experts); expert weights stream through the "arbitrary" expert axis,
# accumulator / norm output / gates live in VMEM scratch (no HBM round-trips per expert).

def _moe_block_kernel(x_ref, nw_ref, rw_ref, rb_ref,
                      sw1_ref, sw3_ref, sw2_ref,
                      ew1_ref, ew3_ref, ew2_ref,
                      o_ref, h_s, gate_s, acc_s, *,
                      n_experts, top_k, eps):
    e = pl.program_id(1)

    @pl.when(e == 0)
    def _init():
        x = x_ref[...]                                              # [T, H] f32
        ms = jnp.mean(x * x, axis=-1, keepdims=True)
        h = x * lax.rsqrt(ms + eps) * nw_ref[...]
        h_s[...] = h
        hb = h.astype(jnp.bfloat16)

        # router: softmax -> dense top-k gate (renormalized over selected experts)
        logits = jnp.dot(hb, rw_ref[...], preferred_element_type=jnp.float32) + rb_ref[...]
        logits = logits - jnp.max(logits, axis=-1, keepdims=True)
        probs = jnp.exp(logits)
        probs = probs / jnp.sum(probs, axis=-1, keepdims=True)      # [T, E]
        eidx = lax.broadcasted_iota(jnp.int32, probs.shape, 1)
        rank = jnp.zeros_like(probs)
        for j in range(n_experts):                                  # E is tiny & static
            pj = probs[:, j:j + 1]
            beats = (pj > probs) | ((pj == probs) & (j < eidx))     # first-occurrence tie-break
            rank = rank + beats.astype(jnp.float32)
        keep = (rank < float(top_k)).astype(jnp.float32)
        kept = probs * keep
        gate_s[...] = kept / jnp.sum(kept, axis=-1, keepdims=True)

        # shared expert SwiGLU + residual seed the accumulator
        g = jnp.dot(hb, sw1_ref[...], preferred_element_type=jnp.float32)
        u = jnp.dot(hb, sw3_ref[...], preferred_element_type=jnp.float32)
        act = (g * jax.nn.sigmoid(g) * u).astype(jnp.bfloat16)
        shared = jnp.dot(act, sw2_ref[...], preferred_element_type=jnp.float32)
        acc_s[...] = x + shared

    # routed expert e (weights are the (e,...) block of the stacked tensors)
    hb = h_s[...].astype(jnp.bfloat16)
    g = jnp.dot(hb, ew1_ref[0], preferred_element_type=jnp.float32)
    u = jnp.dot(hb, ew3_ref[0], preferred_element_type=jnp.float32)
    act = (g * jax.nn.sigmoid(g) * u).astype(jnp.bfloat16)
    eo = jnp.dot(act, ew2_ref[0], preferred_element_type=jnp.float32)

    gate_all = gate_s[...]
    lane = lax.broadcasted_iota(jnp.int32, gate_all.shape, 1)
    gate_e = jnp.sum(jnp.where(lane == e, gate_all, 0.0), axis=-1, keepdims=True)
    acc_s[...] = acc_s[...] + gate_e * eo

    @pl.when(e == n_experts - 1)
    def _finalize():
        o_ref[...] = acc_s[...].astype(o_ref.dtype)


def moe_block(x2d, lp, cfg):
    T, H = x2d.shape
    E = cfg['num_experts']; K = cfg['num_experts_per_token']
    I = cfg['moe_intermediate_size']; Is = 4 * I
    tm = T if T <= _ROW_TILE else _ROW_TILE
    kernel = functools.partial(_moe_block_kernel, n_experts=E, top_k=K, eps=_EPS)
    return pl.pallas_call(
        kernel,
        grid=(pl.cdiv(T, tm), E),
        in_specs=[
            pl.BlockSpec((tm, H), lambda i, e: (i, 0)),        # x (residual stream)
            pl.BlockSpec((1, H), lambda i, e: (0, 0)),         # moe_norm_w
            pl.BlockSpec((H, E), lambda i, e: (0, 0)),         # router_w
            pl.BlockSpec((1, E), lambda i, e: (0, 0)),         # router_b
            pl.BlockSpec((H, Is), lambda i, e: (0, 0)),        # shared_w1
            pl.BlockSpec((H, Is), lambda i, e: (0, 0)),        # shared_w3
            pl.BlockSpec((Is, H), lambda i, e: (0, 0)),        # shared_w2
            pl.BlockSpec((1, H, I), lambda i, e: (e, 0, 0)),   # exp_w1[e]
            pl.BlockSpec((1, H, I), lambda i, e: (e, 0, 0)),   # exp_w3[e]
            pl.BlockSpec((1, I, H), lambda i, e: (e, 0, 0)),   # exp_w2[e]
        ],
        out_specs=pl.BlockSpec((tm, H), lambda i, e: (i, 0)),
        out_shape=jax.ShapeDtypeStruct((T, H), jnp.float32),
        scratch_shapes=[pltpu.VMEM((tm, H), jnp.float32),      # h (rmsnorm output)
                        pltpu.VMEM((tm, E), jnp.float32),      # dense gate
                        pltpu.VMEM((tm, H), jnp.float32)],     # accumulator
        compiler_params=pltpu.CompilerParams(
            dimension_semantics=("parallel", "arbitrary")),
    )(x2d, lp['moe_norm_w'].reshape(1, H), lp['router_w'], lp['router_b'].reshape(1, E),
      lp['shared_w1'], lp['shared_w3'], lp['shared_w2'],
      lp['exp_w1'], lp['exp_w3'], lp['exp_w2'])


# ------------------------------------------------------------------ RoPE tables (rotate-half convention)
# TODO(synk): reference RotaryEmbedding body not provided; rotate-half pairing is assumed.

def rope_tables_half(dim, seq_len, theta, scaling_factor=1.0):
    half = dim // 2
    freqs = 1.0 / (theta ** (jnp.arange(0, half, dtype=jnp.float32) * 2.0 / dim))
    t = jnp.arange(seq_len, dtype=jnp.float32) / scaling_factor
    ang = jnp.outer(t, freqs)                                   # [S, dim/2]
    cos_f = jnp.concatenate([jnp.cos(ang), jnp.cos(ang)], axis=-1)
    sin_f = jnp.concatenate([jnp.sin(ang), jnp.sin(ang)], axis=-1)
    return cos_f, sin_f


# ------------------------------------------------------------------ parameters (matmul weights in bf16)

def init_params(key, cfg):
    H = cfg['hidden_size']; V = cfg['vocab_size']
    nh = cfg['num_heads']; dn = cfg['qk_nope_head_dim']
    dr = cfg['qk_rope_head_dim']; dv = cfg['v_head_dim']
    ql = cfg['q_lora_rank']; kvl = cfg['kv_lora_rank']
    E = cfg['num_experts']; I = cfg['moe_intermediate_size']
    Is = 4 * I

    keys = iter(jax.random.split(key, 256))

    def w(shape, dtype=jnp.bfloat16):
        return (0.02 * jax.random.normal(next(keys), shape, jnp.float32)).astype(dtype)

    params = {
        'input_proj_w': w((V, H)), 'input_proj_b': jnp.zeros((H,), jnp.float32),
        'final_norm_w': jnp.ones((H,), jnp.float32),
        'head_w': w((H, 1), jnp.float32), 'head_b': jnp.zeros((1,), jnp.float32),
        'layers': [],
    }
    for _ in range(cfg['num_layers']):
        lp = {
            'attn_norm_w': jnp.ones((H,), jnp.float32),
            'moe_norm_w': jnp.ones((H,), jnp.float32),
            'q_a_w': w((H, ql)),
            'q_b_w': w((ql, nh * (dn + dr))),
            'kv_a_w': w((H, kvl + dr)),
            'kv_b_w': w((kvl, nh * (dn + dv))),
            'out_proj_w': w((nh * dv, H)), 'out_proj_b': jnp.zeros((H,), jnp.float32),
            'router_w': w((H, E)), 'router_b': jnp.zeros((E,), jnp.float32),
            'exp_w1': w((E, H, I)), 'exp_w3': w((E, H, I)), 'exp_w2': w((E, I, H)),
            'shared_w1': w((H, Is)), 'shared_w3': w((H, Is)), 'shared_w2': w((Is, H)),
        }
        params['layers'].append(lp)
    return params


# ------------------------------------------------------------------ forward pass

def stock_transformer_forward(params, inputs, cfg=CFG):
    B, S, V = inputs.shape
    H = cfg['hidden_size']
    T = B * S

    cos_f, sin_f = rope_tables_half(cfg['qk_rope_head_dim'], S,
                                    cfg['rope_theta'], cfg['rope_scaling_factor'])

    # input projection
    x = linear(inputs.reshape(T, V), params['input_proj_w'], params['input_proj_b'])
    x = x.reshape(B, S, H)

    for lp in params['layers']:
        # fused: rmsnorm + MLA projections + RoPE + causal attention + out-proj + residual
        x = attn_block(x, lp, cos_f, sin_f, cfg)
        # fused: rmsnorm + router/top-k gate + shared expert + routed experts + residual
        x = moe_block(x.reshape(T, H), lp, cfg).reshape(B, S, H)

    # final norm (Pallas) + tiny regression head on last token (plain JAX: [B,H]@[H,1] is VPU-trivial)
    h = rmsnorm(x.reshape(T, H), params['final_norm_w']).reshape(B, S, H)
    last = h[:, -1, :]
    logits = last @ params['head_w'] + params['head_b']
    prediction = logits[:, 0]                                   # squeeze(-1)  (regression)

    return {'prediction': prediction, 'last_hidden_state': h}


# ------------------------------------------------------------------ main

if __name__ == "__main__":
    key = jax.random.PRNGKey(0)
    pkey, xkey = jax.random.split(key)

    params = init_params(pkey, CFG)
    inputs = jax.random.normal(xkey, (2, 8, CFG['vocab_size']), jnp.float32)  # [B, S, features]

    fwd = jax.jit(functools.partial(stock_transformer_forward, cfg=CFG))
    out = fwd(params, inputs)
    jax.block_until_ready(out)

    assert out['prediction'].shape == (2,)
    assert out['last_hidden_state'].shape == (2, 8, CFG['hidden_size'])
    print("KERNEL_OK")
</pallas_src>

<mosaic_0001>
module attributes {stable_mosaic.version = 11 : i64} {
  func.func @_linear_kernel(%arg0: i32, %arg1: memref<16x16xf32, #tpu.memory_space<vmem>>, %arg2: memref<16x64xbf16, #tpu.memory_space<vmem>>, %arg3: memref<1x64xf32, #tpu.memory_space<vmem>>, %arg4: memref<16x64xf32, #tpu.memory_space<vmem>>) attributes {dimension_semantics = [#tpu.dimension_semantics<parallel>], iteration_bounds = array<i64: 1>, scalar_prefetch = 0 : i64, scratch_operands = 0 : i64, tpu.core_type = #tpu.core_type<tc>, window_params = [{transform_indices = @transform_0, window_bounds = array<i64: 16, 16>}, {pipeline_mode = #tpu.pipeline_mode<synchronous>, transform_indices = @transform_1, window_bounds = array<i64: 16, 64>}, {pipeline_mode = #tpu.pipeline_mode<synchronous>, transform_indices = @transform_2, window_bounds = array<i64: 1, 64>}, {transform_indices = @transform_3, window_bounds = array<i64: 16, 64>}]} {
    %c0 = arith.constant 0 : index
    %c0_0 = arith.constant 0 : index
    %0 = vector.load %arg1[%c0, %c0_0] : memref<16x16xf32, #tpu.memory_space<vmem>>, vector<16x16xf32>
    %1 = arith.truncf %0 : vector<16x16xf32> to vector<16x16xbf16>
    %c0_1 = arith.constant 0 : index
    %c0_2 = arith.constant 0 : index
    %2 = vector.load %arg2[%c0_1, %c0_2] : memref<16x64xbf16, #tpu.memory_space<vmem>>, vector<16x64xbf16>
    %cst = arith.constant dense<0.000000e+00> : vector<16x64xf32>
    %3 = tpu.matmul %1, %2, %cst {dimension_numbers = #tpu.dot_dimension_numbers<[1], [0], [0], [1], [0, 0, 1, 1], [], []>} : vector<16x16xbf16>, vector<16x64xbf16>, vector<16x64xf32> -> vector<16x64xf32>
    %c0_3 = arith.constant 0 : index
    %c0_4 = arith.constant 0 : index
    %4 = vector.load %arg3[%c0_3, %c0_4] : memref<1x64xf32, #tpu.memory_space<vmem>>, vector<1x64xf32>
    %5 = vector.broadcast %4 : vector<1x64xf32> to vector<16x64xf32>
    %6 = arith.addf %3, %5 : vector<16x64xf32>
    %c0_5 = arith.constant 0 : index
    %c0_6 = arith.constant 0 : index
    %7 = vector.load %arg4[%c0_5, %c0_6] : memref<16x64xf32, #tpu.memory_space<vmem>>, vector<16x64xf32>
    tpu.vector_store %arg4[%c0_5, %c0_6], %6 {strides = array<i32>} : memref<16x64xf32, #tpu.memory_space<vmem>>, vector<16x64xf32>,
    return
  }
  func.func @transform_0(%arg0: i32) -> (i32, i32) {
    %c0_i32 = arith.constant 0 : i32
    %c0_i32_0 = arith.constant 0 : i32
    return %arg0, %c0_i32 : i32, i32
  }
  func.func @transform_1(%arg0: i32) -> (i32, i32) {
    %c0_i32 = arith.constant 0 : i32
    %c0_i32_0 = arith.constant 0 : i32
    %c0_i32_1 = arith.constant 0 : i32
    return %c0_i32, %c0_i32_0 : i32, i32
  }
  func.func @transform_2(%arg0: i32) -> (i32, i32) {
    %c0_i32 = arith.constant 0 : i32
    %c0_i32_0 = arith.constant 0 : i32
    %c0_i32_1 = arith.constant 0 : i32
    return %c0_i32, %c0_i32_0 : i32, i32
  }
  func.func @transform_3(%arg0: i32) -> (i32, i32) {
    %c0_i32 = arith.constant 0 : i32
    %c0_i32_0 = arith.constant 0 : i32
    return %arg0, %c0_i32 : i32, i32
  }
}

module attributes {stable_mosaic.version = 11 : i64} {
  func.func @_attn_block_kernel(%arg0: i32, %arg1: memref<1x8x64xf32, #tpu.memory_space<vmem>>, %arg2: memref<1x64xf32, #tpu.memory_space<vmem>>, %arg3: memref<64x8xbf16, #tpu.memory_space<vmem>>, %arg4: memref<8x64xbf16, #tpu.memory_space<vmem>>, %arg5: memref<64x32xbf16, #tpu.memory_space<vmem>>, %arg6: memref<16x96xbf16, #tpu.memory_space<vmem>>, %arg7: memref<64x64xbf16, #tpu.memory_space<vmem>>, %arg8: memref<1x64xf32, #tpu.memory_space<vmem>>, %arg9: memref<8x16xf32, #tpu.memory_space<vmem>>, %arg10: memref<8x16xf32, #tpu.memory_space<vmem>>, %arg11: memref<1x8x64xf32, #tpu.memory_space<vmem>>) attributes {dimension_semantics = [#tpu.dimension_semantics<parallel>], iteration_bounds = array<i64: 2>, scalar_prefetch = 0 : i64, scratch_operands = 0 : i64, tpu.core_type = #tpu.core_type<tc>, window_params = [{transform_indices = @transform_0, window_bounds = array<i64: 1, 8, 64>}, {pipeline_mode = #tpu.pipeline_mode<synchronous>, transform_indices = @transform_1, window_bounds = array<i64: 1, 64>}, {pipeline_mode = #tpu.pipeline_mode<synchronous>, transform_indices = @transform_2, window_bounds = array<i64: 64, 8>}, {pipeline_mode = #tpu.pipeline_mode<synchronous>, transform_indices = @transform_3, window_bounds = array<i64: 8, 64>}, {pipeline_mode = #tpu.pipeline_mode<synchronous>, transform_indices = @transform_4, window_bounds = array<i64: 64, 32>}, {pipeline_mode = #tpu.pipeline_mode<synchronous>, transform_indices = @transform_5, window_bounds = array<i64: 16, 96>}, {pipeline_mode = #tpu.pipeline_mode<synchronous>, transform_indices = @transform_6, window_bounds = array<i64: 64, 64>}, {pipeline_mode = #tpu.pipeline_mode<synchronous>, transform_indices = @transform_7, window_bounds = array<i64: 1, 64>}, {pipeline_mode = #tpu.pipeline_mode<synchronous>, transform_indices = @transform_8, window_bounds = array<i64: 8, 16>}, {pipeline_mode = #tpu.pipeline_mode<synchronous>, transform_indices = @transform_9, window_bounds = array<i64: 8, 16>}, {transform_indices = @transform_10, window_bounds = array<i64: 1, 8, 64>}]} {
    %c0 = arith.constant 0 : index
    %c0_0 = arith.constant 0 : index
    %c0_1 = arith.constant 0 : index
    %0 = vector.load %arg1[%c0, %c0_0, %c0_1] : memref<1x8x64xf32, #tpu.memory_space<vmem>>, vector<1x8x64xf32>
    %1 = vector.shape_cast %0 : vector<1x8x64xf32> to vector<8x64xf32>
    %2 = arith.mulf %1, %1 : vector<8x64xf32>
    %cst = arith.constant dense<0.000000e+00> : vector<8xf32>
    %3 = vector.multi_reduction <add>, %2, %cst [1] : vector<8x64xf32> to vector<8xf32>
    %4 = vector.shape_cast %3 : vector<8xf32> to vector<8x1xf32>
    %cst_2 = arith.constant 6.400000e+01 : f32
    %5 = vector.broadcast %cst_2 : f32 to vector<8x1xf32>
    %6 = arith.divf %4, %5 : vector<8x1xf32>
    %cst_3 = arith.constant 9.99999997E-7 : f32
    %7 = vector.broadcast %cst_3 : f32 to vector<8x1xf32>
    %8 = arith.addf %6, %7 : vector<8x1xf32>
    %9 = math.rsqrt %8 : vector<8x1xf32>
    %10 = vector.broadcast %9 : vector<8x1xf32> to vector<8x64xf32>
    %11 = arith.mulf %1, %10 : vector<8x64xf32>
    %c0_4 = arith.constant 0 : index
    %c0_5 = arith.constant 0 : index
    %12 = vector.load %arg2[%c0_4, %c0_5] : memref<1x64xf32, #tpu.memory_space<vmem>>, vector<1x64xf32>
    %13 = vector.broadcast %12 : vector<1x64xf32> to vector<8x64xf32>
    %14 = arith.mulf %11, %13 : vector<8x64xf32>
    %15 = arith.truncf %14 : vector<8x64xf32> to vector<8x64xbf16>
    %c0_6 = arith.constant 0 : index
    %c0_7 = arith.constant 0 : index
    %16 = vector.load %arg3[%c0_6, %c0_7] : memref<64x8xbf16, #tpu.memory_space<vmem>>, vector<64x8xbf16>
    %cst_8 = arith.constant dense<0.000000e+00> : vector<8x8xf32>
    %17 = tpu.matmul %15, %16, %cst_8 {dimension_numbers = #tpu.dot_dimension_numbers<[1], [0], [0], [1], [0, 0, 1, 1], [], []>} : vector<8x64xbf16>, vector<64x8xbf16>, vector<8x8xf32> -> vector<8x8xf32>
    %18 = arith.truncf %17 : vector<8x8xf32> to vector<8x8xbf16>
    %c0_9 = arith.constant 0 : index
    %c0_10 = arith.constant 0 : index
    %19 = vector.load %arg4[%c0_9, %c0_10] : memref<8x64xbf16, #tpu.memory_space<vmem>>, vector<8x64xbf16>
    %cst_11 = arith.constant dense<0.000000e+00> : vector<8x64xf32>
    %20 = tpu.matmul %18, %19, %cst_11 {dimension_numbers = #tpu.dot_dimension_numbers<[1], [0], [0], [1], [0, 0, 1, 1], [], []>} : vector<8x8xbf16>, vector<8x64xbf16>, vector<8x64xf32> -> vector<8x64xf32>
    %c0_12 = arith.constant 0 : index
    %c0_13 = arith.constant 0 : index
    %21 = vector.load %arg5[%c0_12, %c0_13] : memref<64x32xbf16, #tpu.memory_space<vmem>>, vector<64x32xbf16>
    %cst_14 = arith.constant dense<0.000000e+00> : vector<8x32xf32>
    %22 = tpu.matmul %15, %21, %cst_14 {dimension_numbers = #tpu.dot_dimension_numbers<[1], [0], [0], [1], [0, 0, 1, 1], [], []>} : vector<8x64xbf16>, vector<64x32xbf16>, vector<8x32xf32> -> vector<8x32xf32>
    %23 = vector.extract_strided_slice %22 {offsets = [0, 0], sizes = [8, 16], strides = [1, 1]} : vector<8x32xf32> to vector<8x16xf32>
    %24 = vector.extract_strided_slice %22 {offsets = [0, 16], sizes = [8, 16], strides = [1, 1]} : vector<8x32xf32> to vector<8x16xf32>
    %25 = arith.truncf %23 : vector<8x16xf32> to vector<8x16xbf16>
    %c0_15 = arith.constant 0 : index
    %c0_16 = arith.constant 0 : index
    %26 = vector.load %arg6[%c0_15, %c0_16] : memref<16x96xbf16, #tpu.memory_space<vmem>>, vector<16x96xbf16>
    %cst_17 = arith.constant dense<0.000000e+00> : vector<8x96xf32>
    %27 = tpu.matmul %25, %26, %cst_17 {dimension_numbers = #tpu.dot_dimension_numbers<[1], [0], [0], [1], [0, 0, 1, 1], [], []>} : vector<8x16xbf16>, vector<16x96xbf16>, vector<8x96xf32> -> vector<8x96xf32>
    %c0_18 = arith.constant 0 : index
    %c0_19 = arith.constant 0 : index
    %28 = vector.load %arg9[%c0_18, %c0_19] : memref<8x16xf32, #tpu.memory_space<vmem>>, vector<8x16xf32>
    %c0_20 = arith.constant 0 : index
    %c0_21 = arith.constant 0 : index
    %29 = vector.load %arg10[%c0_20, %c0_21] : memref<8x16xf32, #tpu.memory_space<vmem>>, vector<8x16xf32>
    %30 = vector.extract_strided_slice %24 {offsets = [0, 8], sizes = [8, 8], strides = [1, 1]} : vector<8x16xf32> to vector<8x8xf32>
    %cst_22 = arith.constant 0.000000e+00 : f32
    %31 = vector.broadcast %cst_22 : f32 to vector<8x8xf32>
    %32 = arith.subf %31, %30 : vector<8x8xf32>
    %33 = vector.extract_strided_slice %24 {offsets = [0, 0], sizes = [8, 8], strides = [1, 1]} : vector<8x16xf32> to vector<8x8xf32>
    %34 = tpu.concatenate %32, %33 in 1 : vector<8x8xf32>, vector<8x8xf32> -> vector<8x16xf32>
    %35 = arith.mulf %24, %28 : vector<8x16xf32>
    %36 = arith.mulf %34, %29 : vector<8x16xf32>
    %37 = arith.addf %35, %36 : vector<8x16xf32>
    %38 = arith.truncf %37 : vector<8x16xf32> to vector<8x16xbf16>
    %39 = tpu.iota {dimensions = array<i32: 0>} : vector<8x8xi32>
    %40 = tpu.iota {dimensions = array<i32: 1>} : vector<8x8xi32>
    %41 = arith.cmpi sle, %40, %39 : vector<8x8xi32>
    %42 = vector.extract_strided_slice %20 {offsets = [0, 0], sizes = [8, 32], strides = [1, 1]} : vector<8x64xf32> to vector<8x32xf32>
    %43 = vector.extract_strided_slice %42 {offsets = [0, 0], sizes = [8, 16], strides = [1, 1]} : vector<8x32xf32> to vector<8x16xf32>
    %44 = arith.truncf %43 : vector<8x16xf32> to vector<8x16xbf16>
    %45 = vector.extract_strided_slice %42 {offsets = [0, 16], sizes = [8, 16], strides = [1, 1]} : vector<8x32xf32> to vector<8x16xf32>
    %46 = vector.extract_strided_slice %45 {offsets = [0, 8], sizes = [8, 8], strides = [1, 1]} : vector<8x16xf32> to vector<8x8xf32>
    %cst_23 = arith.constant 0.000000e+00 : f32
    %47 = vector.broadcast %cst_23 : f32 to vector<8x8xf32>
    %48 = arith.subf %47, %46 : vector<8x8xf32>
    %49 = vector.extract_strided_slice %45 {offsets = [0, 0], sizes = [8, 8], strides = [1, 1]} : vector<8x16xf32> to vector<8x8xf32>
    %50 = tpu.concatenate %48, %49 in 1 : vector<8x8xf32>, vector<8x8xf32> -> vector<8x16xf32>
    %51 = arith.mulf %45, %28 : vector<8x16xf32>
    %52 = arith.mulf %50, %29 : vector<8x16xf32>
    %53 = arith.addf %51, %52 : vector<8x16xf32>
    %54 = arith.truncf %53 : vector<8x16xf32> to vector<8x16xbf16>
    %55 = vector.extract_strided_slice %27 {offsets = [0, 0], sizes = [8, 48], strides = [1, 1]} : vector<8x96xf32> to vector<8x48xf32>
    %56 = vector.extract_strided_slice %55 {offsets = [0, 0], sizes = [8, 16], strides = [1, 1]} : vector<8x48xf32> to vector<8x16xf32>
    %57 = arith.truncf %56 : vector<8x16xf32> to vector<8x16xbf16>
    %58 = vector.extract_strided_slice %55 {offsets = [0, 16], sizes = [8, 32], strides = [1, 1]} : vector<8x48xf32> to vector<8x32xf32>
    %59 = arith.truncf %58 : vector<8x32xf32> to vector<8x32xbf16>
    %cst_24 = arith.constant dense<0.000000e+00> : vector<8x8xf32>
    %60 = tpu.matmul %44, %57, %cst_24 {dimension_numbers = #tpu.dot_dimension_numbers<[1], [1], [0], [0], [0, 0, 1, 0], [], []>} : vector<8x16xbf16>, vector<8x16xbf16>, vector<8x8xf32> -> vector<8x8xf32>
    %cst_25 = arith.constant dense<0.000000e+00> : vector<8x8xf32>
    %61 = tpu.matmul %54, %38, %cst_25 {dimension_numbers = #tpu.dot_dimension_numbers<[1], [1], [0], [0], [0, 0, 1, 0], [], []>} : vector<8x16xbf16>, vector<8x16xbf16>, vector<8x8xf32> -> vector<8x8xf32>
    %62 = arith.addf %60, %61 : vector<8x8xf32>
    %cst_26 = arith.constant 0.176776692 : f32
    %63 = vector.broadcast %cst_26 : f32 to vector<8x8xf32>
    %64 = arith.mulf %62, %63 : vector<8x8xf32>
    %cst_27 = arith.constant -1.000000e+30 : f32
    %65 = vector.broadcast %cst_27 : f32 to vector<8x8xf32>
    %66 = arith.select %41, %64, %65 : vector<8x8xi1>, vector<8x8xf32>
    %cst_28 = arith.constant dense<0xFF800000> : vector<8xf32>
    %67 = vector.multi_reduction <maximumf>, %66, %cst_28 [1] : vector<8x8xf32> to vector<8xf32>
    %68 = vector.shape_cast %67 : vector<8xf32> to vector<8x1xf32>
    %69 = vector.broadcast %68 : vector<8x1xf32> to vector<8x8xf32>
    %70 = arith.subf %66, %69 : vector<8x8xf32>
    %71 = math.exp %70 : vector<8x8xf32>
    %cst_29 = arith.constant dense<0.000000e+00> : vector<8xf32>
    %72 = vector.multi_reduction <add>, %71, %cst_29 [1] : vector<8x8xf32> to vector<8xf32>
    %73 = vector.shape_cast %72 : vector<8xf32> to vector<8x1xf32>
    %74 = tpu.reciprocal %73 {approx = true} : vector<8x1xf32> -> vector<8x1xf32>
    %75 = vector.broadcast %74 : vector<8x1xf32> to vector<8x8xf32>
    %76 = arith.mulf %71, %75 : vector<8x8xf32>
    %77 = arith.truncf %76 : vector<8x8xf32> to vector<8x8xbf16>
    %cst_30 = arith.constant dense<0.000000e+00> : vector<8x32xf32>
    %78 = tpu.matmul %77, %59, %cst_30 {dimension_numbers = #tpu.dot_dimension_numbers<[1], [0], [0], [1], [0, 0, 1, 1], [], []>} : vector<8x8xbf16>, vector<8x32xbf16>, vector<8x32xf32> -> vector<8x32xf32>
    %79 = vector.extract_strided_slice %20 {offsets = [0, 32], sizes = [8, 32], strides = [1, 1]} : vector<8x64xf32> to vector<8x32xf32>
    %80 = vector.extract_strided_slice %79 {offsets = [0, 0], sizes = [8, 16], strides = [1, 1]} : vector<8x32xf32> to vector<8x16xf32>
    %81 = arith.truncf %80 : vector<8x16xf32> to vector<8x16xbf16>
    %82 = vector.extract_strided_slice %79 {offsets = [0, 16], sizes = [8, 16], strides = [1, 1]} : vector<8x32xf32> to vector<8x16xf32>
    %83 = vector.extract_strided_slice %82 {offsets = [0, 8], sizes = [8, 8], strides = [1, 1]} : vector<8x16xf32> to vector<8x8xf32>
    %cst_31 = arith.constant 0.000000e+00 : f32
    %84 = vector.broadcast %cst_31 : f32 to vector<8x8xf32>
    %85 = arith.subf %84, %83 : vector<8x8xf32>
    %86 = vector.extract_strided_slice %82 {offsets = [0, 0], sizes = [8, 8], strides = [1, 1]} : vector<8x16xf32> to vector<8x8xf32>
    %87 = tpu.concatenate %85, %86 in 1 : vector<8x8xf32>, vector<8x8xf32> -> vector<8x16xf32>
    %88 = arith.mulf %82, %28 : vector<8x16xf32>
    %89 = arith.mulf %87, %29 : vector<8x16xf32>
    %90 = arith.addf %88, %89 : vector<8x16xf32>
    %91 = arith.truncf %90 : vector<8x16xf32> to vector<8x16xbf16>
    %92 = vector.extract_strided_slice %27 {offsets = [0, 48], sizes = [8, 48], strides = [1, 1]} : vector<8x96xf32> to vector<8x48xf32>
    %93 = vector.extract_strided_slice %92 {offsets = [0, 0], sizes = [8, 16], strides = [1, 1]} : vector<8x48xf32> to vector<8x16xf32>
    %94 = arith.truncf %93 : vector<8x16xf32> to vector<8x16xbf16>
    %95 = vector.extract_strided_slice %92 {offsets = [0, 16], sizes = [8, 32], strides = [1, 1]} : vector<8x48xf32> to vector<8x32xf32>
    %96 = arith.truncf %95 : vector<8x32xf32> to vector<8x32xbf16>
    %cst_32 = arith.constant dense<0.000000e+00> : vector<8x8xf32>
    %97 = tpu.matmul %81, %94, %cst_32 {dimension_numbers = #tpu.dot_dimension_numbers<[1], [1], [0], [0], [0, 0, 1, 0], [], []>} : vector<8x16xbf16>, vector<8x16xbf16>, vector<8x8xf32> -> vector<8x8xf32>
    %cst_33 = arith.constant dense<0.000000e+00> : vector<8x8xf32>
    %98 = tpu.matmul %91, %38, %cst_33 {dimension_numbers = #tpu.dot_dimension_numbers<[1], [1], [0], [0], [0, 0, 1, 0], [], []>} : vector<8x16xbf16>, vector<8x16xbf16>, vector<8x8xf32> -> vector<8x8xf32>
    %99 = arith.addf %97, %98 : vector<8x8xf32>
    %cst_34 = arith.constant 0.176776692 : f32
    %100 = vector.broadcast %cst_34 : f32 to vector<8x8xf32>
    %101 = arith.mulf %99, %100 : vector<8x8xf32>
    %cst_35 = arith.constant -1.000000e+30 : f32
    %102 = vector.broadcast %cst_35 : f32 to vector<8x8xf32>
    %103 = arith.select %41, %101, %102 : vector<8x8xi1>, vector<8x8xf32>
    %cst_36 = arith.constant dense<0xFF800000> : vector<8xf32>
    %104 = vector.multi_reduction <maximumf>, %103, %cst_36 [1] : vector<8x8xf32> to vector<8xf32>
    %105 = vector.shape_cast %104 : vector<8xf32> to vector<8x1xf32>
    %106 = vector.broadcast %105 : vector<8x1xf32> to vector<8x8xf32>
    %107 = arith.subf %103, %106 : vector<8x8xf32>
    %108 = math.exp %107 : vector<8x8xf32>
    %cst_37 = arith.constant dense<0.000000e+00> : vector<8xf32>
    %109 = vector.multi_reduction <add>, %108, %cst_37 [1] : vector<8x8xf32> to vector<8xf32>
    %110 = vector.shape_cast %109 : vector<8xf32> to vector<8x1xf32>
    %111 = tpu.reciprocal %110 {approx = true} : vector<8x1xf32> -> vector<8x1xf32>
    %112 = vector.broadcast %111 : vector<8x1xf32> to vector<8x8xf32>
    %113 = arith.mulf %108, %112 : vector<8x8xf32>
    %114 = arith.truncf %113 : vector<8x8xf32> to vector<8x8xbf16>
    %cst_38 = arith.constant dense<0.000000e+00> : vector<8x32xf32>
    %115 = tpu.matmul %114, %96, %cst_38 {dimension_numbers = #tpu.dot_dimension_numbers<[1], [0], [0], [1], [0, 0, 1, 1], [], []>} : vector<8x8xbf16>, vector<8x32xbf16>, vector<8x32xf32> -> vector<8x32xf32>
    %116 = tpu.concatenate %78, %115 in 1 : vector<8x32xf32>, vector<8x32xf32> -> vector<8x64xf32>
    %117 = arith.truncf %116 : vector<8x64xf32> to vector<8x64xbf16>
    %c0_39 = arith.constant 0 : index
    %c0_40 = arith.constant 0 : index
    %118 = vector.load %arg7[%c0_39, %c0_40] : memref<64x64xbf16, #tpu.memory_space<vmem>>, vector<64x64xbf16>
    %cst_41 = arith.constant dense<0.000000e+00> : vector<8x64xf32>
    %119 = tpu.matmul %117, %118, %cst_41 {dimension_numbers = #tpu.dot_dimension_numbers<[1], [0], [0], [1], [0, 0, 1, 1], [], []>} : vector<8x64xbf16>, vector<64x64xbf16>, vector<8x64xf32> -> vector<8x64xf32>
    %c0_42 = arith.constant 0 : index
    %c0_43 = arith.constant 0 : index
    %120 = vector.load %arg8[%c0_42, %c0_43] : memref<1x64xf32, #tpu.memory_space<vmem>>, vector<1x64xf32>
    %121 = vector.broadcast %120 : vector<1x64xf32> to vector<8x64xf32>
    %122 = arith.addf %119, %121 : vector<8x64xf32>
    %123 = arith.addf %1, %122 : vector<8x64xf32>
    %c0_44 = arith.constant 0 : index
    %c0_45 = arith.constant 0 : index
    %c0_46 = arith.constant 0 : index
    %124 = vector.load %arg11[%c0_44, %c0_45, %c0_46] : memref<1x8x64xf32, #tpu.memory_space<vmem>>, vector<1x8x64xf32>
    %125 = vector.shape_cast %124 : vector<1x8x64xf32> to vector<8x64xf32>
    %126 = vector.shape_cast %123 : vector<8x64xf32> to vector<1x8x64xf32>
    tpu.vector_store %arg11[%c0_44, %c0_45, %c0_46], %126 {strides = array<i32>} : memref<1x8x64xf32, #tpu.memory_space<vmem>>, vector<1x8x64xf32>,
    return
  }
  func.func @transform_0(%arg0: i32) -> (i32, i32, i32) {
    %c0_i32 = arith.constant 0 : i32
    %c0_i32_0 = arith.constant 0 : i32
    %c0_i32_1 = arith.constant 0 : i32
    return %arg0, %c0_i32, %c0_i32_0 : i32, i32, i32
  }
  func.func @transform_1(%arg0: i32) -> (i32, i32) {
    %c0_i32 = arith.constant 0 : i32
    %c0_i32_0 = arith.constant 0 : i32
    %c0_i32_1 = arith.constant 0 : i32
    return %c0_i32, %c0_i32_0 : i32, i32
  }
  func.func @transform_2(%arg0: i32) -> (i32, i32) {
    %c0_i32 = arith.constant 0 : i32
    %c0_i32_0 = arith.constant 0 : i32
    %c0_i32_1 = arith.constant 0 : i32
    return %c0_i32, %c0_i32_0 : i32, i32
  }
  func.func @transform_3(%arg0: i32) -> (i32, i32) {
    %c0_i32 = arith.constant 0 : i32
    %c0_i32_0 = arith.constant 0 : i32
    %c0_i32_1 = arith.constant 0 : i32
    return %c0_i32, %c0_i32_0 : i32, i32
  }
  func.func @transform_4(%arg0: i32) -> (i32, i32) {
    %c0_i32 = arith.constant 0 : i32
    %c0_i32_0 = arith.constant 0 : i32
    %c0_i32_1 = arith.constant 0 : i32
    return %c0_i32, %c0_i32_0 : i32, i32
  }
  func.func @transform_5(%arg0: i32) -> (i32, i32) {
    %c0_i32 = arith.constant 0 : i32
    %c0_i32_0 = arith.constant 0 : i32
    %c0_i32_1 = arith.constant 0 : i32
    return %c0_i32, %c0_i32_0 : i32, i32
  }
  func.func @transform_6(%arg0: i32) -> (i32, i32) {
    %c0_i32 = arith.constant 0 : i32
    %c0_i32_0 = arith.constant 0 : i32
    %c0_i32_1 = arith.constant 0 : i32
    return %c0_i32, %c0_i32_0 : i32, i32
  }
  func.func @transform_7(%arg0: i32) -> (i32, i32) {
    %c0_i32 = arith.constant 0 : i32
    %c0_i32_0 = arith.constant 0 : i32
    %c0_i32_1 = arith.constant 0 : i32
    return %c0_i32, %c0_i32_0 : i32, i32
  }
  func.func @transform_8(%arg0: i32) -> (i32, i32) {
    %c0_i32 = arith.constant 0 : i32
    %c0_i32_0 = arith.constant 0 : i32
    %c0_i32_1 = arith.constant 0 : i32
    return %c0_i32, %c0_i32_0 : i32, i32
  }
  func.func @transform_9(%arg0: i32) -> (i32, i32) {
    %c0_i32 = arith.constant 0 : i32
    %c0_i32_0 = arith.constant 0 : i32
    %c0_i32_1 = arith.constant 0 : i32
    return %c0_i32, %c0_i32_0 : i32, i32
  }
  func.func @transform_10(%arg0: i32) -> (i32, i32, i32) {
    %c0_i32 = arith.constant 0 : i32
    %c0_i32_0 = arith.constant 0 : i32
    %c0_i32_1 = arith.constant 0 : i32
    return %arg0, %c0_i32, %c0_i32_0 : i32, i32, i32
  }
}

module attributes {stable_mosaic.version = 11 : i64} {
  func.func @_moe_block_kernel(%arg0: i32, %arg1: i32, %arg2: memref<16x64xf32, #tpu.memory_space<vmem>>, %arg3: memref<1x64xf32, #tpu.memory_space<vmem>>, %arg4: memref<64x4xbf16, #tpu.memory_space<vmem>>, %arg5: memref<1x4xf32, #tpu.memory_space<vmem>>, %arg6: memref<64x128xbf16, #tpu.memory_space<vmem>>, %arg7: memref<64x128xbf16, #tpu.memory_space<vmem>>, %arg8: memref<128x64xbf16, #tpu.memory_space<vmem>>, %arg9: memref<1x64x32xbf16, #tpu.memory_space<vmem>>, %arg10: memref<1x64x32xbf16, #tpu.memory_space<vmem>>, %arg11: memref<1x32x64xbf16, #tpu.memory_space<vmem>>, %arg12: memref<16x64xf32, #tpu.memory_space<vmem>>, %arg13: memref<16x64xf32, #tpu.memory_space<vmem>>, %arg14: memref<16x4xf32, #tpu.memory_space<vmem>>, %arg15: memref<16x64xf32, #tpu.memory_space<vmem>>) attributes {dimension_semantics = [#tpu.dimension_semantics<parallel>, #tpu.dimension_semantics<arbitrary>], iteration_bounds = array<i64: 1, 4>, scalar_prefetch = 0 : i64, scratch_operands = 3 : i64, tpu.core_type = #tpu.core_type<tc>, window_params = [{transform_indices = @transform_0, window_bounds = array<i64: 16, 64>}, {pipeline_mode = #tpu.pipeline_mode<synchronous>, transform_indices = @transform_1, window_bounds = array<i64: 1, 64>}, {pipeline_mode = #tpu.pipeline_mode<synchronous>, transform_indices = @transform_2, window_bounds = array<i64: 64, 4>}, {pipeline_mode = #tpu.pipeline_mode<synchronous>, transform_indices = @transform_3, window_bounds = array<i64: 1, 4>}, {pipeline_mode = #tpu.pipeline_mode<synchronous>, transform_indices = @transform_4, window_bounds = array<i64: 64, 128>}, {pipeline_mode = #tpu.pipeline_mode<synchronous>, transform_indices = @transform_5, window_bounds = array<i64: 64, 128>}, {pipeline_mode = #tpu.pipeline_mode<synchronous>, transform_indices = @transform_6, window_bounds = array<i64: 128, 64>}, {transform_indices = @transform_7, window_bounds = array<i64: 1, 64, 32>}, {transform_indices = @transform_8, window_bounds = array<i64: 1, 64, 32>}, {transform_indices = @transform_9, window_bounds = array<i64: 1, 32, 64>}, {transform_indices = @transform_10, window_bounds = array<i64: 16, 64>}]} {
    %c0_i32 = arith.constant 0 : i32
    %0 = arith.cmpi eq, %arg1, %c0_i32 : i32
    %1 = arith.extui %0 : i1 to i32
    %c0_i32_0 = arith.constant 0 : i32
    %2 = arith.cmpi ne, %1, %c0_i32_0 : i32
    scf.if %2 {
      %c0_23 = arith.constant 0 : index
      %c0_24 = arith.constant 0 : index
      %38 = vector.load %arg2[%c0_23, %c0_24] : memref<16x64xf32, #tpu.memory_space<vmem>>, vector<16x64xf32>
      %39 = arith.mulf %38, %38 : vector<16x64xf32>
      %cst_25 = arith.constant dense<0.000000e+00> : vector<16xf32>
      %40 = vector.multi_reduction <add>, %39, %cst_25 [1] : vector<16x64xf32> to vector<16xf32>
      %41 = vector.shape_cast %40 : vector<16xf32> to vector<16x1xf32>
      %cst_26 = arith.constant 6.400000e+01 : f32
      %42 = vector.broadcast %cst_26 : f32 to vector<16x1xf32>
      %43 = arith.divf %41, %42 : vector<16x1xf32>
      %cst_27 = arith.constant 9.99999997E-7 : f32
      %44 = vector.broadcast %cst_27 : f32 to vector<16x1xf32>
      %45 = arith.addf %43, %44 : vector<16x1xf32>
      %46 = math.rsqrt %45 : vector<16x1xf32>
      %47 = vector.broadcast %46 : vector<16x1xf32> to vector<16x64xf32>
      %48 = arith.mulf %38, %47 : vector<16x64xf32>
      %c0_28 = arith.constant 0 : index
      %c0_29 = arith.constant 0 : index
      %49 = vector.load %arg3[%c0_28, %c0_29] : memref<1x64xf32, #tpu.memory_space<vmem>>, vector<1x64xf32>
      %50 = vector.broadcast %49 : vector<1x64xf32> to vector<16x64xf32>
      %51 = arith.mulf %48, %50 : vector<16x64xf32>
      %c0_30 = arith.constant 0 : index
      %c0_31 = arith.constant 0 : index
      %52 = vector.load %arg13[%c0_30, %c0_31] : memref<16x64xf32, #tpu.memory_space<vmem>>, vector<16x64xf32>
      tpu.vector_store %arg13[%c0_30, %c0_31], %51 {strides = array<i32>} : memref<16x64xf32, #tpu.memory_space<vmem>>, vector<16x64xf32>,
      %53 = arith.truncf %51 : vector<16x64xf32> to vector<16x64xbf16>
      %c0_32 = arith.constant 0 : index
      %c0_33 = arith.constant 0 : index
      %54 = vector.load %arg4[%c0_32, %c0_33] : memref<64x4xbf16, #tpu.memory_space<vmem>>, vector<64x4xbf16>
      %cst_34 = arith.constant dense<0.000000e+00> : vector<16x4xf32>
      %55 = tpu.matmul %53, %54, %cst_34 {dimension_numbers = #tpu.dot_dimension_numbers<[1], [0], [0], [1], [0, 0, 1, 1], [], []>} : vector<16x64xbf16>, vector<64x4xbf16>, vector<16x4xf32> -> vector<16x4xf32>
      %c0_35 = arith.constant 0 : index
      %c0_36 = arith.constant 0 : index
      %56 = vector.load %arg5[%c0_35, %c0_36] : memref<1x4xf32, #tpu.memory_space<vmem>>, vector<1x4xf32>
      %57 = vector.broadcast %56 : vector<1x4xf32> to vector<16x4xf32>
      %58 = arith.addf %55, %57 : vector<16x4xf32>
      %cst_37 = arith.constant dense<0xFF800000> : vector<16xf32>
      %59 = vector.multi_reduction <maximumf>, %58, %cst_37 [1] : vector<16x4xf32> to vector<16xf32>
      %60 = vector.shape_cast %59 : vector<16xf32> to vector<16x1xf32>
      %61 = vector.broadcast %60 : vector<16x1xf32> to vector<16x4xf32>
      %62 = arith.subf %58, %61 : vector<16x4xf32>
      %63 = math.exp %62 : vector<16x4xf32>
      %cst_38 = arith.constant dense<0.000000e+00> : vector<16xf32>
      %64 = vector.multi_reduction <add>, %63, %cst_38 [1] : vector<16x4xf32> to vector<16xf32>
      %65 = vector.shape_cast %64 : vector<16xf32> to vector<16x1xf32>
      %66 = vector.broadcast %65 : vector<16x1xf32> to vector<16x4xf32>
      %67 = arith.divf %63, %66 : vector<16x4xf32>
      %68 = tpu.iota {dimensions = array<i32: 1>} : vector<16x4xi32>
      %cst_39 = arith.constant 0.000000e+00 : f32
      %69 = vector.broadcast %cst_39 : f32 to vector<16x4xf32>
      %70 = vector.extract_strided_slice %67 {offsets = [0, 0], sizes = [16, 1], strides = [1, 1]} : vector<16x4xf32> to vector<16x1xf32>
      %71 = vector.broadcast %70 : vector<16x1xf32> to vector<16x4xf32>
      %72 = arith.cmpf ogt, %71, %67 : vector<16x4xf32>
      %73 = vector.broadcast %70 : vector<16x1xf32> to vector<16x4xf32>
      %74 = arith.cmpf oeq, %73, %67 : vector<16x4xf32>
      %c0_i32_40 = arith.constant 0 : i32
      %75 = vector.broadcast %c0_i32_40 : i32 to vector<16x4xi32>
      %76 = arith.cmpi sgt, %68, %75 : vector<16x4xi32>
      %77 = arith.andi %74, %76 : vector<16x4xi1>
      %78 = arith.ori %72, %77 : vector<16x4xi1>
      %79 = arith.extui %78 : vector<16x4xi1> to vector<16x4xi32>
      %80 = arith.sitofp %79 : vector<16x4xi32> to vector<16x4xf32>
      %81 = arith.addf %69, %80 : vector<16x4xf32>
      %82 = vector.extract_strided_slice %67 {offsets = [0, 1], sizes = [16, 1], strides = [1, 1]} : vector<16x4xf32> to vector<16x1xf32>
      %83 = vector.broadcast %82 : vector<16x1xf32> to vector<16x4xf32>
      %84 = arith.cmpf ogt, %83, %67 : vector<16x4xf32>
      %85 = vector.broadcast %82 : vector<16x1xf32> to vector<16x4xf32>
      %86 = arith.cmpf oeq, %85, %67 : vector<16x4xf32>
      %c1_i32 = arith.constant 1 : i32
      %87 = vector.broadcast %c1_i32 : i32 to vector<16x4xi32>
      %88 = arith.cmpi sgt, %68, %87 : vector<16x4xi32>
      %89 = arith.andi %86, %88 : vector<16x4xi1>
      %90 = arith.ori %84, %89 : vector<16x4xi1>
      %91 = arith.extui %90 : vector<16x4xi1> to vector<16x4xi32>
      %92 = arith.sitofp %91 : vector<16x4xi32> to vector<16x4xf32>
      %93 = arith.addf %81, %92 : vector<16x4xf32>
      %94 = vector.extract_strided_slice %67 {offsets = [0, 2], sizes = [16, 1], strides = [1, 1]} : vector<16x4xf32> to vector<16x1xf32>
      %95 = vector.broadcast %94 : vector<16x1xf32> to vector<16x4xf32>
      %96 = arith.cmpf ogt, %95, %67 : vector<16x4xf32>
      %97 = vector.broadcast %94 : vector<16x1xf32> to vector<16x4xf32>
      %98 = arith.cmpf oeq, %97, %67 : vector<16x4xf32>
      %c2_i32 = arith.constant 2 : i32
      %99 = vector.broadcast %c2_i32 : i32 to vector<16x4xi32>
      %100 = arith.cmpi sgt, %68, %99 : vector<16x4xi32>
      %101 = arith.andi %98, %100 : vector<16x4xi1>
      %102 = arith.ori %96, %101 : vector<16x4xi1>
      %103 = arith.extui %102 : vector<16x4xi1> to vector<16x4xi32>
      %104 = arith.sitofp %103 : vector<16x4xi32> to vector<16x4xf32>
      %105 = arith.addf %93, %104 : vector<16x4xf32>
      %106 = vector.extract_strided_slice %67 {offsets = [0, 3], sizes = [16, 1], strides = [1, 1]} : vector<16x4xf32> to vector<16x1xf32>
      %107 = vector.broadcast %106 : vector<16x1xf32> to vector<16x4xf32>
      %108 = arith.cmpf ogt, %107, %67 : vector<16x4xf32>
      %109 = vector.broadcast %106 : vector<16x1xf32> to vector<16x4xf32>
      %110 = arith.cmpf oeq, %109, %67 : vector<16x4xf32>
      %c3_i32_41 = arith.constant 3 : i32
      %111 = vector.broadcast %c3_i32_41 : i32 to vector<16x4xi32>
      %112 = arith.cmpi sgt, %68, %111 : vector<16x4xi32>
      %113 = arith.andi %110, %112 : vector<16x4xi1>
      %114 = arith.ori %108, %113 : vector<16x4xi1>
      %115 = arith.extui %114 : vector<16x4xi1> to vector<16x4xi32>
      %116 = arith.sitofp %115 : vector<16x4xi32> to vector<16x4xf32>
      %117 = arith.addf %105, %116 : vector<16x4xf32>
      %cst_42 = arith.constant 2.000000e+00 : f32
      %118 = vector.broadcast %cst_42 : f32 to vector<16x4xf32>
      %119 = arith.cmpf olt, %117, %118 : vector<16x4xf32>
      %120 = arith.extui %119 : vector<16x4xi1> to vector<16x4xi32>
      %121 = arith.sitofp %120 : vector<16x4xi32> to vector<16x4xf32>
      %122 = arith.mulf %67, %121 : vector<16x4xf32>
      %cst_43 = arith.constant dense<0.000000e+00> : vector<16xf32>
      %123 = vector.multi_reduction <add>, %122, %cst_43 [1] : vector<16x4xf32> to vector<16xf32>
      %124 = vector.shape_cast %123 : vector<16xf32> to vector<16x1xf32>
      %125 = vector.broadcast %124 : vector<16x1xf32> to vector<16x4xf32>
      %126 = arith.divf %122, %125 : vector<16x4xf32>
      %c0_44 = arith.constant 0 : index
      %c0_45 = arith.constant 0 : index
      %127 = vector.load %arg14[%c0_44, %c0_45] : memref<16x4xf32, #tpu.memory_space<vmem>>, vector<16x4xf32>
      tpu.vector_store %arg14[%c0_44, %c0_45], %126 {strides = array<i32>} : memref<16x4xf32, #tpu.memory_space<vmem>>, vector<16x4xf32>,
      %c0_46 = arith.constant 0 : index
      %c0_47 = arith.constant 0 : index
      %128 = vector.load %arg6[%c0_46, %c0_47] : memref<64x128xbf16, #tpu.memory_space<vmem>>, vector<64x128xbf16>
      %cst_48 = arith.constant dense<0.000000e+00> : vector<16x128xf32>
      %129 = tpu.matmul %53, %128, %cst_48 {dimension_numbers = #tpu.dot_dimension_numbers<[1], [0], [0], [1], [0, 0, 1, 1], [], []>} : vector<16x64xbf16>, vector<64x128xbf16>, vector<16x128xf32> -> vector<16x128xf32>
      %c0_49 = arith.constant 0 : index
      %c0_50 = arith.constant 0 : index
      %130 = vector.load %arg7[%c0_49, %c0_50] : memref<64x128xbf16, #tpu.memory_space<vmem>>, vector<64x128xbf16>
      %cst_51 = arith.constant dense<0.000000e+00> : vector<16x128xf32>
      %131 = tpu.matmul %53, %130, %cst_51 {dimension_numbers = #tpu.dot_dimension_numbers<[1], [0], [0], [1], [0, 0, 1, 1], [], []>} : vector<16x64xbf16>, vector<64x128xbf16>, vector<16x128xf32> -> vector<16x128xf32>
      %132 = arith.negf %129 : vector<16x128xf32>
      %133 = math.exp %132 : vector<16x128xf32>
      %cst_52 = arith.constant 1.000000e+00 : f32
      %134 = vector.broadcast %cst_52 : f32 to vector<16x128xf32>
      %135 = arith.addf %134, %133 : vector<16x128xf32>
      %136 = arith.divf %134, %135 : vector<16x128xf32>
      %137 = arith.mulf %129, %136 : vector<16x128xf32>
      %138 = arith.mulf %137, %131 : vector<16x128xf32>
      %139 = arith.truncf %138 : vector<16x128xf32> to vector<16x128xbf16>
      %c0_53 = arith.constant 0 : index
      %c0_54 = arith.constant 0 : index
      %140 = vector.load %arg8[%c0_53, %c0_54] : memref<128x64xbf16, #tpu.memory_space<vmem>>, vector<128x64xbf16>
      %cst_55 = arith.constant dense<0.000000e+00> : vector<16x64xf32>
      %141 = tpu.matmul %139, %140, %cst_55 {dimension_numbers = #tpu.dot_dimension_numbers<[1], [0], [0], [1], [0, 0, 1, 1], [], []>} : vector<16x128xbf16>, vector<128x64xbf16>, vector<16x64xf32> -> vector<16x64xf32>
      %142 = arith.addf %38, %141 : vector<16x64xf32>
      %c0_56 = arith.constant 0 : index
      %c0_57 = arith.constant 0 : index
      %143 = vector.load %arg15[%c0_56, %c0_57] : memref<16x64xf32, #tpu.memory_space<vmem>>, vector<16x64xf32>
      tpu.vector_store %arg15[%c0_56, %c0_57], %142 {strides = array<i32>} : memref<16x64xf32, #tpu.memory_space<vmem>>, vector<16x64xf32>,
    } else {
    }
    %c0 = arith.constant 0 : index
    %c0_1 = arith.constant 0 : index
    %3 = vector.load %arg13[%c0, %c0_1] : memref<16x64xf32, #tpu.memory_space<vmem>>, vector<16x64xf32>
    %4 = arith.truncf %3 : vector<16x64xf32> to vector<16x64xbf16>
    %c0_2 = arith.constant 0 : index
    %c0_3 = arith.constant 0 : index
    %c0_4 = arith.constant 0 : index
    %5 = vector.load %arg9[%c0_2, %c0_3, %c0_4] : memref<1x64x32xbf16, #tpu.memory_space<vmem>>, vector<1x64x32xbf16>
    %6 = vector.shape_cast %5 : vector<1x64x32xbf16> to vector<64x32xbf16>
    %cst = arith.constant dense<0.000000e+00> : vector<16x32xf32>
    %7 = tpu.matmul %4, %6, %cst {dimension_numbers = #tpu.dot_dimension_numbers<[1], [0], [0], [1], [0, 0, 1, 1], [], []>} : vector<16x64xbf16>, vector<64x32xbf16>, vector<16x32xf32> -> vector<16x32xf32>
    %c0_5 = arith.constant 0 : index
    %c0_6 = arith.constant 0 : index
    %c0_7 = arith.constant 0 : index
    %8 = vector.load %arg10[%c0_5, %c0_6, %c0_7] : memref<1x64x32xbf16, #tpu.memory_space<vmem>>, vector<1x64x32xbf16>
    %9 = vector.shape_cast %8 : vector<1x64x32xbf16> to vector<64x32xbf16>
    %cst_8 = arith.constant dense<0.000000e+00> : vector<16x32xf32>
    %10 = tpu.matmul %4, %9, %cst_8 {dimension_numbers = #tpu.dot_dimension_numbers<[1], [0], [0], [1], [0, 0, 1, 1], [], []>} : vector<16x64xbf16>, vector<64x32xbf16>, vector<16x32xf32> -> vector<16x32xf32>
    %11 = arith.negf %7 : vector<16x32xf32>
    %12 = math.exp %11 : vector<16x32xf32>
    %cst_9 = arith.constant 1.000000e+00 : f32
    %13 = vector.broadcast %cst_9 : f32 to vector<16x32xf32>
    %14 = arith.addf %13, %12 : vector<16x32xf32>
    %15 = arith.divf %13, %14 : vector<16x32xf32>
    %16 = arith.mulf %7, %15 : vector<16x32xf32>
    %17 = arith.mulf %16, %10 : vector<16x32xf32>
    %18 = arith.truncf %17 : vector<16x32xf32> to vector<16x32xbf16>
    %c0_10 = arith.constant 0 : index
    %c0_11 = arith.constant 0 : index
    %c0_12 = arith.constant 0 : index
    %19 = vector.load %arg11[%c0_10, %c0_11, %c0_12] : memref<1x32x64xbf16, #tpu.memory_space<vmem>>, vector<1x32x64xbf16>
    %20 = vector.shape_cast %19 : vector<1x32x64xbf16> to vector<32x64xbf16>
    %cst_13 = arith.constant dense<0.000000e+00> : vector<16x64xf32>
    %21 = tpu.matmul %18, %20, %cst_13 {dimension_numbers = #tpu.dot_dimension_numbers<[1], [0], [0], [1], [0, 0, 1, 1], [], []>} : vector<16x32xbf16>, vector<32x64xbf16>, vector<16x64xf32> -> vector<16x64xf32>
    %c0_14 = arith.constant 0 : index
    %c0_15 = arith.constant 0 : index
    %22 = vector.load %arg14[%c0_14, %c0_15] : memref<16x4xf32, #tpu.memory_space<vmem>>, vector<16x4xf32>
    %23 = tpu.iota {dimensions = array<i32: 1>} : vector<16x4xi32>
    %24 = vector.broadcast %arg1 : i32 to vector<16x4xi32>
    %25 = arith.cmpi eq, %23, %24 : vector<16x4xi32>
    %cst_16 = arith.constant 0.000000e+00 : f32
    %26 = vector.broadcast %cst_16 : f32 to vector<16x4xf32>
    %27 = arith.select %25, %22, %26 : vector<16x4xi1>, vector<16x4xf32>
    %cst_17 = arith.constant dense<0.000000e+00> : vector<16xf32>
    %28 = vector.multi_reduction <add>, %27, %cst_17 [1] : vector<16x4xf32> to vector<16xf32>
    %29 = vector.shape_cast %28 : vector<16xf32> to vector<16x1xf32>
    %c0_18 = arith.constant 0 : index
    %c0_19 = arith.constant 0 : index
    %30 = vector.load %arg15[%c0_18, %c0_19] : memref<16x64xf32, #tpu.memory_space<vmem>>, vector<16x64xf32>
    %31 = vector.broadcast %29 : vector<16x1xf32> to vector<16x64xf32>
    %32 = arith.mulf %31, %21 : vector<16x64xf32>
    %33 = arith.addf %30, %32 : vector<16x64xf32>
    %c0_20 = arith.constant 0 : index
    %c0_21 = arith.constant 0 : index
    %34 = vector.load %arg15[%c0_20, %c0_21] : memref<16x64xf32, #tpu.memory_space<vmem>>, vector<16x64xf32>
    tpu.vector_store %arg15[%c0_20, %c0_21], %33 {strides = array<i32>} : memref<16x64xf32, #tpu.memory_space<vmem>>, vector<16x64xf32>,
    %c3_i32 = arith.constant 3 : i32
    %35 = arith.cmpi eq, %arg1, %c3_i32 : i32
    %36 = arith.extui %35 : i1 to i32
    %c0_i32_22 = arith.constant 0 : i32
    %37 = arith.cmpi ne, %36, %c0_i32_22 : i32
    scf.if %37 {
      %c0_23 = arith.constant 0 : index
      %c0_24 = arith.constant 0 : index
      %38 = vector.load %arg15[%c0_23, %c0_24] : memref<16x64xf32, #tpu.memory_space<vmem>>, vector<16x64xf32>
      %c0_25 = arith.constant 0 : index
      %c0_26 = arith.constant 0 : index
      %39 = vector.load %arg12[%c0_25, %c0_26] : memref<16x64xf32, #tpu.memory_space<vmem>>, vector<16x64xf32>
      tpu.vector_store %arg12[%c0_25, %c0_26], %38 {strides = array<i32>} : memref<16x64xf32, #tpu.memory_space<vmem>>, vector<16x64xf32>,
    } else {
    }
    return
  }
  func.func @transform_0(%arg0: i32, %arg1: i32) -> (i32, i32) {
    %c0_i32 = arith.constant 0 : i32
    %c0_i32_0 = arith.constant 0 : i32
    return %arg0, %c0_i32 : i32, i32
  }
  func.func @transform_1(%arg0: i32, %arg1: i32) -> (i32, i32) {
    %c0_i32 = arith.constant 0 : i32
    %c0_i32_0 = arith.constant 0 : i32
    %c0_i32_1 = arith.constant 0 : i32
    return %c0_i32, %c0_i32_0 : i32, i32
  }
  func.func @transform_2(%arg0: i32, %arg1: i32) -> (i32, i32) {
    %c0_i32 = arith.constant 0 : i32
    %c0_i32_0 = arith.constant 0 : i32
    %c0_i32_1 = arith.constant 0 : i32
    return %c0_i32, %c0_i32_0 : i32, i32
  }
  func.func @transform_3(%arg0: i32, %arg1: i32) -> (i32, i32) {
    %c0_i32 = arith.constant 0 : i32
    %c0_i32_0 = arith.constant 0 : i32
    %c0_i32_1 = arith.constant 0 : i32
    return %c0_i32, %c0_i32_0 : i32, i32
  }
  func.func @transform_4(%arg0: i32, %arg1: i32) -> (i32, i32) {
    %c0_i32 = arith.constant 0 : i32
    %c0_i32_0 = arith.constant 0 : i32
    %c0_i32_1 = arith.constant 0 : i32
    return %c0_i32, %c0_i32_0 : i32, i32
  }
  func.func @transform_5(%arg0: i32, %arg1: i32) -> (i32, i32) {
    %c0_i32 = arith.constant 0 : i32
    %c0_i32_0 = arith.constant 0 : i32
    %c0_i32_1 = arith.constant 0 : i32
    return %c0_i32, %c0_i32_0 : i32, i32
  }
  func.func @transform_6(%arg0: i32, %arg1: i32) -> (i32, i32) {
    %c0_i32 = arith.constant 0 : i32
    %c0_i32_0 = arith.constant 0 : i32
    %c0_i32_1 = arith.constant 0 : i32
    return %c0_i32, %c0_i32_0 : i32, i32
  }
  func.func @transform_7(%arg0: i32, %arg1: i32) -> (i32, i32, i32) {
    %c0_i32 = arith.constant 0 : i32
    %c0_i32_0 = arith.constant 0 : i32
    %c0_i32_1 = arith.constant 0 : i32
    return %arg1, %c0_i32, %c0_i32_0 : i32, i32, i32
  }
  func.func @transform_8(%arg0: i32, %arg1: i32) -> (i32, i32, i32) {
    %c0_i32 = arith.constant 0 : i32
    %c0_i32_0 = arith.constant 0 : i32
    %c0_i32_1 = arith.constant 0 : i32
    return %arg1, %c0_i32, %c0_i32_0 : i32, i32, i32
  }
  func.func @transform_9(%arg0: i32, %arg1: i32) -> (i32, i32, i32) {
    %c0_i32 = arith.constant 0 : i32
    %c0_i32_0 = arith.constant 0 : i32
    %c0_i32_1 = arith.constant 0 : i32
    return %arg1, %c0_i32, %c0_i32_0 : i32, i32, i32
  }
  func.func @transform_10(%arg0: i32, %arg1: i32) -> (i32, i32) {
    %c0_i32 = arith.constant 0 : i32
    %c0_i32_0 = arith.constant 0 : i32
    return %arg0, %c0_i32 : i32, i32
  }
}

module attributes {stable_mosaic.version = 11 : i64} {
  func.func @_rmsnorm_kernel(%arg0: i32, %arg1: memref<16x64xf32, #tpu.memory_space<vmem>>, %arg2: memref<1x64xf32, #tpu.memory_space<vmem>>, %arg3: memref<16x64xf32, #tpu.memory_space<vmem>>) attributes {dimension_semantics = [#tpu.dimension_semantics<parallel>], iteration_bounds = array<i64: 1>, scalar_prefetch = 0 : i64, scratch_operands = 0 : i64, tpu.core_type = #tpu.core_type<tc>, window_params = [{transform_indices = @transform_0, window_bounds = array<i64: 16, 64>}, {pipeline_mode = #tpu.pipeline_mode<synchronous>, transform_indices = @transform_1, window_bounds = array<i64: 1, 64>}, {transform_indices = @transform_2, window_bounds = array<i64: 16, 64>}]} {
    %c0 = arith.constant 0 : index
    %c0_0 = arith.constant 0 : index
    %0 = vector.load %arg1[%c0, %c0_0] : memref<16x64xf32, #tpu.memory_space<vmem>>, vector<16x64xf32>
    %1 = arith.mulf %0, %0 : vector<16x64xf32>
    %cst = arith.constant dense<0.000000e+00> : vector<16xf32>
    %2 = vector.multi_reduction <add>, %1, %cst [1] : vector<16x64xf32> to vector<16xf32>
    %3 = vector.shape_cast %2 : vector<16xf32> to vector<16x1xf32>
    %cst_1 = arith.constant 6.400000e+01 : f32
    %4 = vector.broadcast %cst_1 : f32 to vector<16x1xf32>
    %5 = arith.divf %3, %4 : vector<16x1xf32>
    %cst_2 = arith.constant 9.99999997E-7 : f32
    %6 = vector.broadcast %cst_2 : f32 to vector<16x1xf32>
    %7 = arith.addf %5, %6 : vector<16x1xf32>
    %8 = math.rsqrt %7 : vector<16x1xf32>
    %9 = vector.broadcast %8 : vector<16x1xf32> to vector<16x64xf32>
    %10 = arith.mulf %0, %9 : vector<16x64xf32>
    %c0_3 = arith.constant 0 : index
    %c0_4 = arith.constant 0 : index
    %11 = vector.load %arg2[%c0_3, %c0_4] : memref<1x64xf32, #tpu.memory_space<vmem>>, vector<1x64xf32>
    %12 = vector.broadcast %11 : vector<1x64xf32> to vector<16x64xf32>
    %13 = arith.mulf %10, %12 : vector<16x64xf32>
    %c0_5 = arith.constant 0 : index
    %c0_6 = arith.constant 0 : index
    %14 = vector.load %arg3[%c0_5, %c0_6] : memref<16x64xf32, #tpu.memory_space<vmem>>, vector<16x64xf32>
    tpu.vector_store %arg3[%c0_5, %c0_6], %13 {strides = array<i32>} : memref<16x64xf32, #tpu.memory_space<vmem>>, vector<16x64xf32>,
    return
  }
  func.func @transform_0(%arg0: i32) -> (i32, i32) {
    %c0_i32 = arith.constant 0 : i32
    %c0_i32_0 = arith.constant 0 : i32
    return %arg0, %c0_i32 : i32, i32
  }
  func.func @transform_1(%arg0: i32) -> (i32, i32) {
    %c0_i32 = arith.constant 0 : i32
    %c0_i32_0 = arith.constant 0 : i32
    %c0_i32_1 = arith.constant 0 : i32
    return %c0_i32, %c0_i32_0 : i32, i32
  }
  func.func @transform_2(%arg0: i32) -> (i32, i32) {
    %c0_i32 = arith.constant 0 : i32
    %c0_i32_0 = arith.constant 0 : i32
    return %arg0, %c0_i32 : i32, i32
  }
}

</mosaic_0001>

<llo_original>
// kernel: stock_transformer_forward.6
$region0: #{stock_transformer_forward.6}
  #allocation0 [shape = 'u32[]', space=smem, size = 0x4, offset = 0x4, fixed_abs, tag = 'smem constant byte address 0x4 - core index']
  #allocation1 [shape = 'u32[144,128]{1,0:T(1,128)}', space=vmem, size = 0x12000, scoped, tag = 'internal scratch']
  %s0 = inlined_call_operand.vmem [shape: f32[16,16], index: 0, kind: input, shape index: {}]
  %s1 = inlined_call_operand.vmem [shape: bf16[16,64], index: 1, kind: input, shape index: {}]
  %s2 = inlined_call_operand.vmem [shape: f32[1,64], index: 2, kind: input, shape index: {}]
  %s3 = inlined_call_operand.vmem [shape: f32[16,64], index: 3, kind: output, shape index: {}]
  %s4 = sld [smem:[#allocation0]]
  $region22: #{stock_transformer_forward.6} parent=0
    _
  %s6 = ssub.s32 1, %s4
  %s7 = scalar_select 0, %s6, %s4
  // Predicated region
  $region2: #{stock_transformer_forward.6} parent=0 // pred_check
    _
  $region3: #{stock_transformer_forward.6} parent=0 // pred_check_branch
    %9 = sbr.rel (0) target = $region5
  $region4: #{stock_transformer_forward.6} parent=0 // pred_region
    _
  $region5: #{stock_transformer_forward.6} parent=0 // pred_fallthru
    _
  // Predicated region
  $region6: #{stock_transformer_forward.6} parent=0 // pred_check
    _
  $region7: #{stock_transformer_forward.6} parent=0 // pred_check_branch
    %11 = sbr.rel (0) target = $region9
  $region8: #{stock_transformer_forward.6} parent=0 // pred_region
    _
  $region9: #{stock_transformer_forward.6} parent=0 // pred_fallthru
    _
  // Predicated region
  $region10: #{stock_transformer_forward.6} parent=0 // pred_check
    _
  $region11: #{stock_transformer_forward.6} parent=0 // pred_check_branch
    %13 = sbr.rel (0) target = $region13
  $region12: #{stock_transformer_forward.6} parent=0 // pred_region
    _
  $region13: #{stock_transformer_forward.6} parent=0 // pred_fallthru
    _
  %v15 = vld [vmem:[%s0] sm:$0xff]
  %v16 = vld [vmem:[%s0 + $0x8] sm:$0xff]
  %v17 = vpack.c.bf16 %v16, %v15
  %v18 = vld [vmem:[%s1] sm:$0xf]
  %v19 = vld [vmem:[%s1 + $0x4] sm:$0xf]
  %v20 = vld [vmem:[%s2] sm:$0x1]
  %v22 = vlaneseq
  %v23 = vshrl.u32 %v22, 7
  %v24 = vsub.s32 0, %v23
  %v25 = vrot.slane %v20, %v24
  %v29 = vunpack.c.l.b16 %v18
  %v30 = vunpack.c.l.b16 %v19
  %v31 = vpack.c.b16 %v30, %v29
  %vm33 = vcmask 130048
  %v35 = vsel %vm33, %v17, 0
  %37 = vmatprep.subr.bf16.mxu0 0
  %38 = vmatpush1.bf16.msra.mxu0 %v31
  %39 = vmatprep.subr.bf16.mxu0 0
  %40 = vmatpush1.bf16.msra.mxu0 0
  %41 = vmatprep.subr.bf16.mxu0 0
  %42 = vmatpush1.bf16.msra.mxu0 0
  %43 = vmatprep.subr.bf16.mxu0 0
  %44 = vmatpush1.bf16.msra.mxu0 0
  %45 = vmatprep.subr.bf16.mxu0 0
  %46 = vmatpush1.bf16.msra.mxu0 0
  %47 = vmatprep.subr.bf16.mxu0 0
  %48 = vmatpush1.bf16.msra.mxu0 0
  %49 = vmatprep.subr.bf16.mxu0 0
  %50 = vmatpush1.bf16.msra.mxu0 0
  %51 = vmatprep.subr.bf16.mxu0 0
  %52 = vmatpush1.bf16.msra.mxu0 0
  %53 = vmatprep.subr.bf16.mxu0 0
  %54 = vmatpush1.bf16.msra.mxu0 0
  %55 = vmatprep.subr.bf16.mxu0 0
  %56 = vmatpush1.bf16.msra.mxu0 0
  %57 = vmatprep.subr.bf16.mxu0 0
  %58 = vmatpush1.bf16.msra.mxu0 0
  %59 = vmatprep.subr.bf16.mxu0 0
  %60 = vmatpush1.bf16.msra.mxu0 0
  %61 = vmatprep.subr.bf16.mxu0 0
  %62 = vmatpush1.bf16.msra.mxu0 0
  %63 = vmatprep.subr.bf16.mxu0 0
  %64 = vmatpush1.bf16.msra.mxu0 0
  %65 = vmatprep.subr.bf16.mxu0 0
  %66 = vmatpush1.bf16.msra.mxu0 0
  %67 = vmatprep.subr.bf16.mxu0 0
  %68 = vmatpush1.bf16.msra.mxu0 0
  %69 = vmatprep.mubr.bf16.mxu0 0
  %70 = vmatmul.mubr.bf16.gmra.mrb[0].mxu0 %v35
  %v71 = vpop.f32.mrb[0].mxu0
  %v72 = vadd.f32 %v25, %v71
  %v73 = vpop.f32.mrb[0].mxu0
  %v74 = vpop.f32.mrb[0].mxu0
  %v75 = vadd.f32 %v25, %v74
  %v76 = vpop.f32.mrb[0].mxu0
  %77 = vdwg.mxu0
  %vm78 = vcmask 523264
  %79 = vst.msk [vmem:[%s3] sm:$0xff] %vm78, %v72
  %80 = vst.msk [vmem:[%s3 + $0x8] sm:$0xff] %vm78, %v75
  // Predicated region
  $region14: #{stock_transformer_forward.6} parent=0 // pred_check
    _
  $region15: #{stock_transformer_forward.6} parent=0 // pred_check_branch
    %82 = sbr.rel (0) target = $region17
  $region16: #{stock_transformer_forward.6} parent=0 // pred_region
    _
  $region17: #{stock_transformer_forward.6} parent=0 // pred_fallthru
    _
  // Predicated region
  $region18: #{stock_transformer_forward.6} parent=0 // pred_check
    _
  $region19: #{stock_transformer_forward.6} parent=0 // pred_check_branch
    %84 = sbr.rel (0) target = $region21
  $region20: #{stock_transformer_forward.6} parent=0 // pred_region
    _
  $region21: #{stock_transformer_forward.6} parent=0 // pred_fallthru
    _

// kernel: stock_transformer_forward.11
$region0: #{stock_transformer_forward.11}
  #allocation0 [shape = 'u32[]', space=smem, size = 0x4, offset = 0x4, fixed_abs, tag = 'smem constant byte address 0x4 - core index']
  #allocation1 [shape = 'u32[144,128]{1,0:T(1,128)}', space=vmem, size = 0x12000, scoped, tag = 'internal scratch']
  %s0 = inlined_call_operand.vmem [shape: f32[16,64], index: 0, kind: input, shape index: {}]
  %s1 = inlined_call_operand.vmem [shape: f32[1,64], index: 1, kind: input, shape index: {}]
  %s2 = inlined_call_operand.vmem [shape: f32[16,64], index: 2, kind: output, shape index: {}]
  %s3 = sld [smem:[#allocation0]]
  $region18: #{stock_transformer_forward.11} parent=0
    _
  %s5 = ssub.s32 1, %s3
  %s6 = scalar_select 0, %s5, %s3
  // Predicated region
  $region2: #{stock_transformer_forward.11} parent=0 // pred_check
    _
  $region3: #{stock_transformer_forward.11} parent=0 // pred_check_branch
    %8 = sbr.rel (0) target = $region5
  $region4: #{stock_transformer_forward.11} parent=0 // pred_region
    _
  $region5: #{stock_transformer_forward.11} parent=0 // pred_fallthru
    _
  // Predicated region
  $region6: #{stock_transformer_forward.11} parent=0 // pred_check
    _
  $region7: #{stock_transformer_forward.11} parent=0 // pred_check_branch
    %10 = sbr.rel (0) target = $region9
  $region8: #{stock_transformer_forward.11} parent=0 // pred_region
    _
  $region9: #{stock_transformer_forward.11} parent=0 // pred_fallthru
    _
  %v11 = vld [vmem:[%s0] sm:$0xff]
  %v12 = vld [vmem:[%s0 + $0x8] sm:$0xff]
  %v13 = vmul.f32 %v11, %v11
  %v14 = vmul.f32 %v12, %v12
  %vm15 = vcmask 523264
  %v16 = vsel %vm15, %v13, 0.0
  %17 = vadd.xlane.f32.xlu0 %v16
  %v18 = vpop.xlane.xlu0 %17
  %v19 = vsel %vm15, %v14, 0.0
  %20 = vadd.xlane.f32.xlu0 %v19
  %v21 = vpop.xlane.xlu0 %20
  %v22 = vrcp.pop 64.0
  %v23 = vmul.f32 %v18, %v22
  %v24 = vmul.f32 %v21, %v22
  %v25 = vadd.f32 %v23, 1e-06
  %v26 = vadd.f32 %v24, 1e-06
  %v27 = vrsqrt.pop %v25
  %v28 = vrsqrt.pop %v26
  %v29 = vmul.f32 %v11, %v27
  %v30 = vmul.f32 %v12, %v28
  %v31 = vld [vmem:[%s1] sm:$0x1]
  %v33 = vlaneseq
  %v34 = vshrl.u32 %v33, 7
  %v35 = vsub.s32 0, %v34
  %v36 = vrot.slane %v31, %v35
  %v38 = vmul.f32 %v29, %v36
  %v39 = vmul.f32 %v30, %v36
  %40 = vst.msk [vmem:[%s2] sm:$0xff] %vm15, %v38
  %41 = vst.msk [vmem:[%s2 + $0x8] sm:$0xff] %vm15, %v39
  // Predicated region
  $region10: #{stock_transformer_forward.11} parent=0 // pred_check
    _
  $region11: #{stock_transformer_forward.11} parent=0 // pred_check_branch
    %43 = sbr.rel (0) target = $region13
  $region12: #{stock_transformer_forward.11} parent=0 // pred_region
    _
  $region13: #{stock_transformer_forward.11} parent=0 // pred_fallthru
    _
  // Predicated region
  $region14: #{stock_transformer_forward.11} parent=0 // pred_check
    _
  $region15: #{stock_transformer_forward.11} parent=0 // pred_check_branch
    %45 = sbr.rel (0) target = $region17
  $region16: #{stock_transformer_forward.11} parent=0 // pred_region
    _
  $region17: #{stock_transformer_forward.11} parent=0 // pred_fallthru
    _

// kernel: stock_transformer_forward.7
$region0: #{stock_transformer_forward.7}
  #allocation0 [shape = 'u32[]', space=smem, size = 0x4, offset = 0x4, fixed_abs, tag = 'smem constant byte address 0x4 - core index']
  #allocation1 [shape = 'u32[144,128]{1,0:T(1,128)}', space=vmem, size = 0x12000, scoped, tag = 'internal scratch']
  %s0 = inlined_call_operand.vmem [shape: f32[2,8,64], index: 0, kind: input, shape index: {}]
  %s1 = inlined_call_operand.vmem [shape: f32[1,64], index: 1, kind: input, shape index: {}]
  %s2 = inlined_call_operand.vmem [shape: bf16[64,8], index: 2, kind: input, shape index: {}]
  %s3 = inlined_call_operand.vmem [shape: bf16[8,64], index: 3, kind: input, shape index: {}]
  %s4 = inlined_call_operand.vmem [shape: bf16[64,32], index: 4, kind: input, shape index: {}]
  %s5 = inlined_call_operand.vmem [shape: bf16[16,96], index: 5, kind: input, shape index: {}]
  %s6 = inlined_call_operand.vmem [shape: bf16[64,64], index: 6, kind: input, shape index: {}]
  %s7 = inlined_call_operand.vmem [shape: f32[1,64], index: 7, kind: input, shape index: {}]
  %s8 = inlined_call_operand.vmem [shape: f32[8,16], index: 8, kind: input, shape index: {}]
  %s9 = inlined_call_operand.vmem [shape: f32[8,16], index: 9, kind: input, shape index: {}]
  %s10 = inlined_call_operand.vmem [shape: f32[2,8,64], index: 10, kind: output, shape index: {}]
  %s11 = sld [smem:[#allocation0]]
  $region73: #{stock_transformer_forward.7} parent=0
    _
  %s13 = ssub.s32 1, %s11
  %s14 = scalar_select 0, %s13, %s11
  loop: start=0, step=1, limit=4
  $region2: #{stock_transformer_forward.7} parent=0 // loop_pre_header
    _
  $region3: #{stock_transformer_forward.7} parent=0 // loop_header
    %s16 = sphi 0, %s20
    %p17 = scmp.ge.s32.totalorder %s16, 4
    %s26 = sphi 0, %s28
    %s29 = sphi 0, %s26
    %s30 = sphi 0, %s29
    %s46 = sphi 0, %s30
    %s50 = sphi 0, %s50
    %s52 = sphi 0, %s50
    %s53 = sphi 0, %s52
    %s67 = sphi 0, %s53
    %s71 = sphi 0, %s71
    %s73 = sphi 0, %s71
    %s74 = sphi 0, %s73
    %s88 = sphi 0, %s74
    %s92 = sphi 0, %s92
    %s94 = sphi 0, %s92
    %s95 = sphi 0, %s94
    %s109 = sphi 0, %s95
    %s113 = sphi 0, %s113
    %s115 = sphi 0, %s113
    %s116 = sphi 0, %s115
    %s130 = sphi 0, %s116
    %s134 = sphi 0, %s134
    %s136 = sphi 0, %s134
    %s137 = sphi 0, %s136
    %s151 = sphi 0, %s137
    %s155 = sphi 0, %s155
    %s157 = sphi 0, %s155
    %s158 = sphi 0, %s157
    %s172 = sphi 0, %s158
    %s176 = sphi 0, %s176
    %s178 = sphi 0, %s176
    %s179 = sphi 0, %s178
    %s193 = sphi 0, %s179
    %s197 = sphi 0, %s197
    %s199 = sphi 0, %s197
    %s200 = sphi 0, %s199
    %s214 = sphi 0, %s200
    %s218 = sphi 0, %s218
    %s220 = sphi 0, %s218
    %s221 = sphi 0, %s220
    %s235 = sphi 0, %s221
    %s241 = sphi 0, %s243
    %s244 = sphi 0, %s241
    %s245 = sphi 0, %s244
    %s261 = sphi 0, %s245
  $region4: #{stock_transformer_forward.7} parent=0 // loop_header_branch
    %19 = sbr.rel (%p17) target = $region8
  $region5: #{stock_transformer_forward.7} parent=0 // loop_body
    %s21 = ssub.s32 %s16, 1
    %s22 = ssub.s32 %s16, 2
    %s23 = sadd.s32 %s16, 1
    %s24 = ssub.s32 %s16, %s23
    %p25 = scmp.eq.s32.totalorder %s24, 0
    %s27 = sadd.s32 %s26, 1
    %s28 = scalar_select %p25, %s26, %s27
    %p31 = pneg %p25
    %p32 = scmp.eq.s32.totalorder %s16, 1
    %p33 = por %p31, %p32
    %p34 = scmp.ne.s32.totalorder %s26, %s29
    %p35 = scmp.eq.s32.totalorder %s16, 0
    %p36 = por %p34, %p35
    %p37 = scmp.ne.s32.totalorder %s26, %s29
    %p38 = scmp.eq.s32.totalorder %s21, 1
    %p39 = por %p37, %p38
    %p40 = scmp.ne.s32.totalorder %s29, %s30
    %p41 = scmp.eq.s32.totalorder %s21, 0
    %p42 = por %p40, %p41
    %p43 = scmp.ne.s32.totalorder %s29, %s30
    %p44 = scmp.eq.s32.totalorder %s22, 1
    %p45 = por %p43, %p44
    %p47 = scmp.ne.s32.totalorder %s30, %s46
    %p48 = scmp.eq.s32.totalorder %s22, 0
    %p49 = por %p47, %p48
    %s51 = sadd.s32 %s50, 1
    %p54 = scmp.eq.s32.totalorder %s16, 1
    %p55 = scmp.ne.s32.totalorder %s50, %s52
    %p56 = scmp.eq.s32.totalorder %s16, 0
    %p57 = por %p55, %p56
    %p58 = scmp.ne.s32.totalorder %s50, %s52
    %p59 = scmp.eq.s32.totalorder %s21, 1
    %p60 = por %p58, %p59
    %p61 = scmp.ne.s32.totalorder %s52, %s53
    %p62 = scmp.eq.s32.totalorder %s21, 0
    %p63 = por %p61, %p62
    %p64 = scmp.ne.s32.totalorder %s52, %s53
    %p65 = scmp.eq.s32.totalorder %s22, 1
    %p66 = por %p64, %p65
    %p68 = scmp.ne.s32.totalorder %s53, %s67
    %p69 = scmp.eq.s32.totalorder %s22, 0
    %p70 = por %p68, %p69
    %s72 = sadd.s32 %s71, 1
    %p75 = scmp.eq.s32.totalorder %s16, 1
    %p76 = scmp.ne.s32.totalorder %s71, %s73
    %p77 = scmp.eq.s32.totalorder %s16, 0
    %p78 = por %p76, %p77
    %p79 = scmp.ne.s32.totalorder %s71, %s73
    %p80 = scmp.eq.s32.totalorder %s21, 1
    %p81 = por %p79, %p80
    %p82 = scmp.ne.s32.totalorder %s73, %s74
    %p83 = scmp.eq.s32.totalorder %s21, 0
    %p84 = por %p82, %p83
    %p85 = scmp.ne.s32.totalorder %s73, %s74
    %p86 = scmp.eq.s32.totalorder %s22, 1
    %p87 = por %p85, %p86
    %p89 = scmp.ne.s32.totalorder %s74, %s88
    %p90 = scmp.eq.s32.totalorder %s22, 0
    %p91 = por %p89, %p90
    %s93 = sadd.s32 %s92, 1
    %p96 = scmp.eq.s32.totalorder %s16, 1
    %p97 = scmp.ne.s32.totalorder %s92, %s94
    %p98 = scmp.eq.s32.totalorder %s16, 0
    %p99 = por %p97, %p98
    %p100 = scmp.ne.s32.totalorder %s92, %s94
    %p101 = scmp.eq.s32.totalorder %s21, 1
    %p102 = por %p100, %p101
    %p103 = scmp.ne.s32.totalorder %s94, %s95
    %p104 = scmp.eq.s32.totalorder %s21, 0
    %p105 = por %p103, %p104
    %p106 = scmp.ne.s32.totalorder %s94, %s95
    %p107 = scmp.eq.s32.totalorder %s22, 1
    %p108 = por %p106, %p107
    %p110 = scmp.ne.s32.totalorder %s95, %s109
    %p111 = scmp.eq.s32.totalorder %s22, 0
    %p112 = por %p110, %p111
    %s114 = sadd.s32 %s113, 1
    %p117 = scmp.eq.s32.totalorder %s16, 1
    %p118 = scmp.ne.s32.totalorder %s113, %s115
    %p119 = scmp.eq.s32.totalorder %s16, 0
    %p120 = por %p118, %p119
    %p121 = scmp.ne.s32.totalorder %s113, %s115
    %p122 = scmp.eq.s32.totalorder %s21, 1
    %p123 = por %p121, %p122
    %p124 = scmp.ne.s32.totalorder %s115, %s116
    %p125 = scmp.eq.s32.totalorder %s21, 0
    %p126 = por %p124, %p125
    %p127 = scmp.ne.s32.totalorder %s115, %s116
    %p128 = scmp.eq.s32.totalorder %s22, 1
    %p129 = por %p127, %p128
    %p131 = scmp.ne.s32.totalorder %s116, %s130
    %p132 = scmp.eq.s32.totalorder %s22, 0
    %p133 = por %p131, %p132
    %s135 = sadd.s32 %s134, 1
    %p138 = scmp.eq.s32.totalorder %s16, 1
    %p139 = scmp.ne.s32.totalorder %s134, %s136
    %p140 = scmp.eq.s32.totalorder %s16, 0
    %p141 = por %p139, %p140
    %p142 = scmp.ne.s32.totalorder %s134, %s136
    %p143 = scmp.eq.s32.totalorder %s21, 1
    %p144 = por %p142, %p143
    %p145 = scmp.ne.s32.totalorder %s136, %s137
    %p146 = scmp.eq.s32.totalorder %s21, 0
    %p147 = por %p145, %p146
    %p148 = scmp.ne.s32.totalorder %s136, %s137
    %p149 = scmp.eq.s32.totalorder %s22, 1
    %p150 = por %p148, %p149
    %p152 = scmp.ne.s32.totalorder %s137, %s151
    %p153 = scmp.eq.s32.totalorder %s22, 0
    %p154 = por %p152, %p153
    %s156 = sadd.s32 %s155, 1
    %p159 = scmp.eq.s32.totalorder %s16, 1
    %p160 = scmp.ne.s32.totalorder %s155, %s157
    %p161 = scmp.eq.s32.totalorder %s16, 0
    %p162 = por %p160, %p161
    %p163 = scmp.ne.s32.totalorder %s155, %s157
    %p164 = scmp.eq.s32.totalorder %s21, 1
    %p165 = por %p163, %p164
    %p166 = scmp.ne.s32.totalorder %s157, %s158
    %p167 = scmp.eq.s32.totalorder %s21, 0
    %p168 = por %p166, %p167
    %p169 = scmp.ne.s32.totalorder %s157, %s158
    %p170 = scmp.eq.s32.totalorder %s22, 1
    %p171 = por %p169, %p170
    %p173 = scmp.ne.s32.totalorder %s158, %s172
    %p174 = scmp.eq.s32.totalorder %s22, 0
    %p175 = por %p173, %p174
    %s177 = sadd.s32 %s176, 1
    %p180 = scmp.eq.s32.totalorder %s16, 1
    %p181 = scmp.ne.s32.totalorder %s176, %s178
    %p182 = scmp.eq.s32.totalorder %s16, 0
    %p183 = por %p181, %p182
    %p184 = scmp.ne.s32.totalorder %s176, %s178
    %p185 = scmp.eq.s32.totalorder %s21, 1
    %p186 = por %p184, %p185
    %p187 = scmp.ne.s32.totalorder %s178, %s179
    %p188 = scmp.eq.s32.totalorder %s21, 0
    %p189 = por %p187, %p188
    %p190 = scmp.ne.s32.totalorder %s178, %s179
    %p191 = scmp.eq.s32.totalorder %s22, 1
    %p192 = por %p190, %p191
    %p194 = scmp.ne.s32.totalorder %s179, %s193
    %p195 = scmp.eq.s32.totalorder %s22, 0
    %p196 = por %p194, %p195
    %s198 = sadd.s32 %s197, 1
    %p201 = scmp.eq.s32.totalorder %s16, 1
    %p202 = scmp.ne.s32.totalorder %s197, %s199
    %p203 = scmp.eq.s32.totalorder %s16, 0
    %p204 = por %p202, %p203
    %p205 = scmp.ne.s32.totalorder %s197, %s199
    %p206 = scmp.eq.s32.totalorder %s21, 1
    %p207 = por %p205, %p206
    %p208 = scmp.ne.s32.totalorder %s199, %s200
    %p209 = scmp.eq.s32.totalorder %s21, 0
    %p210 = por %p208, %p209
    %p211 = scmp.ne.s32.totalorder %s199, %s200
    %p212 = scmp.eq.s32.totalorder %s22, 1
    %p213 = por %p211, %p212
    %p215 = scmp.ne.s32.totalorder %s200, %s214
    %p216 = scmp.eq.s32.totalorder %s22, 0
    %p217 = por %p215, %p216
    %s219 = sadd.s32 %s218, 1
    %p222 = scmp.eq.s32.totalorder %s16, 1
    %p223 = scmp.ne.s32.totalorder %s218, %s220
    %p224 = scmp.eq.s32.totalorder %s16, 0
    %p225 = por %p223, %p224
    %p226 = scmp.ne.s32.totalorder %s218, %s220
    %p227 = scmp.eq.s32.totalorder %s21, 1
    %p228 = por %p226, %p227
    %p229 = scmp.ne.s32.totalorder %s220, %s221
    %p230 = scmp.eq.s32.totalorder %s21, 0
    %p231 = por %p229, %p230
    %p232 = scmp.ne.s32.totalorder %s220, %s221
    %p233 = scmp.eq.s32.totalorder %s22, 1
    %p234 = por %p232, %p233
    %p236 = scmp.ne.s32.totalorder %s221, %s235
    %p237 = scmp.eq.s32.totalorder %s22, 0
    %p238 = por %p236, %p237
    %s239 = ssub.s32 %s16, %s23
    %p240 = scmp.eq.s32.totalorder %s239, 0
    %s242 = sadd.s32 %s241, 1
    %s243 = scalar_select %p240, %s241, %s242
    %p246 = pneg %p240
    %p247 = scmp.eq.s32.totalorder %s16, 1
    %p248 = por %p246, %p247
    %p249 = scmp.ne.s32.totalorder %s241, %s244
    %p250 = scmp.eq.s32.totalorder %s16, 0
    %p251 = por %p249, %p250
    %p252 = scmp.ne.s32.totalorder %s241, %s244
    %p253 = scmp.eq.s32.totalorder %s21, 1
    %p254 = por %p252, %p253
    %p255 = scmp.ne.s32.totalorder %s244, %s245
    %p256 = scmp.eq.s32.totalorder %s21, 0
    %p257 = por %p255, %p256
    %p258 = scmp.ne.s32.totalorder %s244, %s245
    %p259 = scmp.eq.s32.totalorder %s22, 1
    %p260 = por %p258, %p259
    %p262 = scmp.ne.s32.totalorder %s245, %s261
    %p263 = scmp.eq.s32.totalorder %s22, 0
    %p264 = por %p262, %p263
    %p265 = scmp.le.s32.totalorder 1, %s16
    %p266 = scmp.lt.s32.totalorder %s16, 3
    %p267 = pnand %p265, %p266
    %p268 = pneg %p267
    // Predicated region
    $region9: #{stock_transformer_forward.7} parent=5 // pred_check
      _
    $region10: #{stock_transformer_forward.7} parent=5 // pred_check_branch
      %270 = sbr.rel (%p267) target = $region12
    $region11: #{stock_transformer_forward.7} parent=5 // pred_region
      %s271 = ssub.s32 %s16, 1
      // Predicated region
      $region13: #{stock_transformer_forward.7} parent=11 // pred_check
        %p272 = pneg %p63
      $region14: #{stock_transformer_forward.7} parent=11 // pred_check_branch
        %274 = sbr.rel (%p272) target = $region16
      $region15: #{stock_transformer_forward.7} parent=11 // pred_region
        _
      $region16: #{stock_transformer_forward.7} parent=11 // pred_fallthru
        _
      // Predicated region
      $region17: #{stock_transformer_forward.7} parent=11 // pred_check
        %p275 = pneg %p84
      $region18: #{stock_transformer_forward.7} parent=11 // pred_check_branch
        %277 = sbr.rel (%p275) target = $region20
      $region19: #{stock_transformer_forward.7} parent=11 // pred_region
        _
      $region20: #{stock_transformer_forward.7} parent=11 // pred_fallthru
        _
      // Predicated region
      $region21: #{stock_transformer_forward.7} parent=11 // pred_check
        %p278 = pneg %p105
      $region22: #{stock_transformer_forward.7} parent=11 // pred_check_branch
        %280 = sbr.rel (%p278) target = $region24
      $region23: #{stock_transformer_forward.7} parent=11 // pred_region
        _
      $region24: #{stock_transformer_forward.7} parent=11 // pred_fallthru
        _
      // Predicated region
      $region25: #{stock_transformer_forward.7} parent=11 // pred_check
        %p281 = pneg %p126
      $region26: #{stock_transformer_forward.7} parent=11 // pred_check_branch
        %283 = sbr.rel (%p281) target = $region28
      $region27: #{stock_transformer_forward.7} parent=11 // pred_region
        _
      $region28: #{stock_transformer_forward.7} parent=11 // pred_fallthru
        _
      // Predicated region
      $region29: #{stock_transformer_forward.7} parent=11 // pred_check
        %p284 = pneg %p147
      $region30: #{stock_transformer_forward.7} parent=11 // pred_check_branch
        %286 = sbr.rel (%p284) target = $region32
      $region31: #{stock_transformer_forward.7} parent=11 // pred_region
        _
      $region32: #{stock_transformer_forward.7} parent=11 // pred_fallthru
        _
      // Predicated region
      $region33: #{stock_transformer_forward.7} parent=11 // pred_check
        %p287 = pneg %p168
      $region34: #{stock_transformer_forward.7} parent=11 // pred_check_branch
        %289 = sbr.rel (%p287) target = $region36
      $region35: #{stock_transformer_forward.7} parent=11 // pred_region
        _
      $region36: #{stock_transformer_forward.7} parent=11 // pred_fallthru
        _
      // Predicated region
      $region37: #{stock_transformer_forward.7} parent=11 // pred_check
        %p290 = pneg %p189
      $region38: #{stock_transformer_forward.7} parent=11 // pred_check_branch
        %292 = sbr.rel (%p290) target = $region40
      $region39: #{stock_transformer_forward.7} parent=11 // pred_region
        _
      $region40: #{stock_transformer_forward.7} parent=11 // pred_fallthru
        _
      // Predicated region
      $region41: #{stock_transformer_forward.7} parent=11 // pred_check
        %p293 = pneg %p210
      $region42: #{stock_transformer_forward.7} parent=11 // pred_check_branch
        %295 = sbr.rel (%p293) target = $region44
      $region43: #{stock_transformer_forward.7} parent=11 // pred_region
        _
      $region44: #{stock_transformer_forward.7} parent=11 // pred_fallthru
        _
      // Predicated region
      $region45: #{stock_transformer_forward.7} parent=11 // pred_check
        %p296 = pneg %p231
      $region46: #{stock_transformer_forward.7} parent=11 // pred_check_branch
        %298 = sbr.rel (%p296) target = $region48
      $region47: #{stock_transformer_forward.7} parent=11 // pred_region
        _
      $region48: #{stock_transformer_forward.7} parent=11 // pred_fallthru
        _
    $region12: #{stock_transformer_forward.7} parent=5 // pred_fallthru
      _
    %p299 = scmp.lt.s32.totalorder %s16, 2
    // Predicated region
    $region49: #{stock_transformer_forward.7} parent=5 // pred_check
      %p300 = pneg %p299
    $region50: #{stock_transformer_forward.7} parent=5 // pred_check_branch
      %302 = sbr.rel (%p300) target = $region52
    $region51: #{stock_transformer_forward.7} parent=5 // pred_region
      // Predicated region
      $region53: #{stock_transformer_forward.7} parent=51 // pred_check
        %p303 = pneg %p36
      $region54: #{stock_transformer_forward.7} parent=51 // pred_check_branch
        %305 = sbr.rel (%p303) target = $region56
      $region55: #{stock_transformer_forward.7} parent=51 // pred_region
        %p306 = scmp.lt.s32.totalorder %s16, 1
        %s307 = scalar_select %p306, %s16, 1
        %s308 = smul.addr %s307, 8
        %s309 = scalar_lea.vmem %s0, %s308
      $region56: #{stock_transformer_forward.7} parent=51 // pred_fallthru
        _
    $region52: #{stock_transformer_forward.7} parent=5 // pred_fallthru
      _
    %p310 = scmp.le.s32.totalorder 1, %s16
    %p311 = scmp.lt.s32.totalorder %s16, 3
    %p312 = pnand %p310, %p311
    %p313 = pneg %p312
    // Predicated region
    $region57: #{stock_transformer_forward.7} parent=5 // pred_check
      _
    $region58: #{stock_transformer_forward.7} parent=5 // pred_check_branch
      %315 = sbr.rel (%p312) target = $region60
    $region59: #{stock_transformer_forward.7} parent=5 // pred_region
      %s316 = ssub.s32 %s16, 1
      %p317 = scmp.lt.s32.totalorder %s21, 1
      %s318 = scalar_select %p317, %s21, 1
      %s319 = smul.addr %s318, 8
      %s320 = scalar_lea.vmem %s0, %s319
      %p321 = pneg %p42
      %p322 = pneg %p39
      %p323 = pneg %p63
      %p324 = pneg %p60
      %p325 = pneg %p84
      %p326 = pneg %p81
      %p327 = pneg %p105
      %p328 = pneg %p102
      %p329 = pneg %p126
      %p330 = pneg %p123
      %p331 = pneg %p147
      %p332 = pneg %p144
      %p333 = pneg %p168
      %p334 = pneg %p165
      %p335 = pneg %p189
      %p336 = pneg %p186
      %p337 = pneg %p210
      %p338 = pneg %p207
      %p339 = pneg %p231
      %p340 = pneg %p228
      %p341 = pneg %p257
      %p342 = pneg %p254
      %p343 = scmp.lt.s32.totalorder %s21, 1
      %s344 = scalar_select %p343, %s21, 1
      %s345 = smul.addr %s344, 8
      %s346 = scalar_lea.vmem %s10, %s345
      %p347 = scmp.lt.s32.totalorder %s21, 1
      %s348 = scalar_select %p347, %s21, 1
      %s349 = smul.addr %s348, 8
      %s350 = scalar_lea.vmem %s0, %s349
      %p351 = scmp.lt.s32.totalorder %s21, 1
      %s352 = scalar_select %p351, %s21, 1
      %s353 = smul.addr %s352, 8
      %s354 = scalar_lea.vmem %s10, %s353
      %v356 = vld [vmem:[%s350] sm:$0xff]
      %v357 = vmul.f32 %v356, %v356
      %vm358 = vcmask 523264
      %v359 = vsel %vm358, %v357, 0.0
      %360 = vadd.xlane.f32.xlu0 %v359
      %v361 = vpop.xlane.xlu0 %360
      %v362 = vrcp.pop 64.0
      %v363 = vmul.f32 %v361, %v362
      %v364 = vadd.f32 %v363, 1e-06
      %v365 = vrsqrt.pop %v364
      %v366 = vmul.f32 %v356, %v365
      %v367 = vld [vmem:[%s1] sm:$0x1]
      %v369 = vlaneseq
      %v370 = vshrl.u32 %v369, 7
      %v371 = vsub.s32 0, %v370
      %v372 = vrot.slane %v367, %v371
      %v374 = vmul.f32 %v366, %v372
      %v375 = vpack.c.bf16 %v374, %v374
      %v376 = vld [vmem:[%s2] sm:$0xf]
      %v377 = vld [vmem:[%s2 + $0x4] sm:$0xf]
      %v378 = vld [vmem:[%s2 + $0x8] sm:$0xf]
      %v379 = vld [vmem:[%s2 + $0xc] sm:$0xf]
      %v380 = vld [vmem:[%s2 + $0x10] sm:$0xf]
      %v381 = vld [vmem:[%s2 + $0x14] sm:$0xf]
      %v382 = vld [vmem:[%s2 + $0x18] sm:$0xf]
      %v383 = vld [vmem:[%s2 + $0x1c] sm:$0xf]
      %v392 = vunpack.c.l.b16 %v376
      %v393 = vunpack.c.l.b16 %v377
      %v394 = vunpack.c.l.b16 %v378
      %v395 = vunpack.c.l.b16 %v379
      %v396 = vunpack.c.l.b16 %v380
      %v397 = vunpack.c.l.b16 %v381
      %v398 = vunpack.c.l.b16 %v382
      %v399 = vunpack.c.l.b16 %v383
      %v400 = vpack.c.b16 %v393, %v392
      %v401 = vpack.c.b16 %v395, %v394
      %v402 = vpack.c.b16 %v397, %v396
      %v403 = vpack.c.b16 %v399, %v398
      %v409 = vsel %vm358, %v375, 0
      %411 = vmatprep.subr.bf16.mxu0 0
      %412 = vmatpush1.bf16.msra.mxu0 %v400
      %413 = vmatprep.subr.bf16.mxu0 0
      %414 = vmatpush1.bf16.msra.mxu0 %v401
      %415 = vmatprep.subr.bf16.mxu0 0
      %416 = vmatpush1.bf16.msra.mxu0 %v402
      %417 = vmatprep.subr.bf16.mxu0 0
      %418 = vmatpush1.bf16.msra.mxu0 %v403
      %419 = vmatprep.subr.bf16.mxu0 0
      %420 = vmatpush1.bf16.msra.mxu0 0
      %421 = vmatprep.subr.bf16.mxu0 0
      %422 = vmatpush1.bf16.msra.mxu0 0
      %423 = vmatprep.subr.bf16.mxu0 0
      %424 = vmatpush1.bf16.msra.mxu0 0
      %425 = vmatprep.subr.bf16.mxu0 0
      %426 = vmatpush1.bf16.msra.mxu0 0
      %427 = vmatprep.subr.bf16.mxu0 0
      %428 = vmatpush1.bf16.msra.mxu0 0
      %429 = vmatprep.subr.bf16.mxu0 0
      %430 = vmatpush1.bf16.msra.mxu0 0
      %431 = vmatprep.subr.bf16.mxu0 0
      %432 = vmatpush1.bf16.msra.mxu0 0
      %433 = vmatprep.subr.bf16.mxu0 0
      %434 = vmatpush1.bf16.msra.mxu0 0
      %435 = vmatprep.subr.bf16.mxu0 0
      %436 = vmatpush1.bf16.msra.mxu0 0
      %437 = vmatprep.subr.bf16.mxu0 0
      %438 = vmatpush1.bf16.msra.mxu0 0
      %439 = vmatprep.subr.bf16.mxu0 0
      %440 = vmatpush1.bf16.msra.mxu0 0
      %441 = vmatprep.subr.bf16.mxu0 0
      %442 = vmatpush1.bf16.msra.mxu0 0
      %443 = vmatprep.mubr.bf16.mxu0 0
      %444 = vmatmul.mubr.bf16.gmra.mrb[0].mxu0 %v409
      %v445 = vpop.f32.mrb[0].mxu0
      %v446 = vadd.f32 0.0, %v445
      %v447 = vpop.f32.mrb[0].mxu0
      %v448 = vpop.f32.mrb[0].mxu0
      %v449 = vpop.f32.mrb[0].mxu0
      %450 = vdwg.mxu0
      %v451 = vpack.c.bf16 %v446, %v446
      %v452 = vld [vmem:[%s3] sm:$0xf]
      %vm453 = vcmask 64512
      %v455 = vsel %vm453, %v451, 0
      %vm457 = vcmask 1043456
      %v459 = vsel %vm457, %v452, 0
      %461 = vmatprep.subr.bf16.mxu0 0
      %462 = vmatpush1.bf16.msra.mxu0 %v459
      %463 = vmatprep.subr.bf16.mxu0 0
      %464 = vmatpush1.bf16.msra.mxu0 0
      %465 = vmatprep.subr.bf16.mxu0 0
      %466 = vmatpush1.bf16.msra.mxu0 0
      %467 = vmatprep.subr.bf16.mxu0 0
      %468 = vmatpush1.bf16.msra.mxu0 0
      %469 = vmatprep.subr.bf16.mxu0 0
      %470 = vmatpush1.bf16.msra.mxu0 0
      %471 = vmatprep.subr.bf16.mxu0 0
      %472 = vmatpush1.bf16.msra.mxu0 0
      %473 = vmatprep.subr.bf16.mxu0 0
      %474 = vmatpush1.bf16.msra.mxu0 0
      %475 = vmatprep.subr.bf16.mxu0 0
      %476 = vmatpush1.bf16.msra.mxu0 0
      %477 = vmatprep.subr.bf16.mxu0 0
      %478 = vmatpush1.bf16.msra.mxu0 0
      %479 = vmatprep.subr.bf16.mxu0 0
      %480 = vmatpush1.bf16.msra.mxu0 0
      %481 = vmatprep.subr.bf16.mxu0 0
      %482 = vmatpush1.bf16.msra.mxu0 0
      %483 = vmatprep.subr.bf16.mxu0 0
      %484 = vmatpush1.bf16.msra.mxu0 0
      %485 = vmatprep.subr.bf16.mxu0 0
      %486 = vmatpush1.bf16.msra.mxu0 0
      %487 = vmatprep.subr.bf16.mxu0 0
      %488 = vmatpush1.bf16.msra.mxu0 0
      %489 = vmatprep.subr.bf16.mxu0 0
      %490 = vmatpush1.bf16.msra.mxu0 0
      %491 = vmatprep.subr.bf16.mxu0 0
      %492 = vmatpush1.bf16.msra.mxu0 0
      %493 = vmatprep.mubr.bf16.mxu0 0
      %494 = vmatmul.mubr.bf16.gmra.mrb[0].mxu0 %v455
      %v495 = vpop.f32.mrb[0].mxu0
      %v496 = vadd.f32 0.0, %v495
      %v497 = vpop.f32.mrb[0].mxu0
      %v498 = vpop.f32.mrb[0].mxu0
      %v499 = vpop.f32.mrb[0].mxu0
      %500 = vdwg.mxu0
      %v501 = vld [vmem:[%s4] sm:$0xf]
      %v502 = vld [vmem:[%s4 + $0x4] sm:$0xf]
      %v503 = vld [vmem:[%s4 + $0x8] sm:$0xf]
      %v504 = vld [vmem:[%s4 + $0xc] sm:$0xf]
      %v505 = vld [vmem:[%s4 + $0x10] sm:$0xf]
      %v506 = vld [vmem:[%s4 + $0x14] sm:$0xf]
      %v507 = vld [vmem:[%s4 + $0x18] sm:$0xf]
      %v508 = vld [vmem:[%s4 + $0x1c] sm:$0xf]
      %v517 = vunpack.c.l.b16 %v501
      %v518 = vunpack.c.l.b16 %v502
      %v519 = vunpack.c.l.b16 %v503
      %v520 = vunpack.c.l.b16 %v504
      %v521 = vunpack.c.l.b16 %v505
      %v522 = vunpack.c.l.b16 %v506
      %v523 = vunpack.c.l.b16 %v507
      %v524 = vunpack.c.l.b16 %v508
      %v525 = vpack.c.b16 %v518, %v517
      %v526 = vpack.c.b16 %v520, %v519
      %v527 = vpack.c.b16 %v522, %v521
      %v528 = vpack.c.b16 %v524, %v523
      %533 = vmatprep.subr.bf16.mxu0 0
      %534 = vmatpush1.bf16.msra.mxu0 %v525
      %535 = vmatprep.subr.bf16.mxu0 0
      %536 = vmatpush1.bf16.msra.mxu0 %v526
      %537 = vmatprep.subr.bf16.mxu0 0
      %538 = vmatpush1.bf16.msra.mxu0 %v527
      %539 = vmatprep.subr.bf16.mxu0 0
      %540 = vmatpush1.bf16.msra.mxu0 %v528
      %541 = vmatprep.subr.bf16.mxu0 0
      %542 = vmatpush1.bf16.msra.mxu0 0
      %543 = vmatprep.subr.bf16.mxu0 0
      %544 = vmatpush1.bf16.msra.mxu0 0
      %545 = vmatprep.subr.bf16.mxu0 0
      %546 = vmatpush1.bf16.msra.mxu0 0
      %547 = vmatprep.subr.bf16.mxu0 0
      %548 = vmatpush1.bf16.msra.mxu0 0
      %549 = vmatprep.subr.bf16.mxu0 0
      %550 = vmatpush1.bf16.msra.mxu0 0
      %551 = vmatprep.subr.bf16.mxu0 0
      %552 = vmatpush1.bf16.msra.mxu0 0
      %553 = vmatprep.subr.bf16.mxu0 0
      %554 = vmatpush1.bf16.msra.mxu0 0
      %555 = vmatprep.subr.bf16.mxu0 0
      %556 = vmatpush1.bf16.msra.mxu0 0
      %557 = vmatprep.subr.bf16.mxu0 0
      %558 = vmatpush1.bf16.msra.mxu0 0
      %559 = vmatprep.subr.bf16.mxu0 0
      %560 = vmatpush1.bf16.msra.mxu0 0
      %561 = vmatprep.subr.bf16.mxu0 0
      %562 = vmatpush1.bf16.msra.mxu0 0
      %563 = vmatprep.subr.bf16.mxu0 0
      %564 = vmatpush1.bf16.msra.mxu0 0
      %565 = vmatprep.mubr.bf16.mxu0 0
      %566 = vmatmul.mubr.bf16.gmra.mrb[0].mxu0 %v409
      %v567 = vpop.f32.mrb[0].mxu0
      %v568 = vadd.f32 0.0, %v567
      %v569 = vpop.f32.mrb[0].mxu0
      %v570 = vpop.f32.mrb[0].mxu0
      %v571 = vpop.f32.mrb[0].mxu0
      %572 = vdwg.mxu0
      %v573 = vpack.c.bf16 %v568, %v568
      %v574 = vld [vmem:[%s5] sm:$0xf]
      %v575 = vld [vmem:[%s5 + $0x4] sm:$0xf]
      %v578 = vunpack.c.l.b16 %v574
      %v579 = vunpack.c.l.b16 %v575
      %v580 = vpack.c.b16 %v579, %v578
      %vm582 = vcmask 130048
      %v584 = vsel %vm582, %v573, 0
      %586 = vmatprep.subr.bf16.mxu0 0
      %587 = vmatpush1.bf16.msra.mxu0 %v580
      %588 = vmatprep.subr.bf16.mxu0 0
      %589 = vmatpush1.bf16.msra.mxu0 0
      %590 = vmatprep.subr.bf16.mxu0 0
      %591 = vmatpush1.bf16.msra.mxu0 0
      %592 = vmatprep.subr.bf16.mxu0 0
      %593 = vmatpush1.bf16.msra.mxu0 0
      %594 = vmatprep.subr.bf16.mxu0 0
      %595 = vmatpush1.bf16.msra.mxu0 0
      %596 = vmatprep.subr.bf16.mxu0 0
      %597 = vmatpush1.bf16.msra.mxu0 0
      %598 = vmatprep.subr.bf16.mxu0 0
      %599 = vmatpush1.bf16.msra.mxu0 0
      %600 = vmatprep.subr.bf16.mxu0 0
      %601 = vmatpush1.bf16.msra.mxu0 0
      %602 = vmatprep.subr.bf16.mxu0 0
      %603 = vmatpush1.bf16.msra.mxu0 0
      %604 = vmatprep.subr.bf16.mxu0 0
      %605 = vmatpush1.bf16.msra.mxu0 0
      %606 = vmatprep.subr.bf16.mxu0 0
      %607 = vmatpush1.bf16.msra.mxu0 0
      %608 = vmatprep.subr.bf16.mxu0 0
      %609 = vmatpush1.bf16.msra.mxu0 0
      %610 = vmatprep.subr.bf16.mxu0 0
      %611 = vmatpush1.bf16.msra.mxu0 0
      %612 = vmatprep.subr.bf16.mxu0 0
      %613 = vmatpush1.bf16.msra.mxu0 0
      %614 = vmatprep.subr.bf16.mxu0 0
      %615 = vmatpush1.bf16.msra.mxu0 0
      %616 = vmatprep.subr.bf16.mxu0 0
      %617 = vmatpush1.bf16.msra.mxu0 0
      %618 = vmatprep.mubr.bf16.mxu0 0
      %619 = vmatmul.mubr.bf16.gmra.mrb[0].mxu0 %v584
      %v620 = vpop.f32.mrb[0].mxu0
      %v621 = vadd.f32 0.0, %v620
      %v622 = vpop.f32.mrb[0].mxu0
      %v623 = vpop.f32.mrb[0].mxu0
      %v624 = vpop.f32.mrb[0].mxu0
      %625 = vdwg.mxu0
      %v626 = vld [vmem:[%s8] sm:$0xff]
      %v627 = vld [vmem:[%s9] sm:$0xff]
      %v628 = vsub.f32 0.0, %v568
      %630 = vrot.lane.b32.xlu0 %v628, 104
      %v631 = vpop.permute.xlu0 %630
      %634 = vrot.lane.b32.xlu0 %v568, 120
      %v635 = vpop.permute.xlu0 %634
      %v637 = vsel %vm453, %v631, %v635
      %639 = vrot.lane.b32.xlu0 %v626, 16
      %v640 = vpop.permute.xlu0 %639
      %v642 = vmul.f32 %v568, %v640
      %v643 = vmul.f32 %v637, %v627
      %645 = vrot.lane.b32.xlu0 %v643, 16
      %v646 = vpop.permute.xlu0 %645
      %v648 = vadd.f32 %v642, %v646
      %v649 = vpack.c.bf16 %v648, %v648
      %v650 = vlaneseq
      %v651 = vshrl.u32 %v650, 7
      %v652 = vlaneseq
      %v653 = vand.u32 %v652, 127
      %vm654 = vcmp.le.s32.totalorder %v653, %v651
      %v655 = vpack.c.bf16 %v496, %v496
      %v656 = vsub.f32 0.0, %v496
      %658 = vrot.lane.b32.xlu0 %v656, 104
      %v659 = vpop.permute.xlu0 %658
      %662 = vrot.lane.b32.xlu0 %v496, 120
      %v663 = vpop.permute.xlu0 %662
      %v665 = vsel %vm453, %v659, %v663
      %v666 = vmul.f32 %v496, %v640
      %v667 = vmul.f32 %v665, %v627
      %669 = vrot.lane.b32.xlu0 %v667, 16
      %v670 = vpop.permute.xlu0 %669
      %v672 = vadd.f32 %v666, %v670
      %v673 = vpack.c.bf16 %v672, %v672
      %v674 = vpack.c.bf16 %v621, %v621
      %676 = vrot.lane.b32.xlu0 %v673, 112
      %v677 = vpop.permute.xlu0 %676
      %679 = vrot.lane.b32.xlu0 %v649, 112
      %v680 = vpop.permute.xlu0 %679
      %v682 = vsel %vm582, %v677, 0
      %v685 = vsel %vm582, %v680, 0
      %687 = vmatprep.subr.bf16.mxu0 0
      %688 = vmatpush1.bf16.xpose.msra.mxu0 %v685
      %689 = vmatprep.subr.bf16.mxu0 0
      %690 = vmatpush1.bf16.xpose.msra.mxu0 0
      %691 = vmatprep.subr.bf16.mxu0 0
      %692 = vmatpush1.bf16.xpose.msra.mxu0 0
      %693 = vmatprep.subr.bf16.mxu0 0
      %694 = vmatpush1.bf16.xpose.msra.mxu0 0
      %695 = vmatprep.subr.bf16.mxu0 0
      %696 = vmatpush1.bf16.xpose.msra.mxu0 0
      %697 = vmatprep.subr.bf16.mxu0 0
      %698 = vmatpush1.bf16.xpose.msra.mxu0 0
      %699 = vmatprep.subr.bf16.mxu0 0
      %700 = vmatpush1.bf16.xpose.msra.mxu0 0
      %701 = vmatprep.subr.bf16.mxu0 0
      %702 = vmatpush1.bf16.xpose.msra.mxu0 0
      %703 = vmatprep.subr.bf16.mxu0 0
      %704 = vmatpush1.bf16.xpose.msra.mxu0 0
      %705 = vmatprep.subr.bf16.mxu0 0
      %706 = vmatpush1.bf16.xpose.msra.mxu0 0
      %707 = vmatprep.subr.bf16.mxu0 0
      %708 = vmatpush1.bf16.xpose.msra.mxu0 0
      %709 = vmatprep.subr.bf16.mxu0 0
      %710 = vmatpush1.bf16.xpose.msra.mxu0 0
      %711 = vmatprep.subr.bf16.mxu0 0
      %712 = vmatpush1.bf16.xpose.msra.mxu0 0
      %713 = vmatprep.subr.bf16.mxu0 0
      %714 = vmatpush1.bf16.xpose.msra.mxu0 0
      %715 = vmatprep.subr.bf16.mxu0 0
      %716 = vmatpush1.bf16.xpose.msra.mxu0 0
      %717 = vmatprep.subr.bf16.mxu0 0
      %718 = vmatpush1.bf16.xpose.msra.mxu0 0
      %719 = vmatprep.mubr.bf16.mxu0 0
      %720 = vmatmul.mubr.bf16.gmra.mrb[0].mxu0 %v682
      %v721 = vpop.f32.mrb[0].mxu0
      %v722 = vadd.f32 0.0, %v721
      %v723 = vpop.f32.mrb[0].mxu0
      %v724 = vpop.f32.mrb[0].mxu0
      %v725 = vpop.f32.mrb[0].mxu0
      %726 = vdwg.mxu0
      %v728 = vsel %vm582, %v655, 0
      %v731 = vsel %vm582, %v674, 0
      %733 = vmatprep.subr.bf16.mxu0 0
      %734 = vmatpush1.bf16.xpose.msra.mxu0 %v731
      %735 = vmatprep.subr.bf16.mxu0 0
      %736 = vmatpush1.bf16.xpose.msra.mxu0 0
      %737 = vmatprep.subr.bf16.mxu0 0
      %738 = vmatpush1.bf16.xpose.msra.mxu0 0
      %739 = vmatprep.subr.bf16.mxu0 0
      %740 = vmatpush1.bf16.xpose.msra.mxu0 0
      %741 = vmatprep.subr.bf16.mxu0 0
      %742 = vmatpush1.bf16.xpose.msra.mxu0 0
      %743 = vmatprep.subr.bf16.mxu0 0
      %744 = vmatpush1.bf16.xpose.msra.mxu0 0
      %745 = vmatprep.subr.bf16.mxu0 0
      %746 = vmatpush1.bf16.xpose.msra.mxu0 0
      %747 = vmatprep.subr.bf16.mxu0 0
      %748 = vmatpush1.bf16.xpose.msra.mxu0 0
      %749 = vmatprep.subr.bf16.mxu0 0
      %750 = vmatpush1.bf16.xpose.msra.mxu0 0
      %751 = vmatprep.subr.bf16.mxu0 0
      %752 = vmatpush1.bf16.xpose.msra.mxu0 0
      %753 = vmatprep.subr.bf16.mxu0 0
      %754 = vmatpush1.bf16.xpose.msra.mxu0 0
      %755 = vmatprep.subr.bf16.mxu0 0
      %756 = vmatpush1.bf16.xpose.msra.mxu0 0
      %757 = vmatprep.subr.bf16.mxu0 0
      %758 = vmatpush1.bf16.xpose.msra.mxu0 0
      %759 = vmatprep.subr.bf16.mxu0 0
      %760 = vmatpush1.bf16.xpose.msra.mxu0 0
      %761 = vmatprep.subr.bf16.mxu0 0
      %762 = vmatpush1.bf16.xpose.msra.mxu0 0
      %763 = vmatprep.subr.bf16.mxu0 0
      %764 = vmatpush1.bf16.xpose.msra.mxu0 0
      %765 = vmatprep.mubr.bf16.mxu0 0
      %766 = vmatmul.mubr.bf16.gmra.mrb[0].mxu0 %v728
      %v767 = vpop.f32.mrb[0].mxu0
      %v768 = vadd.f32 %v722, %v767
      %v769 = vpop.f32.mrb[0].mxu0
      %v770 = vpop.f32.mrb[0].mxu0
      %v771 = vpop.f32.mrb[0].mxu0
      %772 = vdwg.mxu0
      %v773 = vmul.f32 %v768, 0.17677669
      %v774 = vsel %vm654, %v773, -1e+30
      %v775 = vsel %vm453, %v774, -inf
      %776 = vmax.xlane.f32.xlu0 %v775
      %v777 = vpop.xlane.xlu0 %776
      %v778 = vsub.f32 %v774, %v777
      %v779 = vmul.f32 %v778, 1.442695
      %v780 = vpow.pop %v779
      %v781 = vsel %vm453, %v780, 0.0
      %782 = vadd.xlane.f32.xlu0 %v781
      %v783 = vpop.xlane.xlu0 %782
      %v784 = vrcp.pop %v783
      %v785 = vmul.f32 %v780, %v784
      %v786 = vpack.c.bf16 %v785, %v785
      %788 = vrot.lane.b32.xlu0 %v674, 112
      %v789 = vpop.permute.xlu0 %788
      %v791 = vsel %vm453, %v786, 0
      %v794 = vsel %vm457, %v789, 0
      %796 = vmatprep.subr.bf16.mxu0 0
      %797 = vmatpush1.bf16.msra.mxu0 %v794
      %798 = vmatprep.subr.bf16.mxu0 0
      %799 = vmatpush1.bf16.msra.mxu0 0
      %800 = vmatprep.subr.bf16.mxu0 0
      %801 = vmatpush1.bf16.msra.mxu0 0
      %802 = vmatprep.subr.bf16.mxu0 0
      %803 = vmatpush1.bf16.msra.mxu0 0
      %804 = vmatprep.subr.bf16.mxu0 0
      %805 = vmatpush1.bf16.msra.mxu0 0
      %806 = vmatprep.subr.bf16.mxu0 0
      %807 = vmatpush1.bf16.msra.mxu0 0
      %808 = vmatprep.subr.bf16.mxu0 0
      %809 = vmatpush1.bf16.msra.mxu0 0
      %810 = vmatprep.subr.bf16.mxu0 0
      %811 = vmatpush1.bf16.msra.mxu0 0
      %812 = vmatprep.subr.bf16.mxu0 0
      %813 = vmatpush1.bf16.msra.mxu0 0
      %814 = vmatprep.subr.bf16.mxu0 0
      %815 = vmatpush1.bf16.msra.mxu0 0
      %816 = vmatprep.subr.bf16.mxu0 0
      %817 = vmatpush1.bf16.msra.mxu0 0
      %818 = vmatprep.subr.bf16.mxu0 0
      %819 = vmatpush1.bf16.msra.mxu0 0
      %820 = vmatprep.subr.bf16.mxu0 0
      %821 = vmatpush1.bf16.msra.mxu0 0
      %822 = vmatprep.subr.bf16.mxu0 0
      %823 = vmatpush1.bf16.msra.mxu0 0
      %824 = vmatprep.subr.bf16.mxu0 0
      %825 = vmatpush1.bf16.msra.mxu0 0
      %826 = vmatprep.subr.bf16.mxu0 0
      %827 = vmatpush1.bf16.msra.mxu0 0
      %828 = vmatprep.mubr.bf16.mxu0 0
      %829 = vmatmul.mubr.bf16.gmra.mrb[0].mxu0 %v791
      %v830 = vpop.f32.mrb[0].mxu0
      %v831 = vadd.f32 0.0, %v830
      %v832 = vpop.f32.mrb[0].mxu0
      %v833 = vpop.f32.mrb[0].mxu0
      %v834 = vpop.f32.mrb[0].mxu0
      %835 = vdwg.mxu0
      %836 = vrot.lane.b32.xlu0 %v656, 72
      %v837 = vpop.permute.xlu0 %836
      %839 = vrot.lane.b32.xlu0 %v496, 88
      %v840 = vpop.permute.xlu0 %839
      %v842 = vsel %vm453, %v837, %v840
      %843 = vrot.lane.b32.xlu0 %v626, 48
      %v844 = vpop.permute.xlu0 %843
      %v846 = vmul.f32 %v496, %v844
      %v847 = vmul.f32 %v842, %v627
      %849 = vrot.lane.b32.xlu0 %v847, 48
      %v850 = vpop.permute.xlu0 %849
      %v852 = vadd.f32 %v846, %v850
      %v853 = vpack.c.bf16 %v852, %v852
      %855 = vrot.lane.b32.xlu0 %v853, 80
      %v856 = vpop.permute.xlu0 %855
      %v858 = vsel %vm582, %v856, 0
      %860 = vmatprep.subr.bf16.mxu0 0
      %861 = vmatpush1.bf16.xpose.msra.mxu0 %v685
      %862 = vmatprep.subr.bf16.mxu0 0
      %863 = vmatpush1.bf16.xpose.msra.mxu0 0
      %864 = vmatprep.subr.bf16.mxu0 0
      %865 = vmatpush1.bf16.xpose.msra.mxu0 0
      %866 = vmatprep.subr.bf16.mxu0 0
      %867 = vmatpush1.bf16.xpose.msra.mxu0 0
      %868 = vmatprep.subr.bf16.mxu0 0
      %869 = vmatpush1.bf16.xpose.msra.mxu0 0
      %870 = vmatprep.subr.bf16.mxu0 0
      %871 = vmatpush1.bf16.xpose.msra.mxu0 0
      %872 = vmatprep.subr.bf16.mxu0 0
      %873 = vmatpush1.bf16.xpose.msra.mxu0 0
      %874 = vmatprep.subr.bf16.mxu0 0
      %875 = vmatpush1.bf16.xpose.msra.mxu0 0
      %876 = vmatprep.subr.bf16.mxu0 0
      %877 = vmatpush1.bf16.xpose.msra.mxu0 0
      %878 = vmatprep.subr.bf16.mxu0 0
      %879 = vmatpush1.bf16.xpose.msra.mxu0 0
      %880 = vmatprep.subr.bf16.mxu0 0
      %881 = vmatpush1.bf16.xpose.msra.mxu0 0
      %882 = vmatprep.subr.bf16.mxu0 0
      %883 = vmatpush1.bf16.xpose.msra.mxu0 0
      %884 = vmatprep.subr.bf16.mxu0 0
      %885 = vmatpush1.bf16.xpose.msra.mxu0 0
      %886 = vmatprep.subr.bf16.mxu0 0
      %887 = vmatpush1.bf16.xpose.msra.mxu0 0
      %888 = vmatprep.subr.bf16.mxu0 0
      %889 = vmatpush1.bf16.xpose.msra.mxu0 0
      %890 = vmatprep.subr.bf16.mxu0 0
      %891 = vmatpush1.bf16.xpose.msra.mxu0 0
      %892 = vmatprep.mubr.bf16.mxu0 0
      %893 = vmatmul.mubr.bf16.gmra.mrb[0].mxu0 %v858
      %v894 = vpop.f32.mrb[0].mxu0
      %v895 = vadd.f32 0.0, %v894
      %v896 = vpop.f32.mrb[0].mxu0
      %v897 = vpop.f32.mrb[0].mxu0
      %v898 = vpop.f32.mrb[0].mxu0
      %899 = vdwg.mxu0
      %901 = vrot.lane.b32.xlu0 %v655, 96
      %v902 = vpop.permute.xlu0 %901
      %903 = vrot.lane.b32.xlu0 %v674, 80
      %v904 = vpop.permute.xlu0 %903
      %v906 = vsel %vm582, %v902, 0
      %v909 = vsel %vm582, %v904, 0
      %911 = vmatprep.subr.bf16.mxu0 0
      %912 = vmatpush1.bf16.xpose.msra.mxu0 %v909
      %913 = vmatprep.subr.bf16.mxu0 0
      %914 = vmatpush1.bf16.xpose.msra.mxu0 0
      %915 = vmatprep.subr.bf16.mxu0 0
      %916 = vmatpush1.bf16.xpose.msra.mxu0 0
      %917 = vmatprep.subr.bf16.mxu0 0
      %918 = vmatpush1.bf16.xpose.msra.mxu0 0
      %919 = vmatprep.subr.bf16.mxu0 0
      %920 = vmatpush1.bf16.xpose.msra.mxu0 0
      %921 = vmatprep.subr.bf16.mxu0 0
      %922 = vmatpush1.bf16.xpose.msra.mxu0 0
      %923 = vmatprep.subr.bf16.mxu0 0
      %924 = vmatpush1.bf16.xpose.msra.mxu0 0
      %925 = vmatprep.subr.bf16.mxu0 0
      %926 = vmatpush1.bf16.xpose.msra.mxu0 0
      %927 = vmatprep.subr.bf16.mxu0 0
      %928 = vmatpush1.bf16.xpose.msra.mxu0 0
      %929 = vmatprep.subr.bf16.mxu0 0
      %930 = vmatpush1.bf16.xpose.msra.mxu0 0
      %931 = vmatprep.subr.bf16.mxu0 0
      %932 = vmatpush1.bf16.xpose.msra.mxu0 0
      %933 = vmatprep.subr.bf16.mxu0 0
      %934 = vmatpush1.bf16.xpose.msra.mxu0 0
      %935 = vmatprep.subr.bf16.mxu0 0
      %936 = vmatpush1.bf16.xpose.msra.mxu0 0
      %937 = vmatprep.subr.bf16.mxu0 0
      %938 = vmatpush1.bf16.xpose.msra.mxu0 0
      %939 = vmatprep.subr.bf16.mxu0 0
      %940 = vmatpush1.bf16.xpose.msra.mxu0 0
      %941 = vmatprep.subr.bf16.mxu0 0
      %942 = vmatpush1.bf16.xpose.msra.mxu0 0
      %943 = vmatprep.mubr.bf16.mxu0 0
      %944 = vmatmul.mubr.bf16.gmra.mrb[0].mxu0 %v906
      %v945 = vpop.f32.mrb[0].mxu0
      %v946 = vadd.f32 %v895, %v945
      %v947 = vpop.f32.mrb[0].mxu0
      %v948 = vpop.f32.mrb[0].mxu0
      %v949 = vpop.f32.mrb[0].mxu0
      %950 = vdwg.mxu0
      %v951 = vmul.f32 %v946, 0.17677669
      %v952 = vsel %vm654, %v951, -1e+30
      %v953 = vsel %vm453, %v952, -inf
      %954 = vmax.xlane.f32.xlu0 %v953
      %v955 = vpop.xlane.xlu0 %954
      %v956 = vsub.f32 %v952, %v955
      %v957 = vmul.f32 %v956, 1.442695
      %v958 = vpow.pop %v957
      %v959 = vsel %vm453, %v958, 0.0
      %960 = vadd.xlane.f32.xlu0 %v959
      %v961 = vpop.xlane.xlu0 %960
      %v962 = vrcp.pop %v961
      %v963 = vmul.f32 %v958, %v962
      %v964 = vpack.c.bf16 %v963, %v963
      %965 = vrot.lane.b32.xlu0 %v674, 64
      %v966 = vpop.permute.xlu0 %965
      %v968 = vsel %vm453, %v964, 0
      %v971 = vsel %vm457, %v966, 0
      %973 = vmatprep.subr.bf16.mxu0 0
      %974 = vmatpush1.bf16.msra.mxu0 %v971
      %975 = vmatprep.subr.bf16.mxu0 0
      %976 = vmatpush1.bf16.msra.mxu0 0
      %977 = vmatprep.subr.bf16.mxu0 0
      %978 = vmatpush1.bf16.msra.mxu0 0
      %979 = vmatprep.subr.bf16.mxu0 0
      %980 = vmatpush1.bf16.msra.mxu0 0
      %981 = vmatprep.subr.bf16.mxu0 0
      %982 = vmatpush1.bf16.msra.mxu0 0
      %983 = vmatprep.subr.bf16.mxu0 0
      %984 = vmatpush1.bf16.msra.mxu0 0
      %985 = vmatprep.subr.bf16.mxu0 0
      %986 = vmatpush1.bf16.msra.mxu0 0
      %987 = vmatprep.subr.bf16.mxu0 0
      %988 = vmatpush1.bf16.msra.mxu0 0
      %989 = vmatprep.subr.bf16.mxu0 0
      %990 = vmatpush1.bf16.msra.mxu0 0
      %991 = vmatprep.subr.bf16.mxu0 0
      %992 = vmatpush1.bf16.msra.mxu0 0
      %993 = vmatprep.subr.bf16.mxu0 0
      %994 = vmatpush1.bf16.msra.mxu0 0
      %995 = vmatprep.subr.bf16.mxu0 0
      %996 = vmatpush1.bf16.msra.mxu0 0
      %997 = vmatprep.subr.bf16.mxu0 0
      %998 = vmatpush1.bf16.msra.mxu0 0
      %999 = vmatprep.subr.bf16.mxu0 0
      %1000 = vmatpush1.bf16.msra.mxu0 0
      %1001 = vmatprep.subr.bf16.mxu0 0
      %1002 = vmatpush1.bf16.msra.mxu0 0
      %1003 = vmatprep.subr.bf16.mxu0 0
      %1004 = vmatpush1.bf16.msra.mxu0 0
      %1005 = vmatprep.mubr.bf16.mxu0 0
      %1006 = vmatmul.mubr.bf16.gmra.mrb[0].mxu0 %v968
      %v1007 = vpop.f32.mrb[0].mxu0
      %v1008 = vadd.f32 0.0, %v1007
      %v1009 = vpop.f32.mrb[0].mxu0
      %v1010 = vpop.f32.mrb[0].mxu0
      %v1011 = vpop.f32.mrb[0].mxu0
      %1012 = vdwg.mxu0
      %1014 = vrot.lane.b32.xlu0 %v1008, 32
      %v1015 = vpop.permute.xlu0 %1014
      %vm1017 = vcmask 261120
      %v1018 = vsel %vm1017, %v831, %v1015
      %v1019 = vpack.c.bf16 %v1018, %v1018
      %v1020 = vld [vmem:[%s6] sm:$0xf]
      %v1021 = vld [vmem:[%s6 + $0x4] sm:$0xf]
      %v1022 = vld [vmem:[%s6 + $0x8] sm:$0xf]
      %v1023 = vld [vmem:[%s6 + $0xc] sm:$0xf]
      %v1024 = vld [vmem:[%s6 + $0x10] sm:$0xf]
      %v1025 = vld [vmem:[%s6 + $0x14] sm:$0xf]
      %v1026 = vld [vmem:[%s6 + $0x18] sm:$0xf]
      %v1027 = vld [vmem:[%s6 + $0x1c] sm:$0xf]
      %v1028 = vld [vmem:[%s7] sm:$0x1]
      %v1030 = vlaneseq
      %v1031 = vshrl.u32 %v1030, 7
      %v1032 = vsub.s32 0, %v1031
      %v1033 = vrot.slane %v1028, %v1032
      %v1043 = vunpack.c.l.b16 %v1020
      %v1044 = vunpack.c.l.b16 %v1021
      %v1045 = vunpack.c.l.b16 %v1022
      %v1046 = vunpack.c.l.b16 %v1023
      %v1047 = vunpack.c.l.b16 %v1024
      %v1048 = vunpack.c.l.b16 %v1025
      %v1049 = vunpack.c.l.b16 %v1026
      %v1050 = vunpack.c.l.b16 %v1027
      %v1051 = vpack.c.b16 %v1044, %v1043
      %v1052 = vpack.c.b16 %v1046, %v1045
      %v1053 = vpack.c.b16 %v1048, %v1047
      %v1054 = vpack.c.b16 %v1050, %v1049
      %v1060 = vsel %vm358, %v1019, 0
      %1062 = vmatprep.subr.bf16.mxu0 0
      %1063 = vmatpush1.bf16.msra.mxu0 %v1051
      %1064 = vmatprep.subr.bf16.mxu0 0
      %1065 = vmatpush1.bf16.msra.mxu0 %v1052
      %1066 = vmatprep.subr.bf16.mxu0 0
      %1067 = vmatpush1.bf16.msra.mxu0 %v1053
      %1068 = vmatprep.subr.bf16.mxu0 0
      %1069 = vmatpush1.bf16.msra.mxu0 %v1054
      %1070 = vmatprep.subr.bf16.mxu0 0
      %1071 = vmatpush1.bf16.msra.mxu0 0
      %1072 = vmatprep.subr.bf16.mxu0 0
      %1073 = vmatpush1.bf16.msra.mxu0 0
      %1074 = vmatprep.subr.bf16.mxu0 0
      %1075 = vmatpush1.bf16.msra.mxu0 0
      %1076 = vmatprep.subr.bf16.mxu0 0
      %1077 = vmatpush1.bf16.msra.mxu0 0
      %1078 = vmatprep.subr.bf16.mxu0 0
      %1079 = vmatpush1.bf16.msra.mxu0 0
      %1080 = vmatprep.subr.bf16.mxu0 0
      %1081 = vmatpush1.bf16.msra.mxu0 0
      %1082 = vmatprep.subr.bf16.mxu0 0
      %1083 = vmatpush1.bf16.msra.mxu0 0
      %1084 = vmatprep.subr.bf16.mxu0 0
      %1085 = vmatpush1.bf16.msra.mxu0 0
      %1086 = vmatprep.subr.bf16.mxu0 0
      %1087 = vmatpush1.bf16.msra.mxu0 0
      %1088 = vmatprep.subr.bf16.mxu0 0
      %1089 = vmatpush1.bf16.msra.mxu0 0
      %1090 = vmatprep.subr.bf16.mxu0 0
      %1091 = vmatpush1.bf16.msra.mxu0 0
      %1092 = vmatprep.subr.bf16.mxu0 0
      %1093 = vmatpush1.bf16.msra.mxu0 0
      %1094 = vmatprep.mubr.bf16.mxu0 0
      %1095 = vmatmul.mubr.bf16.gmra.mrb[0].mxu0 %v1060
      %v1096 = vpop.f32.mrb[0].mxu0
      %v1097 = vadd.f32 %v1033, %v1096
      %v1098 = vpop.f32.mrb[0].mxu0
      %v1099 = vpop.f32.mrb[0].mxu0
      %v1100 = vpop.f32.mrb[0].mxu0
      %1101 = vdwg.mxu0
      %v1102 = vadd.f32 %v356, %v1097
      %1103 = vst.msk [vmem:[%s354] sm:$0xff] %vm358, %v1102
      %p1104 = scmp.lt.s32.totalorder %s21, 1
      %s1105 = scalar_select %p1104, %s21, 1
      %s1106 = smul.addr %s1105, 8
      %s1107 = scalar_lea.vmem %s10, %s1106
      // Predicated region
      $region61: #{stock_transformer_forward.7} parent=59 // pred_check
        %p1108 = pneg %p254
      $region62: #{stock_transformer_forward.7} parent=59 // pred_check_branch
        %1110 = sbr.rel (%p1108) target = $region64
      $region63: #{stock_transformer_forward.7} parent=59 // pred_region
        _
      $region64: #{stock_transformer_forward.7} parent=59 // pred_fallthru
        _
    $region60: #{stock_transformer_forward.7} parent=5 // pred_fallthru
      _
    %p1111 = scmp.le.s32.totalorder 2, %s16
    // Predicated region
    $region65: #{stock_transformer_forward.7} parent=5 // pred_check
      %p1112 = pneg %p1111
    $region66: #{stock_transformer_forward.7} parent=5 // pred_check_branch
      %1114 = sbr.rel (%p1112) target = $region68
    $region67: #{stock_transformer_forward.7} parent=5 // pred_region
      %s1115 = ssub.s32 %s16, 2
      // Predicated region
      $region69: #{stock_transformer_forward.7} parent=67 // pred_check
        %p1116 = pneg %p260
      $region70: #{stock_transformer_forward.7} parent=67 // pred_check_branch
        %1118 = sbr.rel (%p1116) target = $region72
      $region71: #{stock_transformer_forward.7} parent=67 // pred_region
        %p1119 = scmp.lt.s32.totalorder %s22, 1
        %s1120 = scalar_select %p1119, %s22, 1
        %s1121 = smul.addr %s1120, 8
        %s1122 = scalar_lea.vmem %s10, %s1121
      $region72: #{stock_transformer_forward.7} parent=67 // pred_fallthru
        _
    $region68: #{stock_transformer_forward.7} parent=5 // pred_fallthru
      _
  $region6: #{stock_transformer_forward.7} parent=0 // loop_footer
    %s20 = sadd.s32 1, %s16
  $region7: #{stock_transformer_forward.7} parent=0 // loop_footer_branch
    %15 = sbr.rel target = $region3
  $region8: #{stock_transformer_forward.7} parent=0 // loop_exit
    _

// kernel: stock_transformer_forward.8
$region0: #{stock_transformer_forward.8}
  #allocation0 [shape = 'u32[]', space=smem, size = 0x4, offset = 0x4, fixed_abs, tag = 'smem constant byte address 0x4 - core index']
  #allocation1 [shape = 'u32[144,128]{1,0:T(1,128)}', space=vmem, size = 0x12000, scoped, tag = 'internal scratch']
  #allocation2 [shape = 'f32[16,64]{1,0:T(8,128)}', space=vmem, size = 0x2000, scoped, tag = 'scratch operand']
  #allocation3 [shape = 'f32[16,4]{1,0:T(8,128)}', space=vmem, size = 0x2000, scoped, tag = 'scratch operand']
  #allocation4 [shape = 'f32[16,64]{1,0:T(8,128)}', space=vmem, size = 0x2000, scoped, tag = 'scratch operand']
  %s0 = inlined_call_operand.vmem [shape: f32[16,64], index: 0, kind: input, shape index: {}]
  %s1 = inlined_call_operand.vmem [shape: f32[1,64], index: 1, kind: input, shape index: {}]
  %s2 = inlined_call_operand.vmem [shape: bf16[64,4], index: 2, kind: input, shape index: {}]
  %s3 = inlined_call_operand.vmem [shape: f32[1,4], index: 3, kind: input, shape index: {}]
  %s4 = inlined_call_operand.vmem [shape: bf16[64,128], index: 4, kind: input, shape index: {}]
  %s5 = inlined_call_operand.vmem [shape: bf16[64,128], index: 5, kind: input, shape index: {}]
  %s6 = inlined_call_operand.vmem [shape: bf16[128,64], index: 6, kind: input, shape index: {}]
  %s7 = inlined_call_operand.vmem [shape: bf16[4,64,32], index: 7, kind: input, shape index: {}]
  %s8 = inlined_call_operand.vmem [shape: bf16[4,64,32], index: 8, kind: input, shape index: {}]
  %s9 = inlined_call_operand.vmem [shape: bf16[4,32,64], index: 9, kind: input, shape index: {}]
  %s10 = inlined_call_operand.vmem [shape: f32[16,64], index: 10, kind: output, shape index: {}]
  %s11 = sld [smem:[#allocation0]]
  $region81: #{stock_transformer_forward.8} parent=0
    _
  %s13 = ssub.s32 1, %s11
  %s14 = scalar_select 0, %s13, %s11
  loop: start=0, step=1, limit=6
  $region2: #{stock_transformer_forward.8} parent=0 // loop_pre_header
    _
  $region3: #{stock_transformer_forward.8} parent=0 // loop_header
    %s16 = sphi 0, %s20
    %p17 = scmp.ge.s32.totalorder %s16, 6
    %s23 = sphi 0, %s35
    %s24 = sphi 0, %s31
    %s25 = sphi 0, %s23
    %s26 = sphi 0, %s24
    %s27 = sphi 0, %s25
    %s28 = sphi 0, %s26
    %s38 = sphi 0, %s40
    %s41 = sphi 0, %s38
    %s42 = sphi 0, %s41
    %s58 = sphi 0, %s42
    %s62 = sphi 0, %s62
    %s64 = sphi 0, %s62
    %s65 = sphi 0, %s64
    %s79 = sphi 0, %s65
    %s83 = sphi 0, %s83
    %s85 = sphi 0, %s83
    %s86 = sphi 0, %s85
    %s100 = sphi 0, %s86
    %s104 = sphi 0, %s104
    %s106 = sphi 0, %s104
    %s107 = sphi 0, %s106
    %s121 = sphi 0, %s107
    %s125 = sphi 0, %s125
    %s127 = sphi 0, %s125
    %s128 = sphi 0, %s127
    %s142 = sphi 0, %s128
    %s146 = sphi 0, %s146
    %s148 = sphi 0, %s146
    %s149 = sphi 0, %s148
    %s163 = sphi 0, %s149
    %s167 = sphi 0, %s167
    %s169 = sphi 0, %s167
    %s170 = sphi 0, %s169
    %s184 = sphi 0, %s170
    %s190 = sphi 0, %s192
    %s193 = sphi 0, %s190
    %s194 = sphi 0, %s193
    %s210 = sphi 0, %s194
    %s216 = sphi 0, %s218
    %s219 = sphi 0, %s216
    %s220 = sphi 0, %s219
    %s236 = sphi 0, %s220
    %s242 = sphi 0, %s244
    %s245 = sphi 0, %s242
    %s246 = sphi 0, %s245
    %s262 = sphi 0, %s246
    %s268 = sphi 0, %s270
    %s271 = sphi 0, %s268
    %s272 = sphi 0, %s271
    %s288 = sphi 0, %s272
  $region4: #{stock_transformer_forward.8} parent=0 // loop_header_branch
    %19 = sbr.rel (%p17) target = $region8
  $region5: #{stock_transformer_forward.8} parent=0 // loop_body
    %s21 = ssub.s32 %s16, 1
    %s22 = ssub.s32 %s16, 2
    %s29 = sadd.s32 1, %s24
    %p30 = scmp.ge.s32.totalorder %s29, 4
    %s31 = scalar_select %p30, 0, %s29
    %s32 = sadd.s32 1, %s23
    %s33 = scalar_select %p30, %s32, %s23
    %p34 = scmp.ge.s32.totalorder %s33, 1
    %s35 = scalar_select %p34, 0, %s33
    %s36 = ssub.s32 %s23, %s35
    %p37 = scmp.eq.s32.totalorder %s36, 0
    %s39 = sadd.s32 %s38, 1
    %s40 = scalar_select %p37, %s38, %s39
    %p43 = pneg %p37
    %p44 = scmp.eq.s32.totalorder %s16, 3
    %p45 = por %p43, %p44
    %p46 = scmp.ne.s32.totalorder %s38, %s41
    %p47 = scmp.eq.s32.totalorder %s16, 0
    %p48 = por %p46, %p47
    %p49 = scmp.ne.s32.totalorder %s38, %s41
    %p50 = scmp.eq.s32.totalorder %s21, 3
    %p51 = por %p49, %p50
    %p52 = scmp.ne.s32.totalorder %s41, %s42
    %p53 = scmp.eq.s32.totalorder %s21, 0
    %p54 = por %p52, %p53
    %p55 = scmp.ne.s32.totalorder %s41, %s42
    %p56 = scmp.eq.s32.totalorder %s22, 3
    %p57 = por %p55, %p56
    %p59 = scmp.ne.s32.totalorder %s42, %s58
    %p60 = scmp.eq.s32.totalorder %s22, 0
    %p61 = por %p59, %p60
    %s63 = sadd.s32 %s62, 1
    %p66 = scmp.eq.s32.totalorder %s16, 3
    %p67 = scmp.ne.s32.totalorder %s62, %s64
    %p68 = scmp.eq.s32.totalorder %s16, 0
    %p69 = por %p67, %p68
    %p70 = scmp.ne.s32.totalorder %s62, %s64
    %p71 = scmp.eq.s32.totalorder %s21, 3
    %p72 = por %p70, %p71
    %p73 = scmp.ne.s32.totalorder %s64, %s65
    %p74 = scmp.eq.s32.totalorder %s21, 0
    %p75 = por %p73, %p74
    %p76 = scmp.ne.s32.totalorder %s64, %s65
    %p77 = scmp.eq.s32.totalorder %s22, 3
    %p78 = por %p76, %p77
    %p80 = scmp.ne.s32.totalorder %s65, %s79
    %p81 = scmp.eq.s32.totalorder %s22, 0
    %p82 = por %p80, %p81
    %s84 = sadd.s32 %s83, 1
    %p87 = scmp.eq.s32.totalorder %s16, 3
    %p88 = scmp.ne.s32.totalorder %s83, %s85
    %p89 = scmp.eq.s32.totalorder %s16, 0
    %p90 = por %p88, %p89
    %p91 = scmp.ne.s32.totalorder %s83, %s85
    %p92 = scmp.eq.s32.totalorder %s21, 3
    %p93 = por %p91, %p92
    %p94 = scmp.ne.s32.totalorder %s85, %s86
    %p95 = scmp.eq.s32.totalorder %s21, 0
    %p96 = por %p94, %p95
    %p97 = scmp.ne.s32.totalorder %s85, %s86
    %p98 = scmp.eq.s32.totalorder %s22, 3
    %p99 = por %p97, %p98
    %p101 = scmp.ne.s32.totalorder %s86, %s100
    %p102 = scmp.eq.s32.totalorder %s22, 0
    %p103 = por %p101, %p102
    %s105 = sadd.s32 %s104, 1
    %p108 = scmp.eq.s32.totalorder %s16, 3
    %p109 = scmp.ne.s32.totalorder %s104, %s106
    %p110 = scmp.eq.s32.totalorder %s16, 0
    %p111 = por %p109, %p110
    %p112 = scmp.ne.s32.totalorder %s104, %s106
    %p113 = scmp.eq.s32.totalorder %s21, 3
    %p114 = por %p112, %p113
    %p115 = scmp.ne.s32.totalorder %s106, %s107
    %p116 = scmp.eq.s32.totalorder %s21, 0
    %p117 = por %p115, %p116
    %p118 = scmp.ne.s32.totalorder %s106, %s107
    %p119 = scmp.eq.s32.totalorder %s22, 3
    %p120 = por %p118, %p119
    %p122 = scmp.ne.s32.totalorder %s107, %s121
    %p123 = scmp.eq.s32.totalorder %s22, 0
    %p124 = por %p122, %p123
    %s126 = sadd.s32 %s125, 1
    %p129 = scmp.eq.s32.totalorder %s16, 3
    %p130 = scmp.ne.s32.totalorder %s125, %s127
    %p131 = scmp.eq.s32.totalorder %s16, 0
    %p132 = por %p130, %p131
    %p133 = scmp.ne.s32.totalorder %s125, %s127
    %p134 = scmp.eq.s32.totalorder %s21, 3
    %p135 = por %p133, %p134
    %p136 = scmp.ne.s32.totalorder %s127, %s128
    %p137 = scmp.eq.s32.totalorder %s21, 0
    %p138 = por %p136, %p137
    %p139 = scmp.ne.s32.totalorder %s127, %s128
    %p140 = scmp.eq.s32.totalorder %s22, 3
    %p141 = por %p139, %p140
    %p143 = scmp.ne.s32.totalorder %s128, %s142
    %p144 = scmp.eq.s32.totalorder %s22, 0
    %p145 = por %p143, %p144
    %s147 = sadd.s32 %s146, 1
    %p150 = scmp.eq.s32.totalorder %s16, 3
    %p151 = scmp.ne.s32.totalorder %s146, %s148
    %p152 = scmp.eq.s32.totalorder %s16, 0
    %p153 = por %p151, %p152
    %p154 = scmp.ne.s32.totalorder %s146, %s148
    %p155 = scmp.eq.s32.totalorder %s21, 3
    %p156 = por %p154, %p155
    %p157 = scmp.ne.s32.totalorder %s148, %s149
    %p158 = scmp.eq.s32.totalorder %s21, 0
    %p159 = por %p157, %p158
    %p160 = scmp.ne.s32.totalorder %s148, %s149
    %p161 = scmp.eq.s32.totalorder %s22, 3
    %p162 = por %p160, %p161
    %p164 = scmp.ne.s32.totalorder %s149, %s163
    %p165 = scmp.eq.s32.totalorder %s22, 0
    %p166 = por %p164, %p165
    %s168 = sadd.s32 %s167, 1
    %p171 = scmp.eq.s32.totalorder %s16, 3
    %p172 = scmp.ne.s32.totalorder %s167, %s169
    %p173 = scmp.eq.s32.totalorder %s16, 0
    %p174 = por %p172, %p173
    %p175 = scmp.ne.s32.totalorder %s167, %s169
    %p176 = scmp.eq.s32.totalorder %s21, 3
    %p177 = por %p175, %p176
    %p178 = scmp.ne.s32.totalorder %s169, %s170
    %p179 = scmp.eq.s32.totalorder %s21, 0
    %p180 = por %p178, %p179
    %p181 = scmp.ne.s32.totalorder %s169, %s170
    %p182 = scmp.eq.s32.totalorder %s22, 3
    %p183 = por %p181, %p182
    %p185 = scmp.ne.s32.totalorder %s170, %s184
    %p186 = scmp.eq.s32.totalorder %s22, 0
    %p187 = por %p185, %p186
    %s188 = ssub.s32 %s24, %s31
    %p189 = scmp.eq.s32.totalorder %s188, 0
    %s191 = sadd.s32 %s190, 1
    %s192 = scalar_select %p189, %s190, %s191
    %p195 = pneg %p189
    %p196 = scmp.eq.s32.totalorder %s16, 3
    %p197 = por %p195, %p196
    %p198 = scmp.ne.s32.totalorder %s190, %s193
    %p199 = scmp.eq.s32.totalorder %s16, 0
    %p200 = por %p198, %p199
    %p201 = scmp.ne.s32.totalorder %s190, %s193
    %p202 = scmp.eq.s32.totalorder %s21, 3
    %p203 = por %p201, %p202
    %p204 = scmp.ne.s32.totalorder %s193, %s194
    %p205 = scmp.eq.s32.totalorder %s21, 0
    %p206 = por %p204, %p205
    %p207 = scmp.ne.s32.totalorder %s193, %s194
    %p208 = scmp.eq.s32.totalorder %s22, 3
    %p209 = por %p207, %p208
    %p211 = scmp.ne.s32.totalorder %s194, %s210
    %p212 = scmp.eq.s32.totalorder %s22, 0
    %p213 = por %p211, %p212
    %s214 = ssub.s32 %s24, %s31
    %p215 = scmp.eq.s32.totalorder %s214, 0
    %s217 = sadd.s32 %s216, 1
    %s218 = scalar_select %p215, %s216, %s217
    %p221 = pneg %p215
    %p222 = scmp.eq.s32.totalorder %s16, 3
    %p223 = por %p221, %p222
    %p224 = scmp.ne.s32.totalorder %s216, %s219
    %p225 = scmp.eq.s32.totalorder %s16, 0
    %p226 = por %p224, %p225
    %p227 = scmp.ne.s32.totalorder %s216, %s219
    %p228 = scmp.eq.s32.totalorder %s21, 3
    %p229 = por %p227, %p228
    %p230 = scmp.ne.s32.totalorder %s219, %s220
    %p231 = scmp.eq.s32.totalorder %s21, 0
    %p232 = por %p230, %p231
    %p233 = scmp.ne.s32.totalorder %s219, %s220
    %p234 = scmp.eq.s32.totalorder %s22, 3
    %p235 = por %p233, %p234
    %p237 = scmp.ne.s32.totalorder %s220, %s236
    %p238 = scmp.eq.s32.totalorder %s22, 0
    %p239 = por %p237, %p238
    %s240 = ssub.s32 %s24, %s31
    %p241 = scmp.eq.s32.totalorder %s240, 0
    %s243 = sadd.s32 %s242, 1
    %s244 = scalar_select %p241, %s242, %s243
    %p247 = pneg %p241
    %p248 = scmp.eq.s32.totalorder %s16, 3
    %p249 = por %p247, %p248
    %p250 = scmp.ne.s32.totalorder %s242, %s245
    %p251 = scmp.eq.s32.totalorder %s16, 0
    %p252 = por %p250, %p251
    %p253 = scmp.ne.s32.totalorder %s242, %s245
    %p254 = scmp.eq.s32.totalorder %s21, 3
    %p255 = por %p253, %p254
    %p256 = scmp.ne.s32.totalorder %s245, %s246
    %p257 = scmp.eq.s32.totalorder %s21, 0
    %p258 = por %p256, %p257
    %p259 = scmp.ne.s32.totalorder %s245, %s246
    %p260 = scmp.eq.s32.totalorder %s22, 3
    %p261 = por %p259, %p260
    %p263 = scmp.ne.s32.totalorder %s246, %s262
    %p264 = scmp.eq.s32.totalorder %s22, 0
    %p265 = por %p263, %p264
    %s266 = ssub.s32 %s23, %s35
    %p267 = scmp.eq.s32.totalorder %s266, 0
    %s269 = sadd.s32 %s268, 1
    %s270 = scalar_select %p267, %s268, %s269
    %p273 = pneg %p267
    %p274 = scmp.eq.s32.totalorder %s16, 3
    %p275 = por %p273, %p274
    %p276 = scmp.ne.s32.totalorder %s268, %s271
    %p277 = scmp.eq.s32.totalorder %s16, 0
    %p278 = por %p276, %p277
    %p279 = scmp.ne.s32.totalorder %s268, %s271
    %p280 = scmp.eq.s32.totalorder %s21, 3
    %p281 = por %p279, %p280
    %p282 = scmp.ne.s32.totalorder %s271, %s272
    %p283 = scmp.eq.s32.totalorder %s21, 0
    %p284 = por %p282, %p283
    %p285 = scmp.ne.s32.totalorder %s271, %s272
    %p286 = scmp.eq.s32.totalorder %s22, 3
    %p287 = por %p285, %p286
    %p289 = scmp.ne.s32.totalorder %s272, %s288
    %p290 = scmp.eq.s32.totalorder %s22, 0
    %p291 = por %p289, %p290
    %p292 = scmp.le.s32.totalorder 1, %s16
    %p293 = scmp.lt.s32.totalorder %s16, 5
    %p294 = pnand %p292, %p293
    %p295 = pneg %p294
    // Predicated region
    $region9: #{stock_transformer_forward.8} parent=5 // pred_check
      _
    $region10: #{stock_transformer_forward.8} parent=5 // pred_check_branch
      %297 = sbr.rel (%p294) target = $region12
    $region11: #{stock_transformer_forward.8} parent=5 // pred_region
      %s298 = ssub.s32 %s16, 1
      // Predicated region
      $region13: #{stock_transformer_forward.8} parent=11 // pred_check
        %p299 = pneg %p54
      $region14: #{stock_transformer_forward.8} parent=11 // pred_check_branch
        %301 = sbr.rel (%p299) target = $region16
      $region15: #{stock_transformer_forward.8} parent=11 // pred_region
        %s302 = smul.u32 2, %s25
        %p303 = scmp.lt.s32.totalorder %s302, 1
        %s304 = scalar_select %p303, %s302, 1
        %s305 = smul.addr %s304, 8
        %s306 = scalar_lea.vmem %s0, %s305
        %s307 = smul.u32 2, %s25
      $region16: #{stock_transformer_forward.8} parent=11 // pred_fallthru
        _
      // Predicated region
      $region17: #{stock_transformer_forward.8} parent=11 // pred_check
        %p308 = pneg %p75
      $region18: #{stock_transformer_forward.8} parent=11 // pred_check_branch
        %310 = sbr.rel (%p308) target = $region20
      $region19: #{stock_transformer_forward.8} parent=11 // pred_region
        _
      $region20: #{stock_transformer_forward.8} parent=11 // pred_fallthru
        _
      // Predicated region
      $region21: #{stock_transformer_forward.8} parent=11 // pred_check
        %p311 = pneg %p96
      $region22: #{stock_transformer_forward.8} parent=11 // pred_check_branch
        %313 = sbr.rel (%p311) target = $region24
      $region23: #{stock_transformer_forward.8} parent=11 // pred_region
        _
      $region24: #{stock_transformer_forward.8} parent=11 // pred_fallthru
        _
      // Predicated region
      $region25: #{stock_transformer_forward.8} parent=11 // pred_check
        %p314 = pneg %p117
      $region26: #{stock_transformer_forward.8} parent=11 // pred_check_branch
        %316 = sbr.rel (%p314) target = $region28
      $region27: #{stock_transformer_forward.8} parent=11 // pred_region
        _
      $region28: #{stock_transformer_forward.8} parent=11 // pred_fallthru
        _
      // Predicated region
      $region29: #{stock_transformer_forward.8} parent=11 // pred_check
        %p317 = pneg %p138
      $region30: #{stock_transformer_forward.8} parent=11 // pred_check_branch
        %319 = sbr.rel (%p317) target = $region32
      $region31: #{stock_transformer_forward.8} parent=11 // pred_region
        _
      $region32: #{stock_transformer_forward.8} parent=11 // pred_fallthru
        _
      // Predicated region
      $region33: #{stock_transformer_forward.8} parent=11 // pred_check
        %p320 = pneg %p159
      $region34: #{stock_transformer_forward.8} parent=11 // pred_check_branch
        %322 = sbr.rel (%p320) target = $region36
      $region35: #{stock_transformer_forward.8} parent=11 // pred_region
        _
      $region36: #{stock_transformer_forward.8} parent=11 // pred_fallthru
        _
      // Predicated region
      $region37: #{stock_transformer_forward.8} parent=11 // pred_check
        %p323 = pneg %p180
      $region38: #{stock_transformer_forward.8} parent=11 // pred_check_branch
        %325 = sbr.rel (%p323) target = $region40
      $region39: #{stock_transformer_forward.8} parent=11 // pred_region
        _
      $region40: #{stock_transformer_forward.8} parent=11 // pred_fallthru
        _
    $region12: #{stock_transformer_forward.8} parent=5 // pred_fallthru
      _
    %p326 = scmp.lt.s32.totalorder %s16, 4
    // Predicated region
    $region41: #{stock_transformer_forward.8} parent=5 // pred_check
      %p327 = pneg %p326
    $region42: #{stock_transformer_forward.8} parent=5 // pred_check_branch
      %329 = sbr.rel (%p327) target = $region44
    $region43: #{stock_transformer_forward.8} parent=5 // pred_region
      // Predicated region
      $region45: #{stock_transformer_forward.8} parent=43 // pred_check
        %p330 = pneg %p200
      $region46: #{stock_transformer_forward.8} parent=43 // pred_check_branch
        %332 = sbr.rel (%p330) target = $region48
      $region47: #{stock_transformer_forward.8} parent=43 // pred_region
        %p333 = scmp.lt.s32.totalorder %s24, 3
        %s334 = scalar_select %p333, %s24, 3
        %s335 = smul.addr %s334, 8
        %s336 = smul.addr %s335, 4
        %s337 = scalar_lea.vmem %s7, %s336
      $region48: #{stock_transformer_forward.8} parent=43 // pred_fallthru
        _
      // Predicated region
      $region49: #{stock_transformer_forward.8} parent=43 // pred_check
        %p338 = pneg %p226
      $region50: #{stock_transformer_forward.8} parent=43 // pred_check_branch
        %340 = sbr.rel (%p338) target = $region52
      $region51: #{stock_transformer_forward.8} parent=43 // pred_region
        %p341 = scmp.lt.s32.totalorder %s24, 3
        %s342 = scalar_select %p341, %s24, 3
        %s343 = smul.addr %s342, 8
        %s344 = smul.addr %s343, 4
        %s345 = scalar_lea.vmem %s8, %s344
      $region52: #{stock_transformer_forward.8} parent=43 // pred_fallthru
        _
      // Predicated region
      $region53: #{stock_transformer_forward.8} parent=43 // pred_check
        %p346 = pneg %p252
      $region54: #{stock_transformer_forward.8} parent=43 // pred_check_branch
        %348 = sbr.rel (%p346) target = $region56
      $region55: #{stock_transformer_forward.8} parent=43 // pred_region
        %p349 = scmp.lt.s32.totalorder %s24, 3
        %s350 = scalar_select %p349, %s24, 3
        %s351 = smul.addr %s350, 4
        %s352 = smul.addr %s351, 4
        %s353 = scalar_lea.vmem %s9, %s352
      $region56: #{stock_transformer_forward.8} parent=43 // pred_fallthru
        _
    $region44: #{stock_transformer_forward.8} parent=5 // pred_fallthru
      _
    %p354 = scmp.le.s32.totalorder 1, %s16
    %p355 = scmp.lt.s32.totalorder %s16, 5
    %p356 = pnand %p354, %p355
    %p357 = pneg %p356
    // Predicated region
    $region57: #{stock_transformer_forward.8} parent=5 // pred_check
      _
    $region58: #{stock_transformer_forward.8} parent=5 // pred_check_branch
      %359 = sbr.rel (%p356) target = $region60
    $region59: #{stock_transformer_forward.8} parent=5 // pred_region
      %s360 = ssub.s32 %s16, 1
      %s361 = smul.u32 2, %s25
      %p362 = scmp.lt.s32.totalorder %s361, 1
      %s363 = scalar_select %p362, %s361, 1
      %s364 = smul.addr %s363, 8
      %s365 = scalar_lea.vmem %s0, %s364
      %p366 = pneg %p54
      %p367 = pneg %p51
      %p368 = pneg %p75
      %p369 = pneg %p72
      %p370 = pneg %p96
      %p371 = pneg %p93
      %p372 = pneg %p117
      %p373 = pneg %p114
      %p374 = pneg %p138
      %p375 = pneg %p135
      %p376 = pneg %p159
      %p377 = pneg %p156
      %p378 = pneg %p180
      %p379 = pneg %p177
      %p380 = scmp.lt.s32.totalorder %s26, 3
      %s381 = scalar_select %p380, %s26, 3
      %s382 = smul.addr %s381, 8
      %s383 = smul.addr %s382, 4
      %s384 = scalar_lea.vmem %s7, %s383
      %p385 = pneg %p206
      %p386 = pneg %p203
      %p387 = scmp.lt.s32.totalorder %s26, 3
      %s388 = scalar_select %p387, %s26, 3
      %s389 = smul.addr %s388, 8
      %s390 = smul.addr %s389, 4
      %s391 = scalar_lea.vmem %s8, %s390
      %p392 = pneg %p232
      %p393 = pneg %p229
      %p394 = scmp.lt.s32.totalorder %s26, 3
      %s395 = scalar_select %p394, %s26, 3
      %s396 = smul.addr %s395, 4
      %s397 = smul.addr %s396, 4
      %s398 = scalar_lea.vmem %s9, %s397
      %p399 = pneg %p258
      %p400 = pneg %p255
      %p401 = pneg %p284
      %p402 = pneg %p281
      %s403 = smul.u32 2, %s25
      %p404 = scmp.lt.s32.totalorder %s403, 1
      %s405 = scalar_select %p404, %s403, 1
      %s406 = smul.addr %s405, 8
      %s407 = scalar_lea.vmem %s10, %s406
      %s408 = smul.u32 2, %s25
      %p409 = scmp.lt.s32.totalorder %s408, 1
      %s410 = scalar_select %p409, %s408, 1
      %s411 = smul.addr %s410, 8
      %s412 = scalar_lea.vmem %s0, %s411
      %s413 = smul.u32 2, %s25
      %p414 = scmp.lt.s32.totalorder %s26, 3
      %s415 = scalar_select %p414, %s26, 3
      %s416 = smul.addr %s415, 8
      %s417 = smul.addr %s416, 4
      %s418 = scalar_lea.vmem %s7, %s417
      %p419 = scmp.lt.s32.totalorder %s26, 3
      %s420 = scalar_select %p419, %s26, 3
      %s421 = smul.addr %s420, 8
      %s422 = smul.addr %s421, 4
      %s423 = scalar_lea.vmem %s8, %s422
      %p424 = scmp.lt.s32.totalorder %s26, 3
      %s425 = scalar_select %p424, %s26, 3
      %s426 = smul.addr %s425, 4
      %s427 = smul.addr %s426, 4
      %s428 = scalar_lea.vmem %s9, %s427
      %s429 = smul.u32 2, %s25
      %p430 = scmp.lt.s32.totalorder %s429, 1
      %s431 = scalar_select %p430, %s429, 1
      %s432 = smul.addr %s431, 8
      %s433 = scalar_lea.vmem %s10, %s432
      %s434 = smul.u32 2, %s25
      %p436 = scmp.eq.s32.totalorder %s26, 0
      // Predicated region
      $region61: #{stock_transformer_forward.8} parent=59 // pred_check
        %p437 = pneg %p436
      $region62: #{stock_transformer_forward.8} parent=59 // pred_check_branch
        %439 = sbr.rel (%p437) target = $region64
      $region63: #{stock_transformer_forward.8} parent=59 // pred_region
        %v440 = vld [vmem:[%s412] sm:$0xff]
        %v441 = vld [vmem:[%s412 + $0x8] sm:$0xff]
        %v442 = vmul.f32 %v440, %v440
        %v443 = vmul.f32 %v441, %v441
        %vm444 = vcmask 523264
        %v445 = vsel %vm444, %v442, 0.0
        %446 = vadd.xlane.f32.xlu0 %v445
        %v447 = vpop.xlane.xlu0 %446
        %v448 = vsel %vm444, %v443, 0.0
        %449 = vadd.xlane.f32.xlu0 %v448
        %v450 = vpop.xlane.xlu0 %449
        %v451 = vrcp.pop 64.0
        %v452 = vmul.f32 %v447, %v451
        %v453 = vmul.f32 %v450, %v451
        %v454 = vadd.f32 %v452, 1e-06
        %v455 = vadd.f32 %v453, 1e-06
        %v456 = vrsqrt.pop %v454
        %v457 = vrsqrt.pop %v455
        %v458 = vmul.f32 %v440, %v456
        %v459 = vmul.f32 %v441, %v457
        %v460 = vld [vmem:[%s1] sm:$0x1]
        %v462 = vlaneseq
        %v463 = vshrl.u32 %v462, 7
        %v464 = vsub.s32 0, %v463
        %v465 = vrot.slane %v460, %v464
        %v467 = vmul.f32 %v458, %v465
        %v468 = vmul.f32 %v459, %v465
        %469 = vst.msk [vmem:[#allocation2] sm:$0xff] %vm444, %v467
        %470 = vst.msk [vmem:[#allocation2 + $0x8] sm:$0xff] %vm444, %v468
        %v471 = vpack.c.bf16 %v468, %v467
        %v472 = vld [vmem:[%s2] sm:$0xf]
        %v473 = vld [vmem:[%s2 + $0x4] sm:$0xf]
        %v474 = vld [vmem:[%s2 + $0x8] sm:$0xf]
        %v475 = vld [vmem:[%s2 + $0xc] sm:$0xf]
        %v476 = vld [vmem:[%s2 + $0x10] sm:$0xf]
        %v477 = vld [vmem:[%s2 + $0x14] sm:$0xf]
        %v478 = vld [vmem:[%s2 + $0x18] sm:$0xf]
        %v479 = vld [vmem:[%s2 + $0x1c] sm:$0xf]
        %v480 = vld [vmem:[%s3] sm:$0x1]
        %v482 = vlaneseq
        %v483 = vshrl.u32 %v482, 7
        %v484 = vsub.s32 0, %v483
        %v485 = vrot.slane %v480, %v484
        %v495 = vunpack.c.l.b16 %v472
        %v496 = vunpack.c.l.b16 %v473
        %v497 = vunpack.c.l.b16 %v474
        %v498 = vunpack.c.l.b16 %v475
        %v499 = vunpack.c.l.b16 %v476
        %v500 = vunpack.c.l.b16 %v477
        %v501 = vunpack.c.l.b16 %v478
        %v502 = vunpack.c.l.b16 %v479
        %v503 = vpack.c.b16 %v496, %v495
        %v504 = vpack.c.b16 %v498, %v497
        %v505 = vpack.c.b16 %v500, %v499
        %v506 = vpack.c.b16 %v502, %v501
        %v512 = vsel %vm444, %v471, 0
        %514 = vmatprep.subr.bf16.mxu0 0
        %515 = vmatpush1.bf16.msra.mxu0 %v503
        %516 = vmatprep.subr.bf16.mxu0 0
        %517 = vmatpush1.bf16.msra.mxu0 %v504
        %518 = vmatprep.subr.bf16.mxu0 0
        %519 = vmatpush1.bf16.msra.mxu0 %v505
        %520 = vmatprep.subr.bf16.mxu0 0
        %521 = vmatpush1.bf16.msra.mxu0 %v506
        %522 = vmatprep.subr.bf16.mxu0 0
        %523 = vmatpush1.bf16.msra.mxu0 0
        %524 = vmatprep.subr.bf16.mxu0 0
        %525 = vmatpush1.bf16.msra.mxu0 0
        %526 = vmatprep.subr.bf16.mxu0 0
        %527 = vmatpush1.bf16.msra.mxu0 0
        %528 = vmatprep.subr.bf16.mxu0 0
        %529 = vmatpush1.bf16.msra.mxu0 0
        %530 = vmatprep.subr.bf16.mxu0 0
        %531 = vmatpush1.bf16.msra.mxu0 0
        %532 = vmatprep.subr.bf16.mxu0 0
        %533 = vmatpush1.bf16.msra.mxu0 0
        %534 = vmatprep.subr.bf16.mxu0 0
        %535 = vmatpush1.bf16.msra.mxu0 0
        %536 = vmatprep.subr.bf16.mxu0 0
        %537 = vmatpush1.bf16.msra.mxu0 0
        %538 = vmatprep.subr.bf16.mxu0 0
        %539 = vmatpush1.bf16.msra.mxu0 0
        %540 = vmatprep.subr.bf16.mxu0 0
        %541 = vmatpush1.bf16.msra.mxu0 0
        %542 = vmatprep.subr.bf16.mxu0 0
        %543 = vmatpush1.bf16.msra.mxu0 0
        %544 = vmatprep.subr.bf16.mxu0 0
        %545 = vmatpush1.bf16.msra.mxu0 0
        %546 = vmatprep.mubr.bf16.mxu0 0
        %547 = vmatmul.mubr.bf16.gmra.mrb[0].mxu0 %v512
        %v548 = vpop.f32.mrb[0].mxu0
        %v549 = vadd.f32 %v485, %v548
        %v550 = vpop.f32.mrb[0].mxu0
        %v551 = vpop.f32.mrb[0].mxu0
        %v552 = vadd.f32 %v485, %v551
        %v553 = vpop.f32.mrb[0].mxu0
        %554 = vdwg.mxu0
        %vm555 = vcmask 31744
        %v556 = vsel %vm555, %v549, -inf
        %557 = vmax.xlane.f32.xlu0 %v556
        %v558 = vpop.xlane.xlu0 %557
        %v559 = vsel %vm555, %v552, -inf
        %560 = vmax.xlane.f32.xlu0 %v559
        %v561 = vpop.xlane.xlu0 %560
        %v562 = vsub.f32 %v549, %v558
        %v563 = vsub.f32 %v552, %v561
        %v564 = vmul.f32 %v562, 1.442695
        %v565 = vpow.pop %v564
        %v566 = vmul.f32 %v563, 1.442695
        %v567 = vpow.pop %v566
        %v568 = vsel %vm555, %v565, 0.0
        %569 = vadd.xlane.f32.xlu0 %v568
        %v570 = vpop.xlane.xlu0 %569
        %v571 = vsel %vm555, %v567, 0.0
        %572 = vadd.xlane.f32.xlu0 %v571
        %v573 = vpop.xlane.xlu0 %572
        %v574 = vrcp.pop %v570
        %v575 = vmul.f32 %v565, %v574
        %v576 = vrcp.pop %v573
        %v577 = vmul.f32 %v567, %v576
        %v578 = vlaneseq
        %v579 = vand.u32 %v578, 127
        %581 = vset.pattern.permute.xlu0 0
        %582 = vperm.xlu0 %581, %v575
        %v583 = vpop.permute.xlu0 %582
        %586 = vset.pattern.permute.xlu0 0
        %587 = vperm.xlu0 %586, %v577
        %v588 = vpop.permute.xlu0 %587
        %vm590 = vcmp.gt.f32.partialorder %v583, %v575
        %vm591 = vcmp.gt.f32.partialorder %v588, %v577
        %vm592 = vcmp.eq.f32.partialorder %v583, %v575
        %vm593 = vcmp.eq.f32.partialorder %v588, %v577
        %vm594 = vcmp.gt.s32.totalorder %v579, 0
        %vm595 = vmand %vm592, %vm594
        %vm596 = vmand %vm593, %vm594
        %vm597 = vmor %vm590, %vm595
        %vm598 = vmor %vm591, %vm596
        %v599 = vsel %vm597, 1, 0
        %v600 = vsel %vm598, 1, 0
        %v601 = vcvt.s32.f32 %v599
        %v602 = vcvt.s32.f32 %v600
        %v603 = vadd.f32 %v601, 0.0
        %v604 = vadd.f32 %v602, 0.0
        %605 = vset.pattern.permute.xlu0 1
        %606 = vperm.xlu0 %605, %v575
        %v607 = vpop.permute.xlu0 %606
        %609 = vset.pattern.permute.xlu0 1
        %610 = vperm.xlu0 %609, %v577
        %v611 = vpop.permute.xlu0 %610
        %vm613 = vcmp.gt.f32.partialorder %v607, %v575
        %vm614 = vcmp.gt.f32.partialorder %v611, %v577
        %vm615 = vcmp.eq.f32.partialorder %v607, %v575
        %vm616 = vcmp.eq.f32.partialorder %v611, %v577
        %vm617 = vcmp.gt.s32.totalorder %v579, 1
        %vm618 = vmand %vm615, %vm617
        %vm619 = vmand %vm616, %vm617
        %vm620 = vmor %vm613, %vm618
        %vm621 = vmor %vm614, %vm619
        %v622 = vsel %vm620, 1, 0
        %v623 = vsel %vm621, 1, 0
        %v624 = vcvt.s32.f32 %v622
        %v625 = vcvt.s32.f32 %v623
        %v626 = vadd.f32 %v603, %v624
        %v627 = vadd.f32 %v604, %v625
        %628 = vset.pattern.permute.xlu0 2
        %629 = vperm.xlu0 %628, %v575
        %v630 = vpop.permute.xlu0 %629
        %632 = vset.pattern.permute.xlu0 2
        %633 = vperm.xlu0 %632, %v577
        %v634 = vpop.permute.xlu0 %633
        %vm636 = vcmp.gt.f32.partialorder %v630, %v575
        %vm637 = vcmp.gt.f32.partialorder %v634, %v577
        %vm638 = vcmp.eq.f32.partialorder %v630, %v575
        %vm639 = vcmp.eq.f32.partialorder %v634, %v577
        %vm640 = vcmp.gt.s32.totalorder %v579, 2
        %vm641 = vmand %vm638, %vm640
        %vm642 = vmand %vm639, %vm640
        %vm643 = vmor %vm636, %vm641
        %vm644 = vmor %vm637, %vm642
        %v645 = vsel %vm643, 1, 0
        %v646 = vsel %vm644, 1, 0
        %v647 = vcvt.s32.f32 %v645
        %v648 = vcvt.s32.f32 %v646
        %v649 = vadd.f32 %v626, %v647
        %v650 = vadd.f32 %v627, %v648
        %651 = vset.pattern.permute.xlu0 3
        %652 = vperm.xlu0 %651, %v575
        %v653 = vpop.permute.xlu0 %652
        %655 = vset.pattern.permute.xlu0 3
        %656 = vperm.xlu0 %655, %v577
        %v657 = vpop.permute.xlu0 %656
        %vm659 = vcmp.gt.f32.partialorder %v653, %v575
        %vm660 = vcmp.gt.f32.partialorder %v657, %v577
        %vm661 = vcmp.eq.f32.partialorder %v653, %v575
        %vm662 = vcmp.eq.f32.partialorder %v657, %v577
        %vm663 = vcmp.gt.s32.totalorder %v579, 3
        %vm664 = vmand %vm661, %vm663
        %vm665 = vmand %vm662, %vm663
        %vm666 = vmor %vm659, %vm664
        %vm667 = vmor %vm660, %vm665
        %v668 = vsel %vm666, 1, 0
        %v669 = vsel %vm667, 1, 0
        %v670 = vcvt.s32.f32 %v668
        %v671 = vcvt.s32.f32 %v669
        %v672 = vadd.f32 %v649, %v670
        %v673 = vadd.f32 %v650, %v671
        %vm674 = vcmp.lt.f32.partialorder %v672, 2.0
        %vm675 = vcmp.lt.f32.partialorder %v673, 2.0
        %v676 = vsel %vm674, 1, 0
        %v677 = vsel %vm675, 1, 0
        %v678 = vcvt.s32.f32 %v676
        %v679 = vcvt.s32.f32 %v677
        %v680 = vmul.f32 %v575, %v678
        %v681 = vmul.f32 %v577, %v679
        %v682 = vsel %vm555, %v680, 0.0
        %683 = vadd.xlane.f32.xlu0 %v682
        %v684 = vpop.xlane.xlu0 %683
        %v685 = vsel %vm555, %v681, 0.0
        %686 = vadd.xlane.f32.xlu0 %v685
        %v687 = vpop.xlane.xlu0 %686
        %v688 = vrcp.pop %v684
        %v689 = vmul.f32 %v680, %v688
        %v690 = vrcp.pop %v687
        %v691 = vmul.f32 %v681, %v690
        %692 = vst.msk [vmem:[#allocation3] sm:$0xff] %vm555, %v689
        %693 = vst.msk [vmem:[#allocation3 + $0x8] sm:$0xff] %vm555, %v691
        %v694 = vld [vmem:[%s4] sm:$0xf]
        %v695 = vld [vmem:[%s4 + $0x4] sm:$0xf]
        %v696 = vld [vmem:[%s4 + $0x8] sm:$0xf]
        %v697 = vld [vmem:[%s4 + $0xc] sm:$0xf]
        %v698 = vld [vmem:[%s4 + $0x10] sm:$0xf]
        %v699 = vld [vmem:[%s4 + $0x14] sm:$0xf]
        %v700 = vld [vmem:[%s4 + $0x18] sm:$0xf]
        %v701 = vld [vmem:[%s4 + $0x1c] sm:$0xf]
        %v710 = vunpack.c.l.b16 %v694
        %v711 = vunpack.c.l.b16 %v695
        %v712 = vunpack.c.l.b16 %v696
        %v713 = vunpack.c.l.b16 %v697
        %v714 = vunpack.c.l.b16 %v698
        %v715 = vunpack.c.l.b16 %v699
        %v716 = vunpack.c.l.b16 %v700
        %v717 = vunpack.c.l.b16 %v701
        %v718 = vpack.c.b16 %v711, %v710
        %v719 = vpack.c.b16 %v713, %v712
        %v720 = vpack.c.b16 %v715, %v714
        %v721 = vpack.c.b16 %v717, %v716
        %726 = vmatprep.subr.bf16.mxu0 0
        %727 = vmatpush1.bf16.msra.mxu0 %v718
        %728 = vmatprep.subr.bf16.mxu0 0
        %729 = vmatpush1.bf16.msra.mxu0 %v719
        %730 = vmatprep.subr.bf16.mxu0 0
        %731 = vmatpush1.bf16.msra.mxu0 %v720
        %732 = vmatprep.subr.bf16.mxu0 0
        %733 = vmatpush1.bf16.msra.mxu0 %v721
        %734 = vmatprep.subr.bf16.mxu0 0
        %735 = vmatpush1.bf16.msra.mxu0 0
        %736 = vmatprep.subr.bf16.mxu0 0
        %737 = vmatpush1.bf16.msra.mxu0 0
        %738 = vmatprep.subr.bf16.mxu0 0
        %739 = vmatpush1.bf16.msra.mxu0 0
        %740 = vmatprep.subr.bf16.mxu0 0
        %741 = vmatpush1.bf16.msra.mxu0 0
        %742 = vmatprep.subr.bf16.mxu0 0
        %743 = vmatpush1.bf16.msra.mxu0 0
        %744 = vmatprep.subr.bf16.mxu0 0
        %745 = vmatpush1.bf16.msra.mxu0 0
        %746 = vmatprep.subr.bf16.mxu0 0
        %747 = vmatpush1.bf16.msra.mxu0 0
        %748 = vmatprep.subr.bf16.mxu0 0
        %749 = vmatpush1.bf16.msra.mxu0 0
        %750 = vmatprep.subr.bf16.mxu0 0
        %751 = vmatpush1.bf16.msra.mxu0 0
        %752 = vmatprep.subr.bf16.mxu0 0
        %753 = vmatpush1.bf16.msra.mxu0 0
        %754 = vmatprep.subr.bf16.mxu0 0
        %755 = vmatpush1.bf16.msra.mxu0 0
        %756 = vmatprep.subr.bf16.mxu0 0
        %757 = vmatpush1.bf16.msra.mxu0 0
        %758 = vmatprep.mubr.bf16.mxu0 0
        %759 = vmatmul.mubr.bf16.gmra.mrb[0].mxu0 %v512
        %v760 = vpop.f32.mrb[0].mxu0
        %v761 = vadd.f32 0.0, %v760
        %v762 = vpop.f32.mrb[0].mxu0
        %v763 = vpop.f32.mrb[0].mxu0
        %v764 = vadd.f32 0.0, %v763
        %v765 = vpop.f32.mrb[0].mxu0
        %766 = vdwg.mxu0
        %v767 = vld [vmem:[%s5] sm:$0xf]
        %v768 = vld [vmem:[%s5 + $0x4] sm:$0xf]
        %v769 = vld [vmem:[%s5 + $0x8] sm:$0xf]
        %v770 = vld [vmem:[%s5 + $0xc] sm:$0xf]
        %v771 = vld [vmem:[%s5 + $0x10] sm:$0xf]
        %v772 = vld [vmem:[%s5 + $0x14] sm:$0xf]
        %v773 = vld [vmem:[%s5 + $0x18] sm:$0xf]
        %v774 = vld [vmem:[%s5 + $0x1c] sm:$0xf]
        %v783 = vunpack.c.l.b16 %v767
        %v784 = vunpack.c.l.b16 %v768
        %v785 = vunpack.c.l.b16 %v769
        %v786 = vunpack.c.l.b16 %v770
        %v787 = vunpack.c.l.b16 %v771
        %v788 = vunpack.c.l.b16 %v772
        %v789 = vunpack.c.l.b16 %v773
        %v790 = vunpack.c.l.b16 %v774
        %v791 = vpack.c.b16 %v784, %v783
        %v792 = vpack.c.b16 %v786, %v785
        %v793 = vpack.c.b16 %v788, %v787
        %v794 = vpack.c.b16 %v790, %v789
        %799 = vmatprep.subr.bf16.mxu0 0
        %800 = vmatpush1.bf16.msra.mxu0 %v791
        %801 = vmatprep.subr.bf16.mxu0 0
        %802 = vmatpush1.bf16.msra.mxu0 %v792
        %803 = vmatprep.subr.bf16.mxu0 0
        %804 = vmatpush1.bf16.msra.mxu0 %v793
        %805 = vmatprep.subr.bf16.mxu0 0
        %806 = vmatpush1.bf16.msra.mxu0 %v794
        %807 = vmatprep.subr.bf16.mxu0 0
        %808 = vmatpush1.bf16.msra.mxu0 0
        %809 = vmatprep.subr.bf16.mxu0 0
        %810 = vmatpush1.bf16.msra.mxu0 0
        %811 = vmatprep.subr.bf16.mxu0 0
        %812 = vmatpush1.bf16.msra.mxu0 0
        %813 = vmatprep.subr.bf16.mxu0 0
        %814 = vmatpush1.bf16.msra.mxu0 0
        %815 = vmatprep.subr.bf16.mxu0 0
        %816 = vmatpush1.bf16.msra.mxu0 0
        %817 = vmatprep.subr.bf16.mxu0 0
        %818 = vmatpush1.bf16.msra.mxu0 0
        %819 = vmatprep.subr.bf16.mxu0 0
        %820 = vmatpush1.bf16.msra.mxu0 0
        %821 = vmatprep.subr.bf16.mxu0 0
        %822 = vmatpush1.bf16.msra.mxu0 0
        %823 = vmatprep.subr.bf16.mxu0 0
        %824 = vmatpush1.bf16.msra.mxu0 0
        %825 = vmatprep.subr.bf16.mxu0 0
        %826 = vmatpush1.bf16.msra.mxu0 0
        %827 = vmatprep.subr.bf16.mxu0 0
        %828 = vmatpush1.bf16.msra.mxu0 0
        %829 = vmatprep.subr.bf16.mxu0 0
        %830 = vmatpush1.bf16.msra.mxu0 0
        %831 = vmatprep.mubr.bf16.mxu0 0
        %832 = vmatmul.mubr.bf16.gmra.mrb[0].mxu0 %v512
        %v833 = vpop.f32.mrb[0].mxu0
        %v834 = vadd.f32 0.0, %v833
        %v835 = vpop.f32.mrb[0].mxu0
        %v836 = vpop.f32.mrb[0].mxu0
        %v837 = vadd.f32 0.0, %v836
        %v838 = vpop.f32.mrb[0].mxu0
        %839 = vdwg.mxu0
        %v840 = vxor.u32 %v761, 2147483648
        %v841 = vxor.u32 %v764, 2147483648
        %v842 = vmul.f32 %v840, 1.442695
        %v843 = vpow.pop %v842
        %v844 = vmul.f32 %v841, 1.442695
        %v845 = vpow.pop %v844
        %v846 = vadd.f32 %v843, 1.0
        %v847 = vadd.f32 %v845, 1.0
        %v848 = vrcp.pop %v846
        %v849 = vmul.f32 1.0, %v848
        %v850 = vrcp.pop %v847
        %v851 = vmul.f32 1.0, %v850
        %v852 = vmul.f32 %v761, %v849
        %v853 = vmul.f32 %v764, %v851
        %v854 = vmul.f32 %v852, %v834
        %v855 = vmul.f32 %v853, %v837
        %v856 = vpack.c.bf16 %v855, %v854
        %v857 = vld [vmem:[%s6] sm:$0xf]
        %v858 = vld [vmem:[%s6 + $0x4] sm:$0xf]
        %v859 = vld [vmem:[%s6 + $0x8] sm:$0xf]
        %v860 = vld [vmem:[%s6 + $0xc] sm:$0xf]
        %v861 = vld [vmem:[%s6 + $0x10] sm:$0xf]
        %v862 = vld [vmem:[%s6 + $0x14] sm:$0xf]
        %v863 = vld [vmem:[%s6 + $0x18] sm:$0xf]
        %v864 = vld [vmem:[%s6 + $0x1c] sm:$0xf]
        %v865 = vld [vmem:[%s6 + $0x20] sm:$0xf]
        %v866 = vld [vmem:[%s6 + $0x24] sm:$0xf]
        %v867 = vld [vmem:[%s6 + $0x28] sm:$0xf]
        %v868 = vld [vmem:[%s6 + $0x2c] sm:$0xf]
        %v869 = vld [vmem:[%s6 + $0x30] sm:$0xf]
        %v870 = vld [vmem:[%s6 + $0x34] sm:$0xf]
        %v871 = vld [vmem:[%s6 + $0x38] sm:$0xf]
        %v872 = vld [vmem:[%s6 + $0x3c] sm:$0xf]
        %v889 = vunpack.c.l.b16 %v857
        %v890 = vunpack.c.l.b16 %v858
        %v891 = vunpack.c.l.b16 %v859
        %v892 = vunpack.c.l.b16 %v860
        %v893 = vunpack.c.l.b16 %v861
        %v894 = vunpack.c.l.b16 %v862
        %v895 = vunpack.c.l.b16 %v863
        %v896 = vunpack.c.l.b16 %v864
        %v897 = vunpack.c.l.b16 %v865
        %v898 = vunpack.c.l.b16 %v866
        %v899 = vunpack.c.l.b16 %v867
        %v900 = vunpack.c.l.b16 %v868
        %v901 = vunpack.c.l.b16 %v869
        %v902 = vunpack.c.l.b16 %v870
        %v903 = vunpack.c.l.b16 %v871
        %v904 = vunpack.c.l.b16 %v872
        %v905 = vpack.c.b16 %v890, %v889
        %v906 = vpack.c.b16 %v892, %v891
        %v907 = vpack.c.b16 %v894, %v893
        %v908 = vpack.c.b16 %v896, %v895
        %v909 = vpack.c.b16 %v898, %v897
        %v910 = vpack.c.b16 %v900, %v899
        %v911 = vpack.c.b16 %v902, %v901
        %v912 = vpack.c.b16 %v904, %v903
        %921 = vmatprep.subr.bf16.mxu0 0
        %922 = vmatpush1.bf16.msra.mxu0 %v905
        %923 = vmatprep.subr.bf16.mxu0 0
        %924 = vmatpush1.bf16.msra.mxu0 %v906
        %925 = vmatprep.subr.bf16.mxu0 0
        %926 = vmatpush1.bf16.msra.mxu0 %v907
        %927 = vmatprep.subr.bf16.mxu0 0
        %928 = vmatpush1.bf16.msra.mxu0 %v908
        %929 = vmatprep.subr.bf16.mxu0 0
        %930 = vmatpush1.bf16.msra.mxu0 %v909
        %931 = vmatprep.subr.bf16.mxu0 0
        %932 = vmatpush1.bf16.msra.mxu0 %v910
        %933 = vmatprep.subr.bf16.mxu0 0
        %934 = vmatpush1.bf16.msra.mxu0 %v911
        %935 = vmatprep.subr.bf16.mxu0 0
        %936 = vmatpush1.bf16.msra.mxu0 %v912
        %937 = vmatprep.subr.bf16.mxu0 0
        %938 = vmatpush1.bf16.msra.mxu0 0
        %939 = vmatprep.subr.bf16.mxu0 0
        %940 = vmatpush1.bf16.msra.mxu0 0
        %941 = vmatprep.subr.bf16.mxu0 0
        %942 = vmatpush1.bf16.msra.mxu0 0
        %943 = vmatprep.subr.bf16.mxu0 0
        %944 = vmatpush1.bf16.msra.mxu0 0
        %945 = vmatprep.subr.bf16.mxu0 0
        %946 = vmatpush1.bf16.msra.mxu0 0
        %947 = vmatprep.subr.bf16.mxu0 0
        %948 = vmatpush1.bf16.msra.mxu0 0
        %949 = vmatprep.subr.bf16.mxu0 0
        %950 = vmatpush1.bf16.msra.mxu0 0
        %951 = vmatprep.subr.bf16.mxu0 0
        %952 = vmatpush1.bf16.msra.mxu0 0
        %953 = vmatprep.mubr.bf16.mxu0 0
        %954 = vmatmul.mubr.bf16.gmra.mrb[0].mxu0 %v856
        %v955 = vpop.f32.mrb[0].mxu0
        %v956 = vadd.f32 0.0, %v955
        %v957 = vpop.f32.mrb[0].mxu0
        %v958 = vpop.f32.mrb[0].mxu0
        %v959 = vadd.f32 0.0, %v958
        %v960 = vpop.f32.mrb[0].mxu0
        %961 = vdwg.mxu0
        %v962 = vadd.f32 %v440, %v956
        %v963 = vadd.f32 %v441, %v959
        %964 = vst.msk [vmem:[#allocation4] sm:$0xff] %vm444, %v962
        %965 = vst.msk [vmem:[#allocation4 + $0x8] sm:$0xff] %vm444, %v963
      $region64: #{stock_transformer_forward.8} parent=59 // pred_fallthru
        _
      %v966 = vld [vmem:[#allocation2] sm:$0xff]
      %v967 = vld [vmem:[#allocation2 + $0x8] sm:$0xff]
      %v968 = vpack.c.bf16 %v967, %v966
      %v969 = vld [vmem:[%s418] sm:$0xf]
      %v970 = vld [vmem:[%s418 + $0x4] sm:$0xf]
      %v971 = vld [vmem:[%s418 + $0x8] sm:$0xf]
      %v972 = vld [vmem:[%s418 + $0xc] sm:$0xf]
      %v973 = vld [vmem:[%s418 + $0x10] sm:$0xf]
      %v974 = vld [vmem:[%s418 + $0x14] sm:$0xf]
      %v975 = vld [vmem:[%s418 + $0x18] sm:$0xf]
      %v976 = vld [vmem:[%s418 + $0x1c] sm:$0xf]
      %v985 = vunpack.c.l.b16 %v969
      %v986 = vunpack.c.l.b16 %v970
      %v987 = vunpack.c.l.b16 %v971
      %v988 = vunpack.c.l.b16 %v972
      %v989 = vunpack.c.l.b16 %v973
      %v990 = vunpack.c.l.b16 %v974
      %v991 = vunpack.c.l.b16 %v975
      %v992 = vunpack.c.l.b16 %v976
      %v993 = vpack.c.b16 %v986, %v985
      %v994 = vpack.c.b16 %v988, %v987
      %v995 = vpack.c.b16 %v990, %v989
      %v996 = vpack.c.b16 %v992, %v991
      %vm1001 = vcmask 523264
      %v1003 = vsel %vm1001, %v968, 0
      %1005 = vmatprep.subr.bf16.mxu0 0
      %1006 = vmatpush1.bf16.msra.mxu0 %v993
      %1007 = vmatprep.subr.bf16.mxu0 0
      %1008 = vmatpush1.bf16.msra.mxu0 %v994
      %1009 = vmatprep.subr.bf16.mxu0 0
      %1010 = vmatpush1.bf16.msra.mxu0 %v995
      %1011 = vmatprep.subr.bf16.mxu0 0
      %1012 = vmatpush1.bf16.msra.mxu0 %v996
      %1013 = vmatprep.subr.bf16.mxu0 0
      %1014 = vmatpush1.bf16.msra.mxu0 0
      %1015 = vmatprep.subr.bf16.mxu0 0
      %1016 = vmatpush1.bf16.msra.mxu0 0
      %1017 = vmatprep.subr.bf16.mxu0 0
      %1018 = vmatpush1.bf16.msra.mxu0 0
      %1019 = vmatprep.subr.bf16.mxu0 0
      %1020 = vmatpush1.bf16.msra.mxu0 0
      %1021 = vmatprep.subr.bf16.mxu0 0
      %1022 = vmatpush1.bf16.msra.mxu0 0
      %1023 = vmatprep.subr.bf16.mxu0 0
      %1024 = vmatpush1.bf16.msra.mxu0 0
      %1025 = vmatprep.subr.bf16.mxu0 0
      %1026 = vmatpush1.bf16.msra.mxu0 0
      %1027 = vmatprep.subr.bf16.mxu0 0
      %1028 = vmatpush1.bf16.msra.mxu0 0
      %1029 = vmatprep.subr.bf16.mxu0 0
      %1030 = vmatpush1.bf16.msra.mxu0 0
      %1031 = vmatprep.subr.bf16.mxu0 0
      %1032 = vmatpush1.bf16.msra.mxu0 0
      %1033 = vmatprep.subr.bf16.mxu0 0
      %1034 = vmatpush1.bf16.msra.mxu0 0
      %1035 = vmatprep.subr.bf16.mxu0 0
      %1036 = vmatpush1.bf16.msra.mxu0 0
      %1037 = vmatprep.mubr.bf16.mxu0 0
      %1038 = vmatmul.mubr.bf16.gmra.mrb[0].mxu0 %v1003
      %v1039 = vpop.f32.mrb[0].mxu0
      %v1040 = vadd.f32 0.0, %v1039
      %v1041 = vpop.f32.mrb[0].mxu0
      %v1042 = vpop.f32.mrb[0].mxu0
      %v1043 = vadd.f32 0.0, %v1042
      %v1044 = vpop.f32.mrb[0].mxu0
      %1045 = vdwg.mxu0
      %v1046 = vld [vmem:[%s423] sm:$0xf]
      %v1047 = vld [vmem:[%s423 + $0x4] sm:$0xf]
      %v1048 = vld [vmem:[%s423 + $0x8] sm:$0xf]
      %v1049 = vld [vmem:[%s423 + $0xc] sm:$0xf]
      %v1050 = vld [vmem:[%s423 + $0x10] sm:$0xf]
      %v1051 = vld [vmem:[%s423 + $0x14] sm:$0xf]
      %v1052 = vld [vmem:[%s423 + $0x18] sm:$0xf]
      %v1053 = vld [vmem:[%s423 + $0x1c] sm:$0xf]
      %v1062 = vunpack.c.l.b16 %v1046
      %v1063 = vunpack.c.l.b16 %v1047
      %v1064 = vunpack.c.l.b16 %v1048
      %v1065 = vunpack.c.l.b16 %v1049
      %v1066 = vunpack.c.l.b16 %v1050
      %v1067 = vunpack.c.l.b16 %v1051
      %v1068 = vunpack.c.l.b16 %v1052
      %v1069 = vunpack.c.l.b16 %v1053
      %v1070 = vpack.c.b16 %v1063, %v1062
      %v1071 = vpack.c.b16 %v1065, %v1064
      %v1072 = vpack.c.b16 %v1067, %v1066
      %v1073 = vpack.c.b16 %v1069, %v1068
      %1078 = vmatprep.subr.bf16.mxu0 0
      %1079 = vmatpush1.bf16.msra.mxu0 %v1070
      %1080 = vmatprep.subr.bf16.mxu0 0
      %1081 = vmatpush1.bf16.msra.mxu0 %v1071
      %1082 = vmatprep.subr.bf16.mxu0 0
      %1083 = vmatpush1.bf16.msra.mxu0 %v1072
      %1084 = vmatprep.subr.bf16.mxu0 0
      %1085 = vmatpush1.bf16.msra.mxu0 %v1073
      %1086 = vmatprep.subr.bf16.mxu0 0
      %1087 = vmatpush1.bf16.msra.mxu0 0
      %1088 = vmatprep.subr.bf16.mxu0 0
      %1089 = vmatpush1.bf16.msra.mxu0 0
      %1090 = vmatprep.subr.bf16.mxu0 0
      %1091 = vmatpush1.bf16.msra.mxu0 0
      %1092 = vmatprep.subr.bf16.mxu0 0
      %1093 = vmatpush1.bf16.msra.mxu0 0
      %1094 = vmatprep.subr.bf16.mxu0 0
      %1095 = vmatpush1.bf16.msra.mxu0 0
      %1096 = vmatprep.subr.bf16.mxu0 0
      %1097 = vmatpush1.bf16.msra.mxu0 0
      %1098 = vmatprep.subr.bf16.mxu0 0
      %1099 = vmatpush1.bf16.msra.mxu0 0
      %1100 = vmatprep.subr.bf16.mxu0 0
      %1101 = vmatpush1.bf16.msra.mxu0 0
      %1102 = vmatprep.subr.bf16.mxu0 0
      %1103 = vmatpush1.bf16.msra.mxu0 0
      %1104 = vmatprep.subr.bf16.mxu0 0
      %1105 = vmatpush1.bf16.msra.mxu0 0
      %1106 = vmatprep.subr.bf16.mxu0 0
      %1107 = vmatpush1.bf16.msra.mxu0 0
      %1108 = vmatprep.subr.bf16.mxu0 0
      %1109 = vmatpush1.bf16.msra.mxu0 0
      %1110 = vmatprep.mubr.bf16.mxu0 0
      %1111 = vmatmul.mubr.bf16.gmra.mrb[0].mxu0 %v1003
      %v1112 = vpop.f32.mrb[0].mxu0
      %v1113 = vadd.f32 0.0, %v1112
      %v1114 = vpop.f32.mrb[0].mxu0
      %v1115 = vpop.f32.mrb[0].mxu0
      %v1116 = vadd.f32 0.0, %v1115
      %v1117 = vpop.f32.mrb[0].mxu0
      %1118 = vdwg.mxu0
      %v1119 = vxor.u32 %v1040, 2147483648
      %v1120 = vxor.u32 %v1043, 2147483648
      %v1121 = vmul.f32 %v1119, 1.442695
      %v1122 = vpow.pop %v1121
      %v1123 = vmul.f32 %v1120, 1.442695
      %v1124 = vpow.pop %v1123
      %v1125 = vadd.f32 %v1122, 1.0
      %v1126 = vadd.f32 %v1124, 1.0
      %v1127 = vrcp.pop %v1125
      %v1128 = vmul.f32 1.0, %v1127
      %v1129 = vrcp.pop %v1126
      %v1130 = vmul.f32 1.0, %v1129
      %v1131 = vmul.f32 %v1040, %v1128
      %v1132 = vmul.f32 %v1043, %v1130
      %v1133 = vmul.f32 %v1131, %v1113
      %v1134 = vmul.f32 %v1132, %v1116
      %v1135 = vpack.c.bf16 %v1134, %v1133
      %v1136 = vld [vmem:[%s428] sm:$0xf]
      %v1137 = vld [vmem:[%s428 + $0x4] sm:$0xf]
      %v1138 = vld [vmem:[%s428 + $0x8] sm:$0xf]
      %v1139 = vld [vmem:[%s428 + $0xc] sm:$0xf]
      %v1144 = vunpack.c.l.b16 %v1136
      %v1145 = vunpack.c.l.b16 %v1137
      %v1146 = vunpack.c.l.b16 %v1138
      %v1147 = vunpack.c.l.b16 %v1139
      %v1148 = vpack.c.b16 %v1145, %v1144
      %v1149 = vpack.c.b16 %v1147, %v1146
      %vm1152 = vcmask 261120
      %v1154 = vsel %vm1152, %v1135, 0
      %1156 = vmatprep.subr.bf16.mxu0 0
      %1157 = vmatpush1.bf16.msra.mxu0 %v1148
      %1158 = vmatprep.subr.bf16.mxu0 0
      %1159 = vmatpush1.bf16.msra.mxu0 %v1149
      %1160 = vmatprep.subr.bf16.mxu0 0
      %1161 = vmatpush1.bf16.msra.mxu0 0
      %1162 = vmatprep.subr.bf16.mxu0 0
      %1163 = vmatpush1.bf16.msra.mxu0 0
      %1164 = vmatprep.subr.bf16.mxu0 0
      %1165 = vmatpush1.bf16.msra.mxu0 0
      %1166 = vmatprep.subr.bf16.mxu0 0
      %1167 = vmatpush1.bf16.msra.mxu0 0
      %1168 = vmatprep.subr.bf16.mxu0 0
      %1169 = vmatpush1.bf16.msra.mxu0 0
      %1170 = vmatprep.subr.bf16.mxu0 0
      %1171 = vmatpush1.bf16.msra.mxu0 0
      %1172 = vmatprep.subr.bf16.mxu0 0
      %1173 = vmatpush1.bf16.msra.mxu0 0
      %1174 = vmatprep.subr.bf16.mxu0 0
      %1175 = vmatpush1.bf16.msra.mxu0 0
      %1176 = vmatprep.subr.bf16.mxu0 0
      %1177 = vmatpush1.bf16.msra.mxu0 0
      %1178 = vmatprep.subr.bf16.mxu0 0
      %1179 = vmatpush1.bf16.msra.mxu0 0
      %1180 = vmatprep.subr.bf16.mxu0 0
      %1181 = vmatpush1.bf16.msra.mxu0 0
      %1182 = vmatprep.subr.bf16.mxu0 0
      %1183 = vmatpush1.bf16.msra.mxu0 0
      %1184 = vmatprep.subr.bf16.mxu0 0
      %1185 = vmatpush1.bf16.msra.mxu0 0
      %1186 = vmatprep.subr.bf16.mxu0 0
      %1187 = vmatpush1.bf16.msra.mxu0 0
      %1188 = vmatprep.mubr.bf16.mxu0 0
      %1189 = vmatmul.mubr.bf16.gmra.mrb[0].mxu0 %v1154
      %v1190 = vpop.f32.mrb[0].mxu0
      %v1191 = vadd.f32 0.0, %v1190
      %v1192 = vpop.f32.mrb[0].mxu0
      %v1193 = vpop.f32.mrb[0].mxu0
      %v1194 = vadd.f32 0.0, %v1193
      %v1195 = vpop.f32.mrb[0].mxu0
      %1196 = vdwg.mxu0
      %v1197 = vld [vmem:[#allocation3] sm:$0xff]
      %v1198 = vld [vmem:[#allocation3 + $0x8] sm:$0xff]
      %v1199 = vlaneseq
      %v1200 = vand.u32 %v1199, 127
      %v1201 = vstv %s26
      %vm1202 = vcmp.eq.s32.totalorder %v1200, %v1201
      %v1203 = vsel %vm1202, %v1197, 0.0
      %v1204 = vsel %vm1202, %v1198, 0.0
      %vm1205 = vcmask 31744
      %v1206 = vsel %vm1205, %v1203, 0.0
      %1207 = vadd.xlane.f32.xlu0 %v1206
      %v1208 = vpop.xlane.xlu0 %1207
      %v1209 = vsel %vm1205, %v1204, 0.0
      %1210 = vadd.xlane.f32.xlu0 %v1209
      %v1211 = vpop.xlane.xlu0 %1210
      %v1212 = vld [vmem:[#allocation4] sm:$0xff]
      %v1213 = vld [vmem:[#allocation4 + $0x8] sm:$0xff]
      %v1214 = vmul.f32 %v1208, %v1191
      %v1215 = vmul.f32 %v1211, %v1194
      %v1216 = vadd.f32 %v1212, %v1214
      %v1217 = vadd.f32 %v1213, %v1215
      %1218 = vst.msk [vmem:[#allocation4] sm:$0xff] %vm1001, %v1216
      %1219 = vst.msk [vmem:[#allocation4 + $0x8] sm:$0xff] %vm1001, %v1217
      %p1220 = scmp.eq.s32.totalorder %s26, 3
      // Predicated region
      $region65: #{stock_transformer_forward.8} parent=59 // pred_check
        %p1221 = pneg %p1220
      $region66: #{stock_transformer_forward.8} parent=59 // pred_check_branch
        %1223 = sbr.rel (%p1221) target = $region68
      $region67: #{stock_transformer_forward.8} parent=59 // pred_region
        %v1224 = vld [vmem:[#allocation4] sm:$0xff]
        %v1225 = vld [vmem:[#allocation4 + $0x8] sm:$0xff]
        %1226 = vst.msk [vmem:[%s433] sm:$0xff] %vm1001, %v1224
        %1227 = vst.msk [vmem:[%s433 + $0x8] sm:$0xff] %vm1001, %v1225
      $region68: #{stock_transformer_forward.8} parent=59 // pred_fallthru
        _
      %s1228 = smul.u32 2, %s25
      %p1229 = scmp.lt.s32.totalorder %s1228, 1
      %s1230 = scalar_select %p1229, %s1228, 1
      %s1231 = smul.addr %s1230, 8
      %s1232 = scalar_lea.vmem %s10, %s1231
      // Predicated region
      $region69: #{stock_transformer_forward.8} parent=59 // pred_check
        %p1233 = pneg %p281
      $region70: #{stock_transformer_forward.8} parent=59 // pred_check_branch
        %1235 = sbr.rel (%p1233) target = $region72
      $region71: #{stock_transformer_forward.8} parent=59 // pred_region
        %s1236 = smul.u32 2, %s25
      $region72: #{stock_transformer_forward.8} parent=59 // pred_fallthru
        _
      // Predicated region
      $region73: #{stock_transformer_forward.8} parent=59 // pred_check
        %p1237 = pneg %p281
      $region74: #{stock_transformer_forward.8} parent=59 // pred_check_branch
        %1239 = sbr.rel (%p1237) target = $region76
      $region75: #{stock_transformer_forward.8} parent=59 // pred_region
        %s1240 = smul.u32 2, %s25
        %p1241 = scmp.lt.s32.totalorder %s1240, 1
        %s1242 = scalar_select %p1241, %s1240, 1
        %s1243 = smul.addr %s1242, 8
        %s1244 = scalar_lea.vmem %s10, %s1243
      $region76: #{stock_transformer_forward.8} parent=59 // pred_fallthru
        _
    $region60: #{stock_transformer_forward.8} parent=5 // pred_fallthru
      _
    %p1245 = scmp.le.s32.totalorder 2, %s16
    // Predicated region
    $region77: #{stock_transformer_forward.8} parent=5 // pred_check
      %p1246 = pneg %p1245
    $region78: #{stock_transformer_forward.8} parent=5 // pred_check_branch
      %1248 = sbr.rel (%p1246) target = $region80
    $region79: #{stock_transformer_forward.8} parent=5 // pred_region
      %s1249 = ssub.s32 %s16, 2
    $region80: #{stock_transformer_forward.8} parent=5 // pred_fallthru
      _
  $region6: #{stock_transformer_forward.8} parent=0 // loop_footer
    %s20 = sadd.s32 1, %s16
  $region7: #{stock_transformer_forward.8} parent=0 // loop_footer_branch
    %15 = sbr.rel target = $region3
  $region8: #{stock_transformer_forward.8} parent=0 // loop_exit
    _

</llo_original>
